<compile_context>
chip_gen: v6e
topology: v6e:2x2x1
jax: 0.10.0
libtpu: 0.0.40
codegen_flags: <defaults>
</compile_context>

<pallas_src>
import jax
import jax.numpy as jnp
from jax.experimental import pallas as pl
from jax.experimental.pallas import tpu as pltpu

EMB_DIM = 32                   # embedding_dim (small for the example)
D_MODEL = 3 * EMB_DIM          # d_model = embedding_dim * 3  (= 96)
D_PAD = 128                    # lane-aligned padded model dim
N_LAYERS = 2                   # num_layers
FF_DIM = 2048                  # TransformerEncoderLayer default dim_feedforward
FF_CHUNK = 1024                # hidden-dim chunk inside the kernel
FEAT_DIM = 64
LN_EPS = 1e-5
VMEM_LIMIT_BYTES = 40 * 1024 * 1024   # explicit scoped-VMEM budget (fits all gens)


def _round_up(n, m):
    return ((n + m - 1) // m) * m


def _layer_norm_padded(x, gamma, beta, feat_mask):
    """LayerNorm over the first D_MODEL lanes of a (TB, D_PAD) tensor.

    Two-pass variance on (x - mu), masked to the real features so the padded
    lanes (which hold exact zeros) don't pollute the statistics.  gamma/beta
    are zero in the padded lanes, so the output stays exactly zero there.
    """
    n = float(D_MODEL)
    mu = jnp.sum(x, axis=-1, keepdims=True) / n
    xc = jnp.where(feat_mask, x - mu, 0.0)
    var = jnp.sum(xc * xc, axis=-1, keepdims=True) / n
    inv = jax.lax.rsqrt(var + LN_EPS)
    return xc * inv * gamma + beta


def transformer_classifier_kernel(
    x_ref,
    wattn_ref, battn_ref,
    ln1g_ref, ln1b_ref,
    w1_ref, b1_ref, w2_ref, b2_ref,
    ln2g_ref, ln2b_ref,
    wfe_ref, bfe_ref, wcl_ref, bcl_ref,
    out_ref,
):
    # Mask of the real (non-padded) feature lanes; hoisted out of the layer loop.
    lane = jax.lax.broadcasted_iota(jnp.int32, (1, D_PAD), 1)
    feat_mask = lane < D_MODEL

    x = x_ref[...]                                        # [TB, D_PAD] f32, padded lanes zero
    for l in range(N_LAYERS):                             # static unroll over layers
        # Self-attention with seq_len == 1 (softmax over one key == 1) folded
        # offline: sa = x @ (wv @ wo) + (bv @ wo + bo) == out_proj(V(x)).
        xb = x.astype(jnp.bfloat16)
        sa = jnp.dot(xb, wattn_ref[l], preferred_element_type=jnp.float32) + battn_ref[l]
        x = _layer_norm_padded(x + sa, ln1g_ref[l], ln1b_ref[l], feat_mask)

        # Feed-forward block (ReLU, dropout == identity at eval), chunked over
        # the hidden dim so the (TB, FF_DIM) f32 intermediate never fully lives.
        xb = x.astype(jnp.bfloat16)
        ff = None
        for c in range(FF_DIM // FF_CHUNK):
            c0 = c * FF_CHUNK
            h = jnp.dot(xb, w1_ref[l, :, c0:c0 + FF_CHUNK],
                        preferred_element_type=jnp.float32) + b1_ref[l, :, c0:c0 + FF_CHUNK]
            h = jnp.maximum(h, 0.0)
            part = jnp.dot(h.astype(jnp.bfloat16), w2_ref[l, c0:c0 + FF_CHUNK, :],
                           preferred_element_type=jnp.float32)
            ff = part if ff is None else ff + part
        ff = ff + b2_ref[l]
        x = _layer_norm_padded(x + ff, ln2g_ref[l], ln2b_ref[l], feat_mask)

    # feature_extractor: Linear(3E, 64) + ReLU (+ Dropout == identity at eval)
    feat = jnp.dot(x.astype(jnp.bfloat16), wfe_ref[...],
                   preferred_element_type=jnp.float32) + bfe_ref[...]
    feat = jnp.maximum(feat, 0.0)
    # classifier: Linear(64, 1) + Sigmoid.  Done on the VPU/XLU (row reduce)
    # instead of an N=1 MXU pass that would waste 127/128 output lanes.
    logit = jnp.sum(feat * wcl_ref[...], axis=-1, keepdims=True) + bcl_ref[...]
    out_ref[...] = 1.0 / (1.0 + jnp.exp(-logit))


def _resident_spec(arr):
    """BlockSpec covering the full array with a constant index_map so the
    weight is fetched once and stays resident in VMEM across grid steps."""
    nd = arr.ndim
    return pl.BlockSpec(arr.shape, lambda i, _nd=nd: (0,) * _nd)


def stage_params(params):
    """Fold the attention, pad D_MODEL -> D_PAD with zeros, cast big matmul
    weights to bf16.  All pads MUST be zero (the padded-lane-zero invariant
    relies on it)."""
    pad_d = D_PAD - D_MODEL

    def pad_axis(a, axis):
        cfg = [(0, 0)] * a.ndim
        cfg[axis] = (0, pad_d)
        return jnp.pad(a, cfg)

    # Fold seq_len==1 attention:  sa = x @ (wv@wo) + (bv@wo + bo).
    w_attn = jnp.einsum("lij,ljk->lik", params["wv"], params["wo"])        # (L, D, D) f32
    b_attn = jnp.einsum("lij,ljk->lik", params["bv"], params["wo"]) + params["bo"]  # (L, 1, D)

    staged = {
        "drug_emb": params["drug_emb"],
        "gene_emb": params["gene_emb"],
        # Disease table pre-padded so concat([drug, gene, disease_pad]) is
        # already (B, D_PAD) with zero pad lanes.
        "disease_emb_pad": jnp.pad(params["disease_emb"], ((0, 0), (0, pad_d))),
        "w_attn": pad_axis(pad_axis(w_attn, 1), 2).astype(jnp.bfloat16),
        "b_attn": pad_axis(b_attn, 2),
        "ln1g": pad_axis(params["ln1g"], 2),   # pads are ZERO (keeps pad lanes zero)
        "ln1b": pad_axis(params["ln1b"], 2),
        "w1": pad_axis(params["w1"], 1).astype(jnp.bfloat16),
        "b1": params["b1"],
        "w2": pad_axis(params["w2"], 2).astype(jnp.bfloat16),
        "b2": pad_axis(params["b2"], 2),
        "ln2g": pad_axis(params["ln2g"], 2),
        "ln2b": pad_axis(params["ln2b"], 2),
        "wfe": pad_axis(params["wfe"], 0).astype(jnp.bfloat16),
        "bfe": params["bfe"],
        "wcl_row": params["wcl"].T,            # (1, FEAT_DIM) row for the VPU reduce
        "bcl": params["bcl"],
    }
    return staged


def transformer_classifier_forward(staged, drugs, genes, diseases, tb=1024):
    B = drugs.shape[0]

    # Batch tile: as large as VMEM allows (default 1024), multiple of 8
    # sublanes, capped so the grid keeps >= 2 steps when the batch allows it
    # (v7x megacore: the batch axis is the only shardable grid axis).
    b8 = _round_up(max(B, 1), 8)
    tb = min(tb, b8)
    if b8 >= 16:
        tb = min(tb, _round_up(b8 // 2, 8))
    tb = max(8, _round_up(tb, 8))
    b_pad = _round_up(B, tb)

    # Glue: pad the index vectors (cheap), then gather + concat directly into
    # the padded (b_pad, D_PAD) layout -- no second full-size copy of x.
    # TODO(synk): the gather/concat could be fused into the kernel via
    # PrefetchScalarGridSpec + in-kernel row gathers from VMEM-resident tables.
    pad_n = b_pad - B
    if pad_n:
        drugs = jnp.pad(drugs, (0, pad_n))
        genes = jnp.pad(genes, (0, pad_n))
        diseases = jnp.pad(diseases, (0, pad_n))
    x_pad = jnp.concatenate(
        [staged["drug_emb"][drugs],
         staged["gene_emb"][genes],
         staged["disease_emb_pad"][diseases]], axis=1).astype(jnp.float32)  # [b_pad, D_PAD]

    weight_args = (
        staged["w_attn"], staged["b_attn"],
        staged["ln1g"], staged["ln1b"],
        staged["w1"], staged["b1"], staged["w2"], staged["b2"],
        staged["ln2g"], staged["ln2b"],
        staged["wfe"], staged["bfe"], staged["wcl_row"], staged["bcl"],
    )

    in_specs = [pl.BlockSpec((tb, D_PAD), lambda i: (i, 0))]
    in_specs += [_resident_spec(w) for w in weight_args]

    out = pl.pallas_call(
        transformer_classifier_kernel,
        out_shape=jax.ShapeDtypeStruct((b_pad, 1), jnp.float32),
        grid=(b_pad // tb,),
        in_specs=in_specs,
        out_specs=pl.BlockSpec((tb, 1), lambda i: (i, 0)),
        compiler_params=pltpu.CompilerParams(
            dimension_semantics=("parallel",),      # megacore sharding on v7x
            vmem_limit_bytes=VMEM_LIMIT_BYTES,
        ),
    )(x_pad, *weight_args)
    return out[:B, 0]                                     # .squeeze(1) -> [B]


def init_params(key, num_drugs, num_genes, num_diseases):
    ks = iter(jax.random.split(key, 24))
    scale = 0.05
    L, D, F = N_LAYERS, D_MODEL, FF_DIM

    def rnd(shape):
        return (scale * jax.random.normal(next(ks), shape)).astype(jnp.float32)

    return {
        "drug_emb": rnd((num_drugs, EMB_DIM)),
        "gene_emb": rnd((num_genes, EMB_DIM)),
        "disease_emb": rnd((num_diseases, EMB_DIM)),
        # self-attention V / out projections per layer (stored [in, out])
        "wv": rnd((L, D, D)), "bv": rnd((L, 1, D)),
        "wo": rnd((L, D, D)), "bo": rnd((L, 1, D)),
        "ln1g": jnp.ones((L, 1, D), jnp.float32),
        "ln1b": jnp.zeros((L, 1, D), jnp.float32),
        # feed-forward per layer
        "w1": rnd((L, D, F)), "b1": rnd((L, 1, F)),
        "w2": rnd((L, F, D)), "b2": rnd((L, 1, D)),
        "ln2g": jnp.ones((L, 1, D), jnp.float32),
        "ln2b": jnp.zeros((L, 1, D), jnp.float32),
        # frozen feature extractor + classifier
        "wfe": rnd((D, FEAT_DIM)), "bfe": rnd((1, FEAT_DIM)),
        "wcl": rnd((FEAT_DIM, 1)), "bcl": rnd((1, 1)),
    }


def reference_forward(params, drugs, genes, diseases):
    """Pure-JAX f32 reference of the PyTorch forward (eval mode)."""
    def ln(x, g, b):
        mu = jnp.mean(x, axis=-1, keepdims=True)
        xc = x - mu
        var = jnp.mean(xc * xc, axis=-1, keepdims=True)
        return xc * jax.lax.rsqrt(var + LN_EPS) * g + b

    x = jnp.concatenate([params["drug_emb"][drugs],
                         params["gene_emb"][genes],
                         params["disease_emb"][diseases]], axis=1)
    for l in range(N_LAYERS):
        v = x @ params["wv"][l] + params["bv"][l]
        sa = v @ params["wo"][l] + params["bo"][l]
        x = ln(x + sa, params["ln1g"][l], params["ln1b"][l])
        h = jnp.maximum(x @ params["w1"][l] + params["b1"][l], 0.0)
        ff = h @ params["w2"][l] + params["b2"][l]
        x = ln(x + ff, params["ln2g"][l], params["ln2b"][l])
    feat = jnp.maximum(x @ params["wfe"] + params["bfe"], 0.0)
    logit = feat @ params["wcl"] + params["bcl"]
    return (1.0 / (1.0 + jnp.exp(-logit)))[:, 0]


if __name__ == "__main__":
    key = jax.random.PRNGKey(0)
    pkey, dkey, gkey, skey = jax.random.split(key, 4)

    num_drugs, num_genes, num_diseases = 10, 12, 9
    params = init_params(pkey, num_drugs, num_genes, num_diseases)
    staged = stage_params(params)

    fwd = jax.jit(transformer_classifier_forward)

    # Small batch (single grid step).
    B = 8
    drugs = jax.random.randint(dkey, (B,), 0, num_drugs, dtype=jnp.int32)
    genes = jax.random.randint(gkey, (B,), 0, num_genes, dtype=jnp.int32)
    diseases = jax.random.randint(skey, (B,), 0, num_diseases, dtype=jnp.int32)

    out = jax.block_until_ready(fwd(staged, drugs, genes, diseases))
    ref = jax.block_until_ready(reference_forward(params, drugs, genes, diseases))
    assert out.shape == (B,)
    assert bool(jnp.all((out >= 0.0) & (out <= 1.0)))
    assert float(jnp.max(jnp.abs(out - ref))) < 2e-2   # bf16 weights -> loose tol

    # Larger batch exercising the multi-step (megacore-shardable) grid path
    # with a padded final tile.
    B2 = 40
    d2 = jax.random.randint(jax.random.PRNGKey(1), (B2,), 0, num_drugs, dtype=jnp.int32)
    g2 = jax.random.randint(jax.random.PRNGKey(2), (B2,), 0, num_genes, dtype=jnp.int32)
    s2 = jax.random.randint(jax.random.PRNGKey(3), (B2,), 0, num_diseases, dtype=jnp.int32)
    out2 = jax.block_until_ready(fwd(staged, d2, g2, s2))
    ref2 = jax.block_until_ready(reference_forward(params, d2, g2, s2))
    assert out2.shape == (B2,)
    assert float(jnp.max(jnp.abs(out2 - ref2))) < 2e-2

    print("KERNEL_OK")
</pallas_src>

<mosaic_0001>
module attributes {stable_mosaic.version = 11 : i64} {
  func.func @transformer_classifier_kernel(%arg0: i32, %arg1: memref<8x128xf32, #tpu.memory_space<vmem>>, %arg2: memref<2x128x128xbf16, #tpu.memory_space<vmem>>, %arg3: memref<2x1x128xf32, #tpu.memory_space<vmem>>, %arg4: memref<2x1x128xf32, #tpu.memory_space<vmem>>, %arg5: memref<2x1x128xf32, #tpu.memory_space<vmem>>, %arg6: memref<2x128x2048xbf16, #tpu.memory_space<vmem>>, %arg7: memref<2x1x2048xf32, #tpu.memory_space<vmem>>, %arg8: memref<2x2048x128xbf16, #tpu.memory_space<vmem>>, %arg9: memref<2x1x128xf32, #tpu.memory_space<vmem>>, %arg10: memref<2x1x128xf32, #tpu.memory_space<vmem>>, %arg11: memref<2x1x128xf32, #tpu.memory_space<vmem>>, %arg12: memref<128x64xbf16, #tpu.memory_space<vmem>>, %arg13: memref<1x64xf32, #tpu.memory_space<vmem>>, %arg14: memref<1x64xf32, #tpu.memory_space<vmem>>, %arg15: memref<1x1xf32, #tpu.memory_space<vmem>>, %arg16: memref<8x1xf32, #tpu.memory_space<vmem>>) attributes {dimension_semantics = [#tpu.dimension_semantics<parallel>], iteration_bounds = array<i64: 1>, scalar_prefetch = 0 : i64, scratch_operands = 0 : i64, tpu.core_type = #tpu.core_type<tc>, window_params = [{transform_indices = @transform_0, window_bounds = array<i64: 8, 128>}, {pipeline_mode = #tpu.pipeline_mode<synchronous>, transform_indices = @transform_1, window_bounds = array<i64: 2, 128, 128>}, {pipeline_mode = #tpu.pipeline_mode<synchronous>, transform_indices = @transform_2, window_bounds = array<i64: 2, 1, 128>}, {pipeline_mode = #tpu.pipeline_mode<synchronous>, transform_indices = @transform_3, window_bounds = array<i64: 2, 1, 128>}, {pipeline_mode = #tpu.pipeline_mode<synchronous>, transform_indices = @transform_4, window_bounds = array<i64: 2, 1, 128>}, {pipeline_mode = #tpu.pipeline_mode<synchronous>, transform_indices = @transform_5, window_bounds = array<i64: 2, 128, 2048>}, {pipeline_mode = #tpu.pipeline_mode<synchronous>, transform_indices = @transform_6, window_bounds = array<i64: 2, 1, 2048>}, {pipeline_mode = #tpu.pipeline_mode<synchronous>, transform_indices = @transform_7, window_bounds = array<i64: 2, 2048, 128>}, {pipeline_mode = #tpu.pipeline_mode<synchronous>, transform_indices = @transform_8, window_bounds = array<i64: 2, 1, 128>}, {pipeline_mode = #tpu.pipeline_mode<synchronous>, transform_indices = @transform_9, window_bounds = array<i64: 2, 1, 128>}, {pipeline_mode = #tpu.pipeline_mode<synchronous>, transform_indices = @transform_10, window_bounds = array<i64: 2, 1, 128>}, {pipeline_mode = #tpu.pipeline_mode<synchronous>, transform_indices = @transform_11, window_bounds = array<i64: 128, 64>}, {pipeline_mode = #tpu.pipeline_mode<synchronous>, transform_indices = @transform_12, window_bounds = array<i64: 1, 64>}, {pipeline_mode = #tpu.pipeline_mode<synchronous>, transform_indices = @transform_13, window_bounds = array<i64: 1, 64>}, {pipeline_mode = #tpu.pipeline_mode<synchronous>, transform_indices = @transform_14, window_bounds = array<i64: 1, 1>}, {transform_indices = @transform_15, window_bounds = array<i64: 8, 1>}]} {
    %0 = tpu.iota {dimensions = array<i32: 1>} : vector<1x128xi32>
    %c96_i32 = arith.constant 96 : i32
    %1 = vector.broadcast %c96_i32 : i32 to vector<1x128xi32>
    %2 = arith.cmpi slt, %0, %1 : vector<1x128xi32>
    %c0 = arith.constant 0 : index
    %c0_0 = arith.constant 0 : index
    %3 = vector.load %arg1[%c0, %c0_0] : memref<8x128xf32, #tpu.memory_space<vmem>>, vector<8x128xf32>
    %4 = arith.truncf %3 : vector<8x128xf32> to vector<8x128xbf16>
    %c0_1 = arith.constant 0 : index
    %c0_2 = arith.constant 0 : index
    %c0_3 = arith.constant 0 : index
    %5 = vector.load %arg2[%c0_1, %c0_2, %c0_3] : memref<2x128x128xbf16, #tpu.memory_space<vmem>>, vector<1x128x128xbf16>
    %6 = vector.shape_cast %5 : vector<1x128x128xbf16> to vector<128x128xbf16>
    %cst = arith.constant dense<0.000000e+00> : vector<8x128xf32>
    %7 = tpu.matmul %4, %6, %cst {dimension_numbers = #tpu.dot_dimension_numbers<[1], [0], [0], [1], [0, 0, 1, 1], [], []>} : vector<8x128xbf16>, vector<128x128xbf16>, vector<8x128xf32> -> vector<8x128xf32>
    %c0_4 = arith.constant 0 : index
    %c0_5 = arith.constant 0 : index
    %c0_6 = arith.constant 0 : index
    %8 = vector.load %arg3[%c0_4, %c0_5, %c0_6] : memref<2x1x128xf32, #tpu.memory_space<vmem>>, vector<1x1x128xf32>
    %9 = vector.shape_cast %8 : vector<1x1x128xf32> to vector<1x128xf32>
    %10 = vector.broadcast %9 : vector<1x128xf32> to vector<8x128xf32>
    %11 = arith.addf %7, %10 : vector<8x128xf32>
    %12 = arith.addf %3, %11 : vector<8x128xf32>
    %c0_7 = arith.constant 0 : index
    %c0_8 = arith.constant 0 : index
    %c0_9 = arith.constant 0 : index
    %13 = vector.load %arg4[%c0_7, %c0_8, %c0_9] : memref<2x1x128xf32, #tpu.memory_space<vmem>>, vector<1x1x128xf32>
    %14 = vector.shape_cast %13 : vector<1x1x128xf32> to vector<1x128xf32>
    %c0_10 = arith.constant 0 : index
    %c0_11 = arith.constant 0 : index
    %c0_12 = arith.constant 0 : index
    %15 = vector.load %arg5[%c0_10, %c0_11, %c0_12] : memref<2x1x128xf32, #tpu.memory_space<vmem>>, vector<1x1x128xf32>
    %16 = vector.shape_cast %15 : vector<1x1x128xf32> to vector<1x128xf32>
    %cst_13 = arith.constant dense<0.000000e+00> : vector<8xf32>
    %17 = vector.multi_reduction <add>, %12, %cst_13 [1] : vector<8x128xf32> to vector<8xf32>
    %18 = vector.shape_cast %17 : vector<8xf32> to vector<8x1xf32>
    %cst_14 = arith.constant 9.600000e+01 : f32
    %19 = vector.broadcast %cst_14 : f32 to vector<8x1xf32>
    %20 = arith.divf %18, %19 : vector<8x1xf32>
    %21 = vector.broadcast %20 : vector<8x1xf32> to vector<8x128xf32>
    %22 = arith.subf %12, %21 : vector<8x128xf32>
    %cst_15 = arith.constant 0.000000e+00 : f32
    %23 = vector.shape_cast %2 : vector<1x128xi1> to vector<1x128xi1>
    %24 = vector.broadcast %23 : vector<1x128xi1> to vector<8x128xi1>
    %25 = vector.broadcast %cst_15 : f32 to vector<8x128xf32>
    %26 = arith.select %24, %22, %25 : vector<8x128xi1>, vector<8x128xf32>
    %27 = arith.mulf %26, %26 : vector<8x128xf32>
    %cst_16 = arith.constant dense<0.000000e+00> : vector<8xf32>
    %28 = vector.multi_reduction <add>, %27, %cst_16 [1] : vector<8x128xf32> to vector<8xf32>
    %29 = vector.shape_cast %28 : vector<8xf32> to vector<8x1xf32>
    %cst_17 = arith.constant 9.600000e+01 : f32
    %30 = vector.broadcast %cst_17 : f32 to vector<8x1xf32>
    %31 = arith.divf %29, %30 : vector<8x1xf32>
    %cst_18 = arith.constant 9.99999974E-6 : f32
    %32 = vector.broadcast %cst_18 : f32 to vector<8x1xf32>
    %33 = arith.addf %31, %32 : vector<8x1xf32>
    %34 = math.rsqrt %33 : vector<8x1xf32>
    %35 = vector.broadcast %34 : vector<8x1xf32> to vector<8x128xf32>
    %36 = arith.mulf %26, %35 : vector<8x128xf32>
    %37 = vector.broadcast %14 : vector<1x128xf32> to vector<8x128xf32>
    %38 = arith.mulf %36, %37 : vector<8x128xf32>
    %39 = vector.broadcast %16 : vector<1x128xf32> to vector<8x128xf32>
    %40 = arith.addf %38, %39 : vector<8x128xf32>
    %41 = arith.truncf %40 : vector<8x128xf32> to vector<8x128xbf16>
    %c0_19 = arith.constant 0 : index
    %c0_20 = arith.constant 0 : index
    %c0_21 = arith.constant 0 : index
    %42 = vector.load %arg6[%c0_19, %c0_20, %c0_21] : memref<2x128x2048xbf16, #tpu.memory_space<vmem>>, vector<1x128x1024xbf16>
    %43 = vector.shape_cast %42 : vector<1x128x1024xbf16> to vector<128x1024xbf16>
    %cst_22 = arith.constant dense<0.000000e+00> : vector<8x1024xf32>
    %44 = tpu.matmul %41, %43, %cst_22 {dimension_numbers = #tpu.dot_dimension_numbers<[1], [0], [0], [1], [0, 0, 1, 1], [], []>} : vector<8x128xbf16>, vector<128x1024xbf16>, vector<8x1024xf32> -> vector<8x1024xf32>
    %c0_23 = arith.constant 0 : index
    %c0_24 = arith.constant 0 : index
    %c0_25 = arith.constant 0 : index
    %45 = vector.load %arg7[%c0_23, %c0_24, %c0_25] : memref<2x1x2048xf32, #tpu.memory_space<vmem>>, vector<1x1x1024xf32>
    %46 = vector.shape_cast %45 : vector<1x1x1024xf32> to vector<1x1024xf32>
    %47 = vector.broadcast %46 : vector<1x1024xf32> to vector<8x1024xf32>
    %48 = arith.addf %44, %47 : vector<8x1024xf32>
    %cst_26 = arith.constant 0.000000e+00 : f32
    %49 = vector.broadcast %cst_26 : f32 to vector<8x1024xf32>
    %50 = arith.maximumf %48, %49 : vector<8x1024xf32>
    %51 = arith.truncf %50 : vector<8x1024xf32> to vector<8x1024xbf16>
    %c0_27 = arith.constant 0 : index
    %c0_28 = arith.constant 0 : index
    %c0_29 = arith.constant 0 : index
    %52 = vector.load %arg8[%c0_27, %c0_28, %c0_29] : memref<2x2048x128xbf16, #tpu.memory_space<vmem>>, vector<1x1024x128xbf16>
    %53 = vector.shape_cast %52 : vector<1x1024x128xbf16> to vector<1024x128xbf16>
    %cst_30 = arith.constant dense<0.000000e+00> : vector<8x128xf32>
    %54 = tpu.matmul %51, %53, %cst_30 {dimension_numbers = #tpu.dot_dimension_numbers<[1], [0], [0], [1], [0, 0, 1, 1], [], []>} : vector<8x1024xbf16>, vector<1024x128xbf16>, vector<8x128xf32> -> vector<8x128xf32>
    %c0_31 = arith.constant 0 : index
    %c0_32 = arith.constant 0 : index
    %c1024 = arith.constant 1024 : index
    %55 = vector.load %arg6[%c0_31, %c0_32, %c1024] : memref<2x128x2048xbf16, #tpu.memory_space<vmem>>, vector<1x128x1024xbf16>
    %56 = vector.shape_cast %55 : vector<1x128x1024xbf16> to vector<128x1024xbf16>
    %cst_33 = arith.constant dense<0.000000e+00> : vector<8x1024xf32>
    %57 = tpu.matmul %41, %56, %cst_33 {dimension_numbers = #tpu.dot_dimension_numbers<[1], [0], [0], [1], [0, 0, 1, 1], [], []>} : vector<8x128xbf16>, vector<128x1024xbf16>, vector<8x1024xf32> -> vector<8x1024xf32>
    %c0_34 = arith.constant 0 : index
    %c0_35 = arith.constant 0 : index
    %c1024_36 = arith.constant 1024 : index
    %58 = vector.load %arg7[%c0_34, %c0_35, %c1024_36] : memref<2x1x2048xf32, #tpu.memory_space<vmem>>, vector<1x1x1024xf32>
    %59 = vector.shape_cast %58 : vector<1x1x1024xf32> to vector<1x1024xf32>
    %60 = vector.broadcast %59 : vector<1x1024xf32> to vector<8x1024xf32>
    %61 = arith.addf %57, %60 : vector<8x1024xf32>
    %cst_37 = arith.constant 0.000000e+00 : f32
    %62 = vector.broadcast %cst_37 : f32 to vector<8x1024xf32>
    %63 = arith.maximumf %61, %62 : vector<8x1024xf32>
    %64 = arith.truncf %63 : vector<8x1024xf32> to vector<8x1024xbf16>
    %c0_38 = arith.constant 0 : index
    %c1024_39 = arith.constant 1024 : index
    %c0_40 = arith.constant 0 : index
    %65 = vector.load %arg8[%c0_38, %c1024_39, %c0_40] : memref<2x2048x128xbf16, #tpu.memory_space<vmem>>, vector<1x1024x128xbf16>
    %66 = vector.shape_cast %65 : vector<1x1024x128xbf16> to vector<1024x128xbf16>
    %cst_41 = arith.constant dense<0.000000e+00> : vector<8x128xf32>
    %67 = tpu.matmul %64, %66, %cst_41 {dimension_numbers = #tpu.dot_dimension_numbers<[1], [0], [0], [1], [0, 0, 1, 1], [], []>} : vector<8x1024xbf16>, vector<1024x128xbf16>, vector<8x128xf32> -> vector<8x128xf32>
    %68 = arith.addf %54, %67 : vector<8x128xf32>
    %c0_42 = arith.constant 0 : index
    %c0_43 = arith.constant 0 : index
    %c0_44 = arith.constant 0 : index
    %69 = vector.load %arg9[%c0_42, %c0_43, %c0_44] : memref<2x1x128xf32, #tpu.memory_space<vmem>>, vector<1x1x128xf32>
    %70 = vector.shape_cast %69 : vector<1x1x128xf32> to vector<1x128xf32>
    %71 = vector.broadcast %70 : vector<1x128xf32> to vector<8x128xf32>
    %72 = arith.addf %68, %71 : vector<8x128xf32>
    %73 = arith.addf %40, %72 : vector<8x128xf32>
    %c0_45 = arith.constant 0 : index
    %c0_46 = arith.constant 0 : index
    %c0_47 = arith.constant 0 : index
    %74 = vector.load %arg10[%c0_45, %c0_46, %c0_47] : memref<2x1x128xf32, #tpu.memory_space<vmem>>, vector<1x1x128xf32>
    %75 = vector.shape_cast %74 : vector<1x1x128xf32> to vector<1x128xf32>
    %c0_48 = arith.constant 0 : index
    %c0_49 = arith.constant 0 : index
    %c0_50 = arith.constant 0 : index
    %76 = vector.load %arg11[%c0_48, %c0_49, %c0_50] : memref<2x1x128xf32, #tpu.memory_space<vmem>>, vector<1x1x128xf32>
    %77 = vector.shape_cast %76 : vector<1x1x128xf32> to vector<1x128xf32>
    %cst_51 = arith.constant dense<0.000000e+00> : vector<8xf32>
    %78 = vector.multi_reduction <add>, %73, %cst_51 [1] : vector<8x128xf32> to vector<8xf32>
    %79 = vector.shape_cast %78 : vector<8xf32> to vector<8x1xf32>
    %cst_52 = arith.constant 9.600000e+01 : f32
    %80 = vector.broadcast %cst_52 : f32 to vector<8x1xf32>
    %81 = arith.divf %79, %80 : vector<8x1xf32>
    %82 = vector.broadcast %81 : vector<8x1xf32> to vector<8x128xf32>
    %83 = arith.subf %73, %82 : vector<8x128xf32>
    %cst_53 = arith.constant 0.000000e+00 : f32
    %84 = vector.shape_cast %2 : vector<1x128xi1> to vector<1x128xi1>
    %85 = vector.broadcast %84 : vector<1x128xi1> to vector<8x128xi1>
    %86 = vector.broadcast %cst_53 : f32 to vector<8x128xf32>
    %87 = arith.select %85, %83, %86 : vector<8x128xi1>, vector<8x128xf32>
    %88 = arith.mulf %87, %87 : vector<8x128xf32>
    %cst_54 = arith.constant dense<0.000000e+00> : vector<8xf32>
    %89 = vector.multi_reduction <add>, %88, %cst_54 [1] : vector<8x128xf32> to vector<8xf32>
    %90 = vector.shape_cast %89 : vector<8xf32> to vector<8x1xf32>
    %cst_55 = arith.constant 9.600000e+01 : f32
    %91 = vector.broadcast %cst_55 : f32 to vector<8x1xf32>
    %92 = arith.divf %90, %91 : vector<8x1xf32>
    %cst_56 = arith.constant 9.99999974E-6 : f32
    %93 = vector.broadcast %cst_56 : f32 to vector<8x1xf32>
    %94 = arith.addf %92, %93 : vector<8x1xf32>
    %95 = math.rsqrt %94 : vector<8x1xf32>
    %96 = vector.broadcast %95 : vector<8x1xf32> to vector<8x128xf32>
    %97 = arith.mulf %87, %96 : vector<8x128xf32>
    %98 = vector.broadcast %75 : vector<1x128xf32> to vector<8x128xf32>
    %99 = arith.mulf %97, %98 : vector<8x128xf32>
    %100 = vector.broadcast %77 : vector<1x128xf32> to vector<8x128xf32>
    %101 = arith.addf %99, %100 : vector<8x128xf32>
    %102 = arith.truncf %101 : vector<8x128xf32> to vector<8x128xbf16>
    %c1 = arith.constant 1 : index
    %c0_57 = arith.constant 0 : index
    %c0_58 = arith.constant 0 : index
    %103 = vector.load %arg2[%c1, %c0_57, %c0_58] : memref<2x128x128xbf16, #tpu.memory_space<vmem>>, vector<1x128x128xbf16>
    %104 = vector.shape_cast %103 : vector<1x128x128xbf16> to vector<128x128xbf16>
    %cst_59 = arith.constant dense<0.000000e+00> : vector<8x128xf32>
    %105 = tpu.matmul %102, %104, %cst_59 {dimension_numbers = #tpu.dot_dimension_numbers<[1], [0], [0], [1], [0, 0, 1, 1], [], []>} : vector<8x128xbf16>, vector<128x128xbf16>, vector<8x128xf32> -> vector<8x128xf32>
    %c1_60 = arith.constant 1 : index
    %c0_61 = arith.constant 0 : index
    %c0_62 = arith.constant 0 : index
    %106 = vector.load %arg3[%c1_60, %c0_61, %c0_62] : memref<2x1x128xf32, #tpu.memory_space<vmem>>, vector<1x1x128xf32>
    %107 = vector.shape_cast %106 : vector<1x1x128xf32> to vector<1x128xf32>
    %108 = vector.broadcast %107 : vector<1x128xf32> to vector<8x128xf32>
    %109 = arith.addf %105, %108 : vector<8x128xf32>
    %110 = arith.addf %101, %109 : vector<8x128xf32>
    %c1_63 = arith.constant 1 : index
    %c0_64 = arith.constant 0 : index
    %c0_65 = arith.constant 0 : index
    %111 = vector.load %arg4[%c1_63, %c0_64, %c0_65] : memref<2x1x128xf32, #tpu.memory_space<vmem>>, vector<1x1x128xf32>
    %112 = vector.shape_cast %111 : vector<1x1x128xf32> to vector<1x128xf32>
    %c1_66 = arith.constant 1 : index
    %c0_67 = arith.constant 0 : index
    %c0_68 = arith.constant 0 : index
    %113 = vector.load %arg5[%c1_66, %c0_67, %c0_68] : memref<2x1x128xf32, #tpu.memory_space<vmem>>, vector<1x1x128xf32>
    %114 = vector.shape_cast %113 : vector<1x1x128xf32> to vector<1x128xf32>
    %cst_69 = arith.constant dense<0.000000e+00> : vector<8xf32>
    %115 = vector.multi_reduction <add>, %110, %cst_69 [1] : vector<8x128xf32> to vector<8xf32>
    %116 = vector.shape_cast %115 : vector<8xf32> to vector<8x1xf32>
    %cst_70 = arith.constant 9.600000e+01 : f32
    %117 = vector.broadcast %cst_70 : f32 to vector<8x1xf32>
    %118 = arith.divf %116, %117 : vector<8x1xf32>
    %119 = vector.broadcast %118 : vector<8x1xf32> to vector<8x128xf32>
    %120 = arith.subf %110, %119 : vector<8x128xf32>
    %cst_71 = arith.constant 0.000000e+00 : f32
    %121 = vector.shape_cast %2 : vector<1x128xi1> to vector<1x128xi1>
    %122 = vector.broadcast %121 : vector<1x128xi1> to vector<8x128xi1>
    %123 = vector.broadcast %cst_71 : f32 to vector<8x128xf32>
    %124 = arith.select %122, %120, %123 : vector<8x128xi1>, vector<8x128xf32>
    %125 = arith.mulf %124, %124 : vector<8x128xf32>
    %cst_72 = arith.constant dense<0.000000e+00> : vector<8xf32>
    %126 = vector.multi_reduction <add>, %125, %cst_72 [1] : vector<8x128xf32> to vector<8xf32>
    %127 = vector.shape_cast %126 : vector<8xf32> to vector<8x1xf32>
    %cst_73 = arith.constant 9.600000e+01 : f32
    %128 = vector.broadcast %cst_73 : f32 to vector<8x1xf32>
    %129 = arith.divf %127, %128 : vector<8x1xf32>
    %cst_74 = arith.constant 9.99999974E-6 : f32
    %130 = vector.broadcast %cst_74 : f32 to vector<8x1xf32>
    %131 = arith.addf %129, %130 : vector<8x1xf32>
    %132 = math.rsqrt %131 : vector<8x1xf32>
    %133 = vector.broadcast %132 : vector<8x1xf32> to vector<8x128xf32>
    %134 = arith.mulf %124, %133 : vector<8x128xf32>
    %135 = vector.broadcast %112 : vector<1x128xf32> to vector<8x128xf32>
    %136 = arith.mulf %134, %135 : vector<8x128xf32>
    %137 = vector.broadcast %114 : vector<1x128xf32> to vector<8x128xf32>
    %138 = arith.addf %136, %137 : vector<8x128xf32>
    %139 = arith.truncf %138 : vector<8x128xf32> to vector<8x128xbf16>
    %c1_75 = arith.constant 1 : index
    %c0_76 = arith.constant 0 : index
    %c0_77 = arith.constant 0 : index
    %140 = vector.load %arg6[%c1_75, %c0_76, %c0_77] : memref<2x128x2048xbf16, #tpu.memory_space<vmem>>, vector<1x128x1024xbf16>
    %141 = vector.shape_cast %140 : vector<1x128x1024xbf16> to vector<128x1024xbf16>
    %cst_78 = arith.constant dense<0.000000e+00> : vector<8x1024xf32>
    %142 = tpu.matmul %139, %141, %cst_78 {dimension_numbers = #tpu.dot_dimension_numbers<[1], [0], [0], [1], [0, 0, 1, 1], [], []>} : vector<8x128xbf16>, vector<128x1024xbf16>, vector<8x1024xf32> -> vector<8x1024xf32>
    %c1_79 = arith.constant 1 : index
    %c0_80 = arith.constant 0 : index
    %c0_81 = arith.constant 0 : index
    %143 = vector.load %arg7[%c1_79, %c0_80, %c0_81] : memref<2x1x2048xf32, #tpu.memory_space<vmem>>, vector<1x1x1024xf32>
    %144 = vector.shape_cast %143 : vector<1x1x1024xf32> to vector<1x1024xf32>
    %145 = vector.broadcast %144 : vector<1x1024xf32> to vector<8x1024xf32>
    %146 = arith.addf %142, %145 : vector<8x1024xf32>
    %cst_82 = arith.constant 0.000000e+00 : f32
    %147 = vector.broadcast %cst_82 : f32 to vector<8x1024xf32>
    %148 = arith.maximumf %146, %147 : vector<8x1024xf32>
    %149 = arith.truncf %148 : vector<8x1024xf32> to vector<8x1024xbf16>
    %c1_83 = arith.constant 1 : index
    %c0_84 = arith.constant 0 : index
    %c0_85 = arith.constant 0 : index
    %150 = vector.load %arg8[%c1_83, %c0_84, %c0_85] : memref<2x2048x128xbf16, #tpu.memory_space<vmem>>, vector<1x1024x128xbf16>
    %151 = vector.shape_cast %150 : vector<1x1024x128xbf16> to vector<1024x128xbf16>
    %cst_86 = arith.constant dense<0.000000e+00> : vector<8x128xf32>
    %152 = tpu.matmul %149, %151, %cst_86 {dimension_numbers = #tpu.dot_dimension_numbers<[1], [0], [0], [1], [0, 0, 1, 1], [], []>} : vector<8x1024xbf16>, vector<1024x128xbf16>, vector<8x128xf32> -> vector<8x128xf32>
    %c1_87 = arith.constant 1 : index
    %c0_88 = arith.constant 0 : index
    %c1024_89 = arith.constant 1024 : index
    %153 = vector.load %arg6[%c1_87, %c0_88, %c1024_89] : memref<2x128x2048xbf16, #tpu.memory_space<vmem>>, vector<1x128x1024xbf16>
    %154 = vector.shape_cast %153 : vector<1x128x1024xbf16> to vector<128x1024xbf16>
    %cst_90 = arith.constant dense<0.000000e+00> : vector<8x1024xf32>
    %155 = tpu.matmul %139, %154, %cst_90 {dimension_numbers = #tpu.dot_dimension_numbers<[1], [0], [0], [1], [0, 0, 1, 1], [], []>} : vector<8x128xbf16>, vector<128x1024xbf16>, vector<8x1024xf32> -> vector<8x1024xf32>
    %c1_91 = arith.constant 1 : index
    %c0_92 = arith.constant 0 : index
    %c1024_93 = arith.constant 1024 : index
    %156 = vector.load %arg7[%c1_91, %c0_92, %c1024_93] : memref<2x1x2048xf32, #tpu.memory_space<vmem>>, vector<1x1x1024xf32>
    %157 = vector.shape_cast %156 : vector<1x1x1024xf32> to vector<1x1024xf32>
    %158 = vector.broadcast %157 : vector<1x1024xf32> to vector<8x1024xf32>
    %159 = arith.addf %155, %158 : vector<8x1024xf32>
    %cst_94 = arith.constant 0.000000e+00 : f32
    %160 = vector.broadcast %cst_94 : f32 to vector<8x1024xf32>
    %161 = arith.maximumf %159, %160 : vector<8x1024xf32>
    %162 = arith.truncf %161 : vector<8x1024xf32> to vector<8x1024xbf16>
    %c1_95 = arith.constant 1 : index
    %c1024_96 = arith.constant 1024 : index
    %c0_97 = arith.constant 0 : index
    %163 = vector.load %arg8[%c1_95, %c1024_96, %c0_97] : memref<2x2048x128xbf16, #tpu.memory_space<vmem>>, vector<1x1024x128xbf16>
    %164 = vector.shape_cast %163 : vector<1x1024x128xbf16> to vector<1024x128xbf16>
    %cst_98 = arith.constant dense<0.000000e+00> : vector<8x128xf32>
    %165 = tpu.matmul %162, %164, %cst_98 {dimension_numbers = #tpu.dot_dimension_numbers<[1], [0], [0], [1], [0, 0, 1, 1], [], []>} : vector<8x1024xbf16>, vector<1024x128xbf16>, vector<8x128xf32> -> vector<8x128xf32>
    %166 = arith.addf %152, %165 : vector<8x128xf32>
    %c1_99 = arith.constant 1 : index
    %c0_100 = arith.constant 0 : index
    %c0_101 = arith.constant 0 : index
    %167 = vector.load %arg9[%c1_99, %c0_100, %c0_101] : memref<2x1x128xf32, #tpu.memory_space<vmem>>, vector<1x1x128xf32>
    %168 = vector.shape_cast %167 : vector<1x1x128xf32> to vector<1x128xf32>
    %169 = vector.broadcast %168 : vector<1x128xf32> to vector<8x128xf32>
    %170 = arith.addf %166, %169 : vector<8x128xf32>
    %171 = arith.addf %138, %170 : vector<8x128xf32>
    %c1_102 = arith.constant 1 : index
    %c0_103 = arith.constant 0 : index
    %c0_104 = arith.constant 0 : index
    %172 = vector.load %arg10[%c1_102, %c0_103, %c0_104] : memref<2x1x128xf32, #tpu.memory_space<vmem>>, vector<1x1x128xf32>
    %173 = vector.shape_cast %172 : vector<1x1x128xf32> to vector<1x128xf32>
    %c1_105 = arith.constant 1 : index
    %c0_106 = arith.constant 0 : index
    %c0_107 = arith.constant 0 : index
    %174 = vector.load %arg11[%c1_105, %c0_106, %c0_107] : memref<2x1x128xf32, #tpu.memory_space<vmem>>, vector<1x1x128xf32>
    %175 = vector.shape_cast %174 : vector<1x1x128xf32> to vector<1x128xf32>
    %cst_108 = arith.constant dense<0.000000e+00> : vector<8xf32>
    %176 = vector.multi_reduction <add>, %171, %cst_108 [1] : vector<8x128xf32> to vector<8xf32>
    %177 = vector.shape_cast %176 : vector<8xf32> to vector<8x1xf32>
    %cst_109 = arith.constant 9.600000e+01 : f32
    %178 = vector.broadcast %cst_109 : f32 to vector<8x1xf32>
    %179 = arith.divf %177, %178 : vector<8x1xf32>
    %180 = vector.broadcast %179 : vector<8x1xf32> to vector<8x128xf32>
    %181 = arith.subf %171, %180 : vector<8x128xf32>
    %cst_110 = arith.constant 0.000000e+00 : f32
    %182 = vector.shape_cast %2 : vector<1x128xi1> to vector<1x128xi1>
    %183 = vector.broadcast %182 : vector<1x128xi1> to vector<8x128xi1>
    %184 = vector.broadcast %cst_110 : f32 to vector<8x128xf32>
    %185 = arith.select %183, %181, %184 : vector<8x128xi1>, vector<8x128xf32>
    %186 = arith.mulf %185, %185 : vector<8x128xf32>
    %cst_111 = arith.constant dense<0.000000e+00> : vector<8xf32>
    %187 = vector.multi_reduction <add>, %186, %cst_111 [1] : vector<8x128xf32> to vector<8xf32>
    %188 = vector.shape_cast %187 : vector<8xf32> to vector<8x1xf32>
    %cst_112 = arith.constant 9.600000e+01 : f32
    %189 = vector.broadcast %cst_112 : f32 to vector<8x1xf32>
    %190 = arith.divf %188, %189 : vector<8x1xf32>
    %cst_113 = arith.constant 9.99999974E-6 : f32
    %191 = vector.broadcast %cst_113 : f32 to vector<8x1xf32>
    %192 = arith.addf %190, %191 : vector<8x1xf32>
    %193 = math.rsqrt %192 : vector<8x1xf32>
    %194 = vector.broadcast %193 : vector<8x1xf32> to vector<8x128xf32>
    %195 = arith.mulf %185, %194 : vector<8x128xf32>
    %196 = vector.broadcast %173 : vector<1x128xf32> to vector<8x128xf32>
    %197 = arith.mulf %195, %196 : vector<8x128xf32>
    %198 = vector.broadcast %175 : vector<1x128xf32> to vector<8x128xf32>
    %199 = arith.addf %197, %198 : vector<8x128xf32>
    %200 = arith.truncf %199 : vector<8x128xf32> to vector<8x128xbf16>
    %c0_114 = arith.constant 0 : index
    %c0_115 = arith.constant 0 : index
    %201 = vector.load %arg12[%c0_114, %c0_115] : memref<128x64xbf16, #tpu.memory_space<vmem>>, vector<128x64xbf16>
    %cst_116 = arith.constant dense<0.000000e+00> : vector<8x64xf32>
    %202 = tpu.matmul %200, %201, %cst_116 {dimension_numbers = #tpu.dot_dimension_numbers<[1], [0], [0], [1], [0, 0, 1, 1], [], []>} : vector<8x128xbf16>, vector<128x64xbf16>, vector<8x64xf32> -> vector<8x64xf32>
    %c0_117 = arith.constant 0 : index
    %c0_118 = arith.constant 0 : index
    %203 = vector.load %arg13[%c0_117, %c0_118] : memref<1x64xf32, #tpu.memory_space<vmem>>, vector<1x64xf32>
    %204 = vector.broadcast %203 : vector<1x64xf32> to vector<8x64xf32>
    %205 = arith.addf %202, %204 : vector<8x64xf32>
    %cst_119 = arith.constant 0.000000e+00 : f32
    %206 = vector.broadcast %cst_119 : f32 to vector<8x64xf32>
    %207 = arith.maximumf %205, %206 : vector<8x64xf32>
    %c0_120 = arith.constant 0 : index
    %c0_121 = arith.constant 0 : index
    %208 = vector.load %arg14[%c0_120, %c0_121] : memref<1x64xf32, #tpu.memory_space<vmem>>, vector<1x64xf32>
    %209 = vector.broadcast %208 : vector<1x64xf32> to vector<8x64xf32>
    %210 = arith.mulf %207, %209 : vector<8x64xf32>
    %cst_122 = arith.constant dense<0.000000e+00> : vector<8xf32>
    %211 = vector.multi_reduction <add>, %210, %cst_122 [1] : vector<8x64xf32> to vector<8xf32>
    %212 = vector.shape_cast %211 : vector<8xf32> to vector<8x1xf32>
    %c0_123 = arith.constant 0 : index
    %c0_124 = arith.constant 0 : index
    %213 = vector.load %arg15[%c0_123, %c0_124] : memref<1x1xf32, #tpu.memory_space<vmem>>, vector<1x1xf32>
    %214 = vector.broadcast %213 : vector<1x1xf32> to vector<8x1xf32>
    %215 = arith.addf %212, %214 : vector<8x1xf32>
    %cst_125 = arith.constant 0.000000e+00 : f32
    %216 = vector.broadcast %cst_125 : f32 to vector<8x1xf32>
    %217 = arith.subf %216, %215 : vector<8x1xf32>
    %218 = math.exp %217 : vector<8x1xf32>
    %cst_126 = arith.constant 1.000000e+00 : f32
    %219 = vector.broadcast %cst_126 : f32 to vector<8x1xf32>
    %220 = arith.addf %219, %218 : vector<8x1xf32>
    %cst_127 = arith.constant 1.000000e+00 : f32
    %221 = vector.broadcast %cst_127 : f32 to vector<8x1xf32>
    %222 = arith.divf %221, %220 : vector<8x1xf32>
    %c0_128 = arith.constant 0 : index
    %c0_129 = arith.constant 0 : index
    %223 = vector.load %arg16[%c0_128, %c0_129] : memref<8x1xf32, #tpu.memory_space<vmem>>, vector<8x1xf32>
    tpu.vector_store %arg16[%c0_128, %c0_129], %222 {strides = array<i32>} : memref<8x1xf32, #tpu.memory_space<vmem>>, vector<8x1xf32>,
    return
  }
  func.func @transform_0(%arg0: i32) -> (i32, i32) {
    %c0_i32 = arith.constant 0 : i32
    %c0_i32_0 = arith.constant 0 : i32
    return %arg0, %c0_i32 : i32, i32
  }
  func.func @transform_1(%arg0: i32) -> (i32, i32, i32) {
    %c0_i32 = arith.constant 0 : i32
    %c0_i32_0 = arith.constant 0 : i32
    %c0_i32_1 = arith.constant 0 : i32
    %c0_i32_2 = arith.constant 0 : i32
    return %c0_i32, %c0_i32_0, %c0_i32_1 : i32, i32, i32
  }
  func.func @transform_2(%arg0: i32) -> (i32, i32, i32) {
    %c0_i32 = arith.constant 0 : i32
    %c0_i32_0 = arith.constant 0 : i32
    %c0_i32_1 = arith.constant 0 : i32
    %c0_i32_2 = arith.constant 0 : i32
    return %c0_i32, %c0_i32_0, %c0_i32_1 : i32, i32, i32
  }
  func.func @transform_3(%arg0: i32) -> (i32, i32, i32) {
    %c0_i32 = arith.constant 0 : i32
    %c0_i32_0 = arith.constant 0 : i32
    %c0_i32_1 = arith.constant 0 : i32
    %c0_i32_2 = arith.constant 0 : i32
    return %c0_i32, %c0_i32_0, %c0_i32_1 : i32, i32, i32
  }
  func.func @transform_4(%arg0: i32) -> (i32, i32, i32) {
    %c0_i32 = arith.constant 0 : i32
    %c0_i32_0 = arith.constant 0 : i32
    %c0_i32_1 = arith.constant 0 : i32
    %c0_i32_2 = arith.constant 0 : i32
    return %c0_i32, %c0_i32_0, %c0_i32_1 : i32, i32, i32
  }
  func.func @transform_5(%arg0: i32) -> (i32, i32, i32) {
    %c0_i32 = arith.constant 0 : i32
    %c0_i32_0 = arith.constant 0 : i32
    %c0_i32_1 = arith.constant 0 : i32
    %c0_i32_2 = arith.constant 0 : i32
    return %c0_i32, %c0_i32_0, %c0_i32_1 : i32, i32, i32
  }
  func.func @transform_6(%arg0: i32) -> (i32, i32, i32) {
    %c0_i32 = arith.constant 0 : i32
    %c0_i32_0 = arith.constant 0 : i32
    %c0_i32_1 = arith.constant 0 : i32
    %c0_i32_2 = arith.constant 0 : i32
    return %c0_i32, %c0_i32_0, %c0_i32_1 : i32, i32, i32
  }
  func.func @transform_7(%arg0: i32) -> (i32, i32, i32) {
    %c0_i32 = arith.constant 0 : i32
    %c0_i32_0 = arith.constant 0 : i32
    %c0_i32_1 = arith.constant 0 : i32
    %c0_i32_2 = arith.constant 0 : i32
    return %c0_i32, %c0_i32_0, %c0_i32_1 : i32, i32, i32
  }
  func.func @transform_8(%arg0: i32) -> (i32, i32, i32) {
    %c0_i32 = arith.constant 0 : i32
    %c0_i32_0 = arith.constant 0 : i32
    %c0_i32_1 = arith.constant 0 : i32
    %c0_i32_2 = arith.constant 0 : i32
    return %c0_i32, %c0_i32_0, %c0_i32_1 : i32, i32, i32
  }
  func.func @transform_9(%arg0: i32) -> (i32, i32, i32) {
    %c0_i32 = arith.constant 0 : i32
    %c0_i32_0 = arith.constant 0 : i32
    %c0_i32_1 = arith.constant 0 : i32
    %c0_i32_2 = arith.constant 0 : i32
    return %c0_i32, %c0_i32_0, %c0_i32_1 : i32, i32, i32
  }
  func.func @transform_10(%arg0: i32) -> (i32, i32, i32) {
    %c0_i32 = arith.constant 0 : i32
    %c0_i32_0 = arith.constant 0 : i32
    %c0_i32_1 = arith.constant 0 : i32
    %c0_i32_2 = arith.constant 0 : i32
    return %c0_i32, %c0_i32_0, %c0_i32_1 : i32, i32, i32
  }
  func.func @transform_11(%arg0: i32) -> (i32, i32) {
    %c0_i32 = arith.constant 0 : i32
    %c0_i32_0 = arith.constant 0 : i32
    %c0_i32_1 = arith.constant 0 : i32
    return %c0_i32, %c0_i32_0 : i32, i32
  }
  func.func @transform_12(%arg0: i32) -> (i32, i32) {
    %c0_i32 = arith.constant 0 : i32
    %c0_i32_0 = arith.constant 0 : i32
    %c0_i32_1 = arith.constant 0 : i32
    return %c0_i32, %c0_i32_0 : i32, i32
  }
  func.func @transform_13(%arg0: i32) -> (i32, i32) {
    %c0_i32 = arith.constant 0 : i32
    %c0_i32_0 = arith.constant 0 : i32
    %c0_i32_1 = arith.constant 0 : i32
    return %c0_i32, %c0_i32_0 : i32, i32
  }
  func.func @transform_14(%arg0: i32) -> (i32, i32) {
    %c0_i32 = arith.constant 0 : i32
    %c0_i32_0 = arith.constant 0 : i32
    %c0_i32_1 = arith.constant 0 : i32
    return %c0_i32, %c0_i32_0 : i32, i32
  }
  func.func @transform_15(%arg0: i32) -> (i32, i32) {
    %c0_i32 = arith.constant 0 : i32
    %c0_i32_0 = arith.constant 0 : i32
    return %arg0, %c0_i32 : i32, i32
  }
}

</mosaic_0001>

<llo_original>
// kernel: transformer_classifier_forward.1
$region0: #{transformer_classifier_forward.1}
  #allocation0 [shape = 'u32[]', space=smem, size = 0x4, offset = 0x4, fixed_abs, tag = 'smem constant byte address 0x4 - core index']
  #allocation1 [shape = 'u32[144,128]{1,0:T(1,128)}', space=vmem, size = 0x12000, scoped, tag = 'internal scratch']
  #allocation2 [shape = 'f32[1,1]{1,0:T(1,128)S(1)}', space=vmem, size = 0x200, scoped, tag = 'scoped memory for transformer_classifier_forward.1']
  %s0 = inlined_call_operand.vmem [shape: f32[8,128], index: 0, kind: input, shape index: {}]
  %s1 = inlined_call_operand.vmem [shape: bf16[2,128,128], index: 1, kind: input, shape index: {}]
  %s2 = inlined_call_operand.vmem [shape: f32[2,1,128], index: 2, kind: input, shape index: {}]
  %s3 = inlined_call_operand.vmem [shape: f32[2,1,128], index: 3, kind: input, shape index: {}]
  %s4 = inlined_call_operand.vmem [shape: f32[2,1,128], index: 4, kind: input, shape index: {}]
  %s5 = inlined_call_operand.hbm [shape: bf16[2,128,2048], index: 5, kind: input, shape index: {}]
  %s6 = inlined_call_operand.vmem [shape: f32[2,1,2048], index: 6, kind: input, shape index: {}]
  %s7 = inlined_call_operand.hbm [shape: bf16[2,2048,128], index: 7, kind: input, shape index: {}]
  %s8 = inlined_call_operand.vmem [shape: f32[2,1,128], index: 8, kind: input, shape index: {}]
  %s9 = inlined_call_operand.vmem [shape: f32[2,1,128], index: 9, kind: input, shape index: {}]
  %s10 = inlined_call_operand.vmem [shape: f32[2,1,128], index: 10, kind: input, shape index: {}]
  %s11 = inlined_call_operand.vmem [shape: bf16[128,64], index: 11, kind: input, shape index: {}]
  %s12 = inlined_call_operand.vmem [shape: f32[1,64], index: 12, kind: input, shape index: {}]
  %s13 = inlined_call_operand.vmem [shape: f32[1,64], index: 13, kind: input, shape index: {}]
  %s14 = inlined_call_operand.<no memory space> [shape: f32[1,1], index: 14, kind: input, shape index: {}]
  %s15 = inlined_call_operand.vmem [shape: f32[8,1], index: 15, kind: output, shape index: {}]
  %s16 = sld [smem:[#allocation0]]
  $region78: #{transformer_classifier_forward.1} parent=0
    _
  %s18 = ssub.s32 1, %s16
  %s19 = scalar_select 0, %s18, %s16
  %v20 = vstv %s14
  %21 = vst [vmem:[#allocation2] sm:$0x1] %v20
  $region1: #{transformer_classifier_forward.1} parent=0
    #allocation3 [shape = 'u8[1048576]{0}', space=vmem, size = 0x100000, scoped, tag = 'input window, operand 5, single buffered']
    #allocation4 [shape = 's32[1]{0}', space=sflag, size = 0x4, scoped, tag = 'scoped memory for transformer_classifier_forward.1']
    #allocation5 [shape = 'u8[1048576]{0}', space=vmem, size = 0x100000, scoped, tag = 'input window, operand 7, single buffered']
    #allocation6 [shape = 's32[1]{0}', space=sflag, size = 0x4, scoped, tag = 'scoped memory for transformer_classifier_forward.1']
    %22 = vsyncpa [#allocation4], 0
    %23 = vsyncpa [#allocation6], 0
    // Predicated region
    $region2: #{transformer_classifier_forward.1} parent=1 // pred_check
      _
    $region3: #{transformer_classifier_forward.1} parent=1 // pred_check_branch
      %25 = sbr.rel (0) target = $region5
    $region4: #{transformer_classifier_forward.1} parent=1 // pred_region
      _
    $region5: #{transformer_classifier_forward.1} parent=1 // pred_fallthru
      _
    // Predicated region
    $region6: #{transformer_classifier_forward.1} parent=1 // pred_check
      _
    $region7: #{transformer_classifier_forward.1} parent=1 // pred_check_branch
      %27 = sbr.rel (0) target = $region9
    $region8: #{transformer_classifier_forward.1} parent=1 // pred_region
      _
    $region9: #{transformer_classifier_forward.1} parent=1 // pred_fallthru
      _
    // Predicated region
    $region10: #{transformer_classifier_forward.1} parent=1 // pred_check
      _
    $region11: #{transformer_classifier_forward.1} parent=1 // pred_check_branch
      %29 = sbr.rel (0) target = $region13
    $region12: #{transformer_classifier_forward.1} parent=1 // pred_region
      _
    $region13: #{transformer_classifier_forward.1} parent=1 // pred_fallthru
      _
    // Predicated region
    $region14: #{transformer_classifier_forward.1} parent=1 // pred_check
      _
    $region15: #{transformer_classifier_forward.1} parent=1 // pred_check_branch
      %31 = sbr.rel (0) target = $region17
    $region16: #{transformer_classifier_forward.1} parent=1 // pred_region
      _
    $region17: #{transformer_classifier_forward.1} parent=1 // pred_fallthru
      _
    // Predicated region
    $region18: #{transformer_classifier_forward.1} parent=1 // pred_check
      _
    $region19: #{transformer_classifier_forward.1} parent=1 // pred_check_branch
      %33 = sbr.rel (0) target = $region21
    $region20: #{transformer_classifier_forward.1} parent=1 // pred_region
      _
    $region21: #{transformer_classifier_forward.1} parent=1 // pred_fallthru
      _
    // Predicated region
    $region22: #{transformer_classifier_forward.1} parent=1 // pred_check
      _
    $region23: #{transformer_classifier_forward.1} parent=1 // pred_check_branch
      %35 = sbr.rel (0) target = $region25
    $region24: #{transformer_classifier_forward.1} parent=1 // pred_region
      %s37 = ssub.s32 32768, 32768
      %38 = vsyncadd [#allocation4], %s37
      %s39 = sshll.u32 [#allocation3], 4
      %s40 = int_to_ptr.vmem [resolvable:$true] %s39
      %45 = dma.hbm_to_vmem [thread:$0]  %s5, 32768, %s40, [#allocation4], 1024, 1024, 64
    $region25: #{transformer_classifier_forward.1} parent=1 // pred_fallthru
      _
    // Predicated region
    $region26: #{transformer_classifier_forward.1} parent=1 // pred_check
      _
    $region27: #{transformer_classifier_forward.1} parent=1 // pred_check_branch
      %47 = sbr.rel (0) target = $region29
    $region28: #{transformer_classifier_forward.1} parent=1 // pred_region
      _
    $region29: #{transformer_classifier_forward.1} parent=1 // pred_fallthru
      _
    // Predicated region
    $region30: #{transformer_classifier_forward.1} parent=1 // pred_check
      _
    $region31: #{transformer_classifier_forward.1} parent=1 // pred_check_branch
      %49 = sbr.rel (0) target = $region33
    $region32: #{transformer_classifier_forward.1} parent=1 // pred_region
      %s51 = ssub.s32 32768, 32768
      %52 = vsyncadd [#allocation6], %s51
      %s53 = sshll.u32 [#allocation5], 4
      %s54 = int_to_ptr.vmem [resolvable:$true] %s53
      %59 = dma.hbm_to_vmem [thread:$0]  %s7, 32768, %s54, [#allocation6], 64, 64, 4
    $region33: #{transformer_classifier_forward.1} parent=1 // pred_fallthru
      _
    // Predicated region
    $region34: #{transformer_classifier_forward.1} parent=1 // pred_check
      _
    $region35: #{transformer_classifier_forward.1} parent=1 // pred_check_branch
      %61 = sbr.rel (0) target = $region37
    $region36: #{transformer_classifier_forward.1} parent=1 // pred_region
      _
    $region37: #{transformer_classifier_forward.1} parent=1 // pred_fallthru
      _
    // Predicated region
    $region38: #{transformer_classifier_forward.1} parent=1 // pred_check
      _
    $region39: #{transformer_classifier_forward.1} parent=1 // pred_check_branch
      %63 = sbr.rel (0) target = $region41
    $region40: #{transformer_classifier_forward.1} parent=1 // pred_region
      _
    $region41: #{transformer_classifier_forward.1} parent=1 // pred_fallthru
      _
    // Predicated region
    $region42: #{transformer_classifier_forward.1} parent=1 // pred_check
      _
    $region43: #{transformer_classifier_forward.1} parent=1 // pred_check_branch
      %65 = sbr.rel (0) target = $region45
    $region44: #{transformer_classifier_forward.1} parent=1 // pred_region
      _
    $region45: #{transformer_classifier_forward.1} parent=1 // pred_fallthru
      _
    // Predicated region
    $region46: #{transformer_classifier_forward.1} parent=1 // pred_check
      _
    $region47: #{transformer_classifier_forward.1} parent=1 // pred_check_branch
      %67 = sbr.rel (0) target = $region49
    $region48: #{transformer_classifier_forward.1} parent=1 // pred_region
      _
    $region49: #{transformer_classifier_forward.1} parent=1 // pred_fallthru
      _
    // Predicated region
    $region50: #{transformer_classifier_forward.1} parent=1 // pred_check
      _
    $region51: #{transformer_classifier_forward.1} parent=1 // pred_check_branch
      %69 = sbr.rel (0) target = $region53
    $region52: #{transformer_classifier_forward.1} parent=1 // pred_region
      _
    $region53: #{transformer_classifier_forward.1} parent=1 // pred_fallthru
      _
    // Predicated region
    $region54: #{transformer_classifier_forward.1} parent=1 // pred_check
      _
    $region55: #{transformer_classifier_forward.1} parent=1 // pred_check_branch
      %71 = sbr.rel (0) target = $region57
    $region56: #{transformer_classifier_forward.1} parent=1 // pred_region
      _
    $region57: #{transformer_classifier_forward.1} parent=1 // pred_fallthru
      _
    // Predicated region
    $region58: #{transformer_classifier_forward.1} parent=1 // pred_check
      _
    $region59: #{transformer_classifier_forward.1} parent=1 // pred_check_branch
      %73 = sbr.rel (0) target = $region61
    $region60: #{transformer_classifier_forward.1} parent=1 // pred_region
      _
    $region61: #{transformer_classifier_forward.1} parent=1 // pred_fallthru
      _
    // Predicated region
    $region62: #{transformer_classifier_forward.1} parent=1 // pred_check
      _
    $region63: #{transformer_classifier_forward.1} parent=1 // pred_check_branch
      %75 = sbr.rel (0) target = $region65
    $region64: #{transformer_classifier_forward.1} parent=1 // pred_region
      %76 = dma.done [#allocation4], 32768
    $region65: #{transformer_classifier_forward.1} parent=1 // pred_fallthru
      _
    // Predicated region
    $region66: #{transformer_classifier_forward.1} parent=1 // pred_check
      _
    $region67: #{transformer_classifier_forward.1} parent=1 // pred_check_branch
      %78 = sbr.rel (0) target = $region69
    $region68: #{transformer_classifier_forward.1} parent=1 // pred_region
      %79 = dma.done [#allocation6], 32768
    $region69: #{transformer_classifier_forward.1} parent=1 // pred_fallthru
      _
    %v81 = vlaneseq
    %v82 = vand.u32 %v81, 127
    %vm83 = vcmp.lt.s32.totalorder %v82, 96
    %v84 = vld [vmem:[%s0] sm:$0xff]
    %v85 = vpack.c.bf16 %v84, %v84
    %v86 = vld [vmem:[%s1] sm:$0xf]
    %v87 = vld [vmem:[%s1 + $0x4] sm:$0xf]
    %v88 = vld [vmem:[%s1 + $0x8] sm:$0xf]
    %v89 = vld [vmem:[%s1 + $0xc] sm:$0xf]
    %v90 = vld [vmem:[%s1 + $0x10] sm:$0xf]
    %v91 = vld [vmem:[%s1 + $0x14] sm:$0xf]
    %v92 = vld [vmem:[%s1 + $0x18] sm:$0xf]
    %v93 = vld [vmem:[%s1 + $0x1c] sm:$0xf]
    %v94 = vld [vmem:[%s1 + $0x20] sm:$0xf]
    %v95 = vld [vmem:[%s1 + $0x24] sm:$0xf]
    %v96 = vld [vmem:[%s1 + $0x28] sm:$0xf]
    %v97 = vld [vmem:[%s1 + $0x2c] sm:$0xf]
    %v98 = vld [vmem:[%s1 + $0x30] sm:$0xf]
    %v99 = vld [vmem:[%s1 + $0x34] sm:$0xf]
    %v100 = vld [vmem:[%s1 + $0x38] sm:$0xf]
    %v101 = vld [vmem:[%s1 + $0x3c] sm:$0xf]
    %v102 = vld [vmem:[%s2] sm:$0x1]
    %v104 = vlaneseq
    %v105 = vshrl.u32 %v104, 7
    %v106 = vsub.s32 0, %v105
    %v107 = vrot.slane %v102, %v106
    %v125 = vunpack.c.l.b16 %v86
    %v126 = vunpack.c.l.b16 %v87
    %v127 = vunpack.c.l.b16 %v88
    %v128 = vunpack.c.l.b16 %v89
    %v129 = vunpack.c.l.b16 %v90
    %v130 = vunpack.c.l.b16 %v91
    %v131 = vunpack.c.l.b16 %v92
    %v132 = vunpack.c.l.b16 %v93
    %v133 = vunpack.c.l.b16 %v94
    %v134 = vunpack.c.l.b16 %v95
    %v135 = vunpack.c.l.b16 %v96
    %v136 = vunpack.c.l.b16 %v97
    %v137 = vunpack.c.l.b16 %v98
    %v138 = vunpack.c.l.b16 %v99
    %v139 = vunpack.c.l.b16 %v100
    %v140 = vunpack.c.l.b16 %v101
    %v141 = vpack.c.b16 %v126, %v125
    %v142 = vpack.c.b16 %v128, %v127
    %v143 = vpack.c.b16 %v130, %v129
    %v144 = vpack.c.b16 %v132, %v131
    %v145 = vpack.c.b16 %v134, %v133
    %v146 = vpack.c.b16 %v136, %v135
    %v147 = vpack.c.b16 %v138, %v137
    %v148 = vpack.c.b16 %v140, %v139
    %157 = vmatprep.subr.bf16.mxu0 0
    %158 = vmatpush1.bf16.msra.mxu0 %v148
    %159 = vmatprep.subr.bf16.mxu0 0
    %160 = vmatpush1.bf16.msra.mxu0 %v147
    %161 = vmatprep.subr.bf16.mxu0 0
    %162 = vmatpush1.bf16.msra.mxu0 %v146
    %163 = vmatprep.subr.bf16.mxu0 0
    %164 = vmatpush1.bf16.msra.mxu0 %v145
    %165 = vmatprep.subr.bf16.mxu0 0
    %166 = vmatpush1.bf16.msra.mxu0 %v144
    %167 = vmatprep.subr.bf16.mxu0 0
    %168 = vmatpush1.bf16.msra.mxu0 %v143
    %169 = vmatprep.subr.bf16.mxu0 0
    %170 = vmatpush1.bf16.msra.mxu0 %v142
    %171 = vmatprep.subr.bf16.mxu0 0
    %172 = vmatpush1.bf16.msra.mxu0 %v141
    %173 = vmatprep.subr.bf16.mxu0 0
    %174 = vmatpush2.bf16.msra.mxu0 0
    %175 = vmatprep.subr.bf16.mxu0 0
    %176 = vmatpush2.bf16.msra.mxu0 0
    %177 = vmatprep.subr.bf16.mxu0 0
    %178 = vmatpush2.bf16.msra.mxu0 0
    %179 = vmatprep.subr.bf16.mxu0 0
    %180 = vmatpush2.bf16.msra.mxu0 0
    %181 = vmatprep.subr.bf16.mxu0 0
    %182 = vmatpush2.bf16.msra.mxu0 0
    %183 = vmatprep.subr.bf16.mxu0 0
    %184 = vmatpush2.bf16.msra.mxu0 0
    %185 = vmatprep.subr.bf16.mxu0 0
    %186 = vmatpush2.bf16.msra.mxu0 0
    %187 = vmatprep.subr.bf16.mxu0 0
    %188 = vmatpush2.bf16.msra.mxu0 0
    %189 = vmatprep.mubr.bf16.mxu0 0
    %190 = vmatmul.mubr.bf16.gmra.mxu0 %v85
    %v191 = vpop.f32.mrf.mxu0
    %v192 = vadd.f32 %v107, %v191
    %v193 = vpop.f32.mrf.mxu0
    %v194 = vpop.f32.mrf.mxu0
    %v195 = vpop.f32.mrf.mxu0
    %196 = vdwg.mxu0
    %v197 = vadd.f32 %v84, %v192
    %v198 = vld [vmem:[%s3] sm:$0x1]
    %v199 = vld [vmem:[%s4] sm:$0x1]
    %200 = vadd.xlane.f32.xlu0 %v197
    %v201 = vpop.xlane.xlu0 %200
    %v202 = vrcp.pop 96.0
    %v203 = vmul.f32 %v201, %v202
    %v204 = vsub.f32 %v197, %v203
    %v205 = vsel %vm83, 1, 0
    %vm206 = vcmp.eq.s32.totalorder %v205, 1
    %v207 = vsel %vm206, %v204, 0.0
    %v208 = vmul.f32 %v207, %v207
    %209 = vadd.xlane.f32.xlu0 %v208
    %v210 = vpop.xlane.xlu0 %209
    %v211 = vmul.f32 %v210, %v202
    %v212 = vadd.f32 %v211, 1e-05
    %v213 = vrsqrt.pop %v212
    %v214 = vmul.f32 %v207, %v213
    %v216 = vlaneseq
    %v217 = vshrl.u32 %v216, 7
    %v218 = vsub.s32 0, %v217
    %v219 = vrot.slane %v198, %v218
    %v221 = vmul.f32 %v214, %v219
    %v223 = vlaneseq
    %v224 = vshrl.u32 %v223, 7
    %v225 = vsub.s32 0, %v224
    %v226 = vrot.slane %v199, %v225
    %v228 = vadd.f32 %v221, %v226
    %v229 = vpack.c.bf16 %v228, %v228
    %v230 = vld [vmem:[#allocation3] sm:$0xff]
    %v231 = vld [vmem:[#allocation3 + $0x8] sm:$0xff]
    %v232 = vld [vmem:[#allocation3 + $0x10] sm:$0xff]
    %v233 = vld [vmem:[#allocation3 + $0x18] sm:$0xff]
    %v234 = vld [vmem:[#allocation3 + $0x40] sm:$0xff]
    %v235 = vld [vmem:[#allocation3 + $0x48] sm:$0xff]
    %v236 = vld [vmem:[#allocation3 + $0x50] sm:$0xff]
    %v237 = vld [vmem:[#allocation3 + $0x58] sm:$0xff]
    %v238 = vld [vmem:[#allocation3 + $0x80] sm:$0xff]
    %v239 = vld [vmem:[#allocation3 + $0x88] sm:$0xff]
    %v240 = vld [vmem:[#allocation3 + $0x90] sm:$0xff]
    %v241 = vld [vmem:[#allocation3 + $0x98] sm:$0xff]
    %v242 = vld [vmem:[#allocation3 + $0xc0] sm:$0xff]
    %v243 = vld [vmem:[#allocation3 + $0xc8] sm:$0xff]
    %v244 = vld [vmem:[#allocation3 + $0xd0] sm:$0xff]
    %v245 = vld [vmem:[#allocation3 + $0xd8] sm:$0xff]
    %v246 = vld [vmem:[#allocation3 + $0x100] sm:$0xff]
    %v247 = vld [vmem:[#allocation3 + $0x108] sm:$0xff]
    %v248 = vld [vmem:[#allocation3 + $0x110] sm:$0xff]
    %v249 = vld [vmem:[#allocation3 + $0x118] sm:$0xff]
    %v250 = vld [vmem:[#allocation3 + $0x140] sm:$0xff]
    %v251 = vld [vmem:[#allocation3 + $0x148] sm:$0xff]
    %v252 = vld [vmem:[#allocation3 + $0x150] sm:$0xff]
    %v253 = vld [vmem:[#allocation3 + $0x158] sm:$0xff]
    %v254 = vld [vmem:[#allocation3 + $0x180] sm:$0xff]
    %v255 = vld [vmem:[#allocation3 + $0x188] sm:$0xff]
    %v256 = vld [vmem:[#allocation3 + $0x190] sm:$0xff]
    %v257 = vld [vmem:[#allocation3 + $0x198] sm:$0xff]
    %v258 = vld [vmem:[#allocation3 + $0x1c0] sm:$0xff]
    %v259 = vld [vmem:[#allocation3 + $0x1c8] sm:$0xff]
    %v260 = vld [vmem:[#allocation3 + $0x1d0] sm:$0xff]
    %v261 = vld [vmem:[#allocation3 + $0x1d8] sm:$0xff]
    %v262 = vld [vmem:[#allocation3 + $0x200] sm:$0xff]
    %v263 = vld [vmem:[#allocation3 + $0x208] sm:$0xff]
    %v264 = vld [vmem:[#allocation3 + $0x210] sm:$0xff]
    %v265 = vld [vmem:[#allocation3 + $0x218] sm:$0xff]
    %v266 = vld [vmem:[#allocation3 + $0x240] sm:$0xff]
    %v267 = vld [vmem:[#allocation3 + $0x248] sm:$0xff]
    %v268 = vld [vmem:[#allocation3 + $0x250] sm:$0xff]
    %v269 = vld [vmem:[#allocation3 + $0x258] sm:$0xff]
    %v270 = vld [vmem:[#allocation3 + $0x280] sm:$0xff]
    %v271 = vld [vmem:[#allocation3 + $0x288] sm:$0xff]
    %v272 = vld [vmem:[#allocation3 + $0x290] sm:$0xff]
    %v273 = vld [vmem:[#allocation3 + $0x298] sm:$0xff]
    %v274 = vld [vmem:[#allocation3 + $0x2c0] sm:$0xff]
    %v275 = vld [vmem:[#allocation3 + $0x2c8] sm:$0xff]
    %v276 = vld [vmem:[#allocation3 + $0x2d0] sm:$0xff]
    %v277 = vld [vmem:[#allocation3 + $0x2d8] sm:$0xff]
    %v278 = vld [vmem:[#allocation3 + $0x300] sm:$0xff]
    %v279 = vld [vmem:[#allocation3 + $0x308] sm:$0xff]
    %v280 = vld [vmem:[#allocation3 + $0x310] sm:$0xff]
    %v281 = vld [vmem:[#allocation3 + $0x318] sm:$0xff]
    %v282 = vld [vmem:[#allocation3 + $0x340] sm:$0xff]
    %v283 = vld [vmem:[#allocation3 + $0x348] sm:$0xff]
    %v284 = vld [vmem:[#allocation3 + $0x350] sm:$0xff]
    %v285 = vld [vmem:[#allocation3 + $0x358] sm:$0xff]
    %v286 = vld [vmem:[#allocation3 + $0x380] sm:$0xff]
    %v287 = vld [vmem:[#allocation3 + $0x388] sm:$0xff]
    %v288 = vld [vmem:[#allocation3 + $0x390] sm:$0xff]
    %v289 = vld [vmem:[#allocation3 + $0x398] sm:$0xff]
    %v290 = vld [vmem:[#allocation3 + $0x3c0] sm:$0xff]
    %v291 = vld [vmem:[#allocation3 + $0x3c8] sm:$0xff]
    %v292 = vld [vmem:[#allocation3 + $0x3d0] sm:$0xff]
    %v293 = vld [vmem:[#allocation3 + $0x3d8] sm:$0xff]
    %v294 = vld [vmem:[%s6] sm:$0xff]
    %v296 = vlaneseq
    %v297 = vshrl.u32 %v296, 7
    %v298 = vsub.s32 0, %v297
    %v299 = vrot.slane %v294, %v298
    %v300 = vlaneseq
    %v301 = vshrl.u32 %v300, 7
    %v302 = vsub.s32 1, %v301
    %v303 = vrot.slane %v294, %v302
    %v304 = vlaneseq
    %v305 = vshrl.u32 %v304, 7
    %v306 = vsub.s32 2, %v305
    %v307 = vrot.slane %v294, %v306
    %v308 = vlaneseq
    %v309 = vshrl.u32 %v308, 7
    %v310 = vsub.s32 3, %v309
    %v311 = vrot.slane %v294, %v310
    %v312 = vlaneseq
    %v313 = vshrl.u32 %v312, 7
    %v314 = vsub.s32 4, %v313
    %v315 = vrot.slane %v294, %v314
    %v316 = vlaneseq
    %v317 = vshrl.u32 %v316, 7
    %v318 = vsub.s32 5, %v317
    %v319 = vrot.slane %v294, %v318
    %v320 = vlaneseq
    %v321 = vshrl.u32 %v320, 7
    %v322 = vsub.s32 6, %v321
    %v323 = vrot.slane %v294, %v322
    %v324 = vlaneseq
    %v325 = vshrl.u32 %v324, 7
    %v326 = vsub.s32 7, %v325
    %v327 = vrot.slane %v294, %v326
    %v400 = vunpack.c.l.b16 %v230
    %v401 = vunpack.c.h.b16 %v230
    %v402 = vunpack.c.l.b16 %v231
    %v403 = vunpack.c.h.b16 %v231
    %v404 = vunpack.c.l.b16 %v232
    %v405 = vunpack.c.h.b16 %v232
    %v406 = vunpack.c.l.b16 %v233
    %v407 = vunpack.c.h.b16 %v233
    %v408 = vunpack.c.l.b16 %v234
    %v409 = vunpack.c.h.b16 %v234
    %v410 = vunpack.c.l.b16 %v235
    %v411 = vunpack.c.h.b16 %v235
    %v412 = vunpack.c.l.b16 %v236
    %v413 = vunpack.c.h.b16 %v236
    %v414 = vunpack.c.l.b16 %v237
    %v415 = vunpack.c.h.b16 %v237
    %v416 = vunpack.c.l.b16 %v238
    %v417 = vunpack.c.h.b16 %v238
    %v418 = vunpack.c.l.b16 %v239
    %v419 = vunpack.c.h.b16 %v239
    %v420 = vunpack.c.l.b16 %v240
    %v421 = vunpack.c.h.b16 %v240
    %v422 = vunpack.c.l.b16 %v241
    %v423 = vunpack.c.h.b16 %v241
    %v424 = vunpack.c.l.b16 %v242
    %v425 = vunpack.c.h.b16 %v242
    %v426 = vunpack.c.l.b16 %v243
    %v427 = vunpack.c.h.b16 %v243
    %v428 = vunpack.c.l.b16 %v244
    %v429 = vunpack.c.h.b16 %v244
    %v430 = vunpack.c.l.b16 %v245
    %v431 = vunpack.c.h.b16 %v245
    %v432 = vunpack.c.l.b16 %v246
    %v433 = vunpack.c.h.b16 %v246
    %v434 = vunpack.c.l.b16 %v247
    %v435 = vunpack.c.h.b16 %v247
    %v436 = vunpack.c.l.b16 %v248
    %v437 = vunpack.c.h.b16 %v248
    %v438 = vunpack.c.l.b16 %v249
    %v439 = vunpack.c.h.b16 %v249
    %v440 = vunpack.c.l.b16 %v250
    %v441 = vunpack.c.h.b16 %v250
    %v442 = vunpack.c.l.b16 %v251
    %v443 = vunpack.c.h.b16 %v251
    %v444 = vunpack.c.l.b16 %v252
    %v445 = vunpack.c.h.b16 %v252
    %v446 = vunpack.c.l.b16 %v253
    %v447 = vunpack.c.h.b16 %v253
    %v448 = vunpack.c.l.b16 %v254
    %v449 = vunpack.c.h.b16 %v254
    %v450 = vunpack.c.l.b16 %v255
    %v451 = vunpack.c.h.b16 %v255
    %v452 = vunpack.c.l.b16 %v256
    %v453 = vunpack.c.h.b16 %v256
    %v454 = vunpack.c.l.b16 %v257
    %v455 = vunpack.c.h.b16 %v257
    %v456 = vunpack.c.l.b16 %v258
    %v457 = vunpack.c.h.b16 %v258
    %v458 = vunpack.c.l.b16 %v259
    %v459 = vunpack.c.h.b16 %v259
    %v460 = vunpack.c.l.b16 %v260
    %v461 = vunpack.c.h.b16 %v260
    %v462 = vunpack.c.l.b16 %v261
    %v463 = vunpack.c.h.b16 %v261
    %v464 = vunpack.c.l.b16 %v262
    %v465 = vunpack.c.h.b16 %v262
    %v466 = vunpack.c.l.b16 %v263
    %v467 = vunpack.c.h.b16 %v263
    %v468 = vunpack.c.l.b16 %v264
    %v469 = vunpack.c.h.b16 %v264
    %v470 = vunpack.c.l.b16 %v265
    %v471 = vunpack.c.h.b16 %v265
    %v472 = vunpack.c.l.b16 %v266
    %v473 = vunpack.c.h.b16 %v266
    %v474 = vunpack.c.l.b16 %v267
    %v475 = vunpack.c.h.b16 %v267
    %v476 = vunpack.c.l.b16 %v268
    %v477 = vunpack.c.h.b16 %v268
    %v478 = vunpack.c.l.b16 %v269
    %v479 = vunpack.c.h.b16 %v269
    %v480 = vunpack.c.l.b16 %v270
    %v481 = vunpack.c.h.b16 %v270
    %v482 = vunpack.c.l.b16 %v271
    %v483 = vunpack.c.h.b16 %v271
    %v484 = vunpack.c.l.b16 %v272
    %v485 = vunpack.c.h.b16 %v272
    %v486 = vunpack.c.l.b16 %v273
    %v487 = vunpack.c.h.b16 %v273
    %v488 = vunpack.c.l.b16 %v274
    %v489 = vunpack.c.h.b16 %v274
    %v490 = vunpack.c.l.b16 %v275
    %v491 = vunpack.c.h.b16 %v275
    %v492 = vunpack.c.l.b16 %v276
    %v493 = vunpack.c.h.b16 %v276
    %v494 = vunpack.c.l.b16 %v277
    %v495 = vunpack.c.h.b16 %v277
    %v496 = vunpack.c.l.b16 %v278
    %v497 = vunpack.c.h.b16 %v278
    %v498 = vunpack.c.l.b16 %v279
    %v499 = vunpack.c.h.b16 %v279
    %v500 = vunpack.c.l.b16 %v280
    %v501 = vunpack.c.h.b16 %v280
    %v502 = vunpack.c.l.b16 %v281
    %v503 = vunpack.c.h.b16 %v281
    %v504 = vunpack.c.l.b16 %v282
    %v505 = vunpack.c.h.b16 %v282
    %v506 = vunpack.c.l.b16 %v283
    %v507 = vunpack.c.h.b16 %v283
    %v508 = vunpack.c.l.b16 %v284
    %v509 = vunpack.c.h.b16 %v284
    %v510 = vunpack.c.l.b16 %v285
    %v511 = vunpack.c.h.b16 %v285
    %v512 = vunpack.c.l.b16 %v286
    %v513 = vunpack.c.h.b16 %v286
    %v514 = vunpack.c.l.b16 %v287
    %v515 = vunpack.c.h.b16 %v287
    %v516 = vunpack.c.l.b16 %v288
    %v517 = vunpack.c.h.b16 %v288
    %v518 = vunpack.c.l.b16 %v289
    %v519 = vunpack.c.h.b16 %v289
    %v520 = vunpack.c.l.b16 %v290
    %v521 = vunpack.c.h.b16 %v290
    %v522 = vunpack.c.l.b16 %v291
    %v523 = vunpack.c.h.b16 %v291
    %v524 = vunpack.c.l.b16 %v292
    %v525 = vunpack.c.h.b16 %v292
    %v526 = vunpack.c.l.b16 %v293
    %v527 = vunpack.c.h.b16 %v293
    %v528 = vpack.c.b16 %v408, %v400
    %v529 = vpack.c.b16 %v409, %v401
    %v530 = vpack.c.b16 %v410, %v402
    %v531 = vpack.c.b16 %v411, %v403
    %v532 = vpack.c.b16 %v412, %v404
    %v533 = vpack.c.b16 %v413, %v405
    %v534 = vpack.c.b16 %v414, %v406
    %v535 = vpack.c.b16 %v415, %v407
    %v536 = vpack.c.b16 %v424, %v416
    %v537 = vpack.c.b16 %v425, %v417
    %v538 = vpack.c.b16 %v426, %v418
    %v539 = vpack.c.b16 %v427, %v419
    %v540 = vpack.c.b16 %v428, %v420
    %v541 = vpack.c.b16 %v429, %v421
    %v542 = vpack.c.b16 %v430, %v422
    %v543 = vpack.c.b16 %v431, %v423
    %v544 = vpack.c.b16 %v440, %v432
    %v545 = vpack.c.b16 %v441, %v433
    %v546 = vpack.c.b16 %v442, %v434
    %v547 = vpack.c.b16 %v443, %v435
    %v548 = vpack.c.b16 %v444, %v436
    %v549 = vpack.c.b16 %v445, %v437
    %v550 = vpack.c.b16 %v446, %v438
    %v551 = vpack.c.b16 %v447, %v439
    %v552 = vpack.c.b16 %v456, %v448
    %v553 = vpack.c.b16 %v457, %v449
    %v554 = vpack.c.b16 %v458, %v450
    %v555 = vpack.c.b16 %v459, %v451
    %v556 = vpack.c.b16 %v460, %v452
    %v557 = vpack.c.b16 %v461, %v453
    %v558 = vpack.c.b16 %v462, %v454
    %v559 = vpack.c.b16 %v463, %v455
    %v560 = vpack.c.b16 %v472, %v464
    %v561 = vpack.c.b16 %v473, %v465
    %v562 = vpack.c.b16 %v474, %v466
    %v563 = vpack.c.b16 %v475, %v467
    %v564 = vpack.c.b16 %v476, %v468
    %v565 = vpack.c.b16 %v477, %v469
    %v566 = vpack.c.b16 %v478, %v470
    %v567 = vpack.c.b16 %v479, %v471
    %v568 = vpack.c.b16 %v488, %v480
    %v569 = vpack.c.b16 %v489, %v481
    %v570 = vpack.c.b16 %v490, %v482
    %v571 = vpack.c.b16 %v491, %v483
    %v572 = vpack.c.b16 %v492, %v484
    %v573 = vpack.c.b16 %v493, %v485
    %v574 = vpack.c.b16 %v494, %v486
    %v575 = vpack.c.b16 %v495, %v487
    %v576 = vpack.c.b16 %v504, %v496
    %v577 = vpack.c.b16 %v505, %v497
    %v578 = vpack.c.b16 %v506, %v498
    %v579 = vpack.c.b16 %v507, %v499
    %v580 = vpack.c.b16 %v508, %v500
    %v581 = vpack.c.b16 %v509, %v501
    %v582 = vpack.c.b16 %v510, %v502
    %v583 = vpack.c.b16 %v511, %v503
    %v584 = vpack.c.b16 %v520, %v512
    %v585 = vpack.c.b16 %v521, %v513
    %v586 = vpack.c.b16 %v522, %v514
    %v587 = vpack.c.b16 %v523, %v515
    %v588 = vpack.c.b16 %v524, %v516
    %v589 = vpack.c.b16 %v525, %v517
    %v590 = vpack.c.b16 %v526, %v518
    %v591 = vpack.c.b16 %v527, %v519
    %656 = vmatprep.subr.bf16.mxu0 %v585
    %657 = vmatpush1.bf16.msra.mxu0 %v584
    %658 = vmatprep.subr.bf16.mxu0 %v577
    %659 = vmatpush1.bf16.msra.mxu0 %v576
    %660 = vmatprep.subr.bf16.mxu0 %v569
    %661 = vmatpush1.bf16.msra.mxu0 %v568
    %662 = vmatprep.subr.bf16.mxu0 %v561
    %663 = vmatpush1.bf16.msra.mxu0 %v560
    %664 = vmatprep.subr.bf16.mxu0 %v553
    %665 = vmatpush1.bf16.msra.mxu0 %v552
    %666 = vmatprep.subr.bf16.mxu0 %v545
    %667 = vmatpush1.bf16.msra.mxu0 %v544
    %668 = vmatprep.subr.bf16.mxu0 %v537
    %669 = vmatpush1.bf16.msra.mxu0 %v536
    %670 = vmatprep.subr.bf16.mxu0 %v529
    %671 = vmatpush1.bf16.msra.mxu0 %v528
    %672 = vmatprep.subr.bf16.mxu0 0
    %673 = vmatpush2.bf16.msra.mxu0 0
    %674 = vmatprep.subr.bf16.mxu0 0
    %675 = vmatpush2.bf16.msra.mxu0 0
    %676 = vmatprep.subr.bf16.mxu0 0
    %677 = vmatpush2.bf16.msra.mxu0 0
    %678 = vmatprep.subr.bf16.mxu0 0
    %679 = vmatpush2.bf16.msra.mxu0 0
    %680 = vmatprep.subr.bf16.mxu0 0
    %681 = vmatpush2.bf16.msra.mxu0 0
    %682 = vmatprep.subr.bf16.mxu0 0
    %683 = vmatpush2.bf16.msra.mxu0 0
    %684 = vmatprep.subr.bf16.mxu0 0
    %685 = vmatpush2.bf16.msra.mxu0 0
    %686 = vmatprep.subr.bf16.mxu0 0
    %687 = vmatpush2.bf16.msra.mxu0 0
    %688 = vmatprep.mubr.bf16.mxu0 0
    %689 = vmatmul.mubr.bf16.gmra.mxu0 %v229
    %v690 = vpop.f32.mrf.mxu0
    %v691 = vadd.f32 %v299, %v690
    %v692 = vpop.f32.mrf.mxu0
    %v693 = vadd.f32 %v303, %v692
    %v694 = vpop.f32.mrf.mxu0
    %v695 = vpop.f32.mrf.mxu0
    %696 = vdwg.mxu0
    %697 = vmatprep.subr.bf16.mxu0 %v587
    %698 = vmatpush1.bf16.msra.mxu0 %v586
    %699 = vmatprep.subr.bf16.mxu0 %v579
    %700 = vmatpush1.bf16.msra.mxu0 %v578
    %701 = vmatprep.subr.bf16.mxu0 %v571
    %702 = vmatpush1.bf16.msra.mxu0 %v570
    %703 = vmatprep.subr.bf16.mxu0 %v563
    %704 = vmatpush1.bf16.msra.mxu0 %v562
    %705 = vmatprep.subr.bf16.mxu0 %v555
    %706 = vmatpush1.bf16.msra.mxu0 %v554
    %707 = vmatprep.subr.bf16.mxu0 %v547
    %708 = vmatpush1.bf16.msra.mxu0 %v546
    %709 = vmatprep.subr.bf16.mxu0 %v539
    %710 = vmatpush1.bf16.msra.mxu0 %v538
    %711 = vmatprep.subr.bf16.mxu0 %v531
    %712 = vmatpush1.bf16.msra.mxu0 %v530
    %713 = vmatprep.subr.bf16.mxu0 0
    %714 = vmatpush2.bf16.msra.mxu0 0
    %715 = vmatprep.subr.bf16.mxu0 0
    %716 = vmatpush2.bf16.msra.mxu0 0
    %717 = vmatprep.subr.bf16.mxu0 0
    %718 = vmatpush2.bf16.msra.mxu0 0
    %719 = vmatprep.subr.bf16.mxu0 0
    %720 = vmatpush2.bf16.msra.mxu0 0
    %721 = vmatprep.subr.bf16.mxu0 0
    %722 = vmatpush2.bf16.msra.mxu0 0
    %723 = vmatprep.subr.bf16.mxu0 0
    %724 = vmatpush2.bf16.msra.mxu0 0
    %725 = vmatprep.subr.bf16.mxu0 0
    %726 = vmatpush2.bf16.msra.mxu0 0
    %727 = vmatprep.subr.bf16.mxu0 0
    %728 = vmatpush2.bf16.msra.mxu0 0
    %729 = vmatprep.mubr.bf16.mxu0 0
    %730 = vmatmul.mubr.bf16.gmra.mxu0 %v229
    %v731 = vpop.f32.mrf.mxu0
    %v732 = vadd.f32 %v307, %v731
    %v733 = vpop.f32.mrf.mxu0
    %v734 = vadd.f32 %v311, %v733
    %v735 = vpop.f32.mrf.mxu0
    %v736 = vpop.f32.mrf.mxu0
    %737 = vdwg.mxu0
    %738 = vmatprep.subr.bf16.mxu0 %v589
    %739 = vmatpush1.bf16.msra.mxu0 %v588
    %740 = vmatprep.subr.bf16.mxu0 %v581
    %741 = vmatpush1.bf16.msra.mxu0 %v580
    %742 = vmatprep.subr.bf16.mxu0 %v573
    %743 = vmatpush1.bf16.msra.mxu0 %v572
    %744 = vmatprep.subr.bf16.mxu0 %v565
    %745 = vmatpush1.bf16.msra.mxu0 %v564
    %746 = vmatprep.subr.bf16.mxu0 %v557
    %747 = vmatpush1.bf16.msra.mxu0 %v556
    %748 = vmatprep.subr.bf16.mxu0 %v549
    %749 = vmatpush1.bf16.msra.mxu0 %v548
    %750 = vmatprep.subr.bf16.mxu0 %v541
    %751 = vmatpush1.bf16.msra.mxu0 %v540
    %752 = vmatprep.subr.bf16.mxu0 %v533
    %753 = vmatpush1.bf16.msra.mxu0 %v532
    %754 = vmatprep.subr.bf16.mxu0 0
    %755 = vmatpush2.bf16.msra.mxu0 0
    %756 = vmatprep.subr.bf16.mxu0 0
    %757 = vmatpush2.bf16.msra.mxu0 0
    %758 = vmatprep.subr.bf16.mxu0 0
    %759 = vmatpush2.bf16.msra.mxu0 0
    %760 = vmatprep.subr.bf16.mxu0 0
    %761 = vmatpush2.bf16.msra.mxu0 0
    %762 = vmatprep.subr.bf16.mxu0 0
    %763 = vmatpush2.bf16.msra.mxu0 0
    %764 = vmatprep.subr.bf16.mxu0 0
    %765 = vmatpush2.bf16.msra.mxu0 0
    %766 = vmatprep.subr.bf16.mxu0 0
    %767 = vmatpush2.bf16.msra.mxu0 0
    %768 = vmatprep.subr.bf16.mxu0 0
    %769 = vmatpush2.bf16.msra.mxu0 0
    %770 = vmatprep.mubr.bf16.mxu0 0
    %771 = vmatmul.mubr.bf16.gmra.mxu0 %v229
    %v772 = vpop.f32.mrf.mxu0
    %v773 = vadd.f32 %v315, %v772
    %v774 = vpop.f32.mrf.mxu0
    %v775 = vadd.f32 %v319, %v774
    %v776 = vpop.f32.mrf.mxu0
    %v777 = vpop.f32.mrf.mxu0
    %778 = vdwg.mxu0
    %779 = vmatprep.subr.bf16.mxu0 %v591
    %780 = vmatpush1.bf16.msra.mxu0 %v590
    %781 = vmatprep.subr.bf16.mxu0 %v583
    %782 = vmatpush1.bf16.msra.mxu0 %v582
    %783 = vmatprep.subr.bf16.mxu0 %v575
    %784 = vmatpush1.bf16.msra.mxu0 %v574
    %785 = vmatprep.subr.bf16.mxu0 %v567
    %786 = vmatpush1.bf16.msra.mxu0 %v566
    %787 = vmatprep.subr.bf16.mxu0 %v559
    %788 = vmatpush1.bf16.msra.mxu0 %v558
    %789 = vmatprep.subr.bf16.mxu0 %v551
    %790 = vmatpush1.bf16.msra.mxu0 %v550
    %791 = vmatprep.subr.bf16.mxu0 %v543
    %792 = vmatpush1.bf16.msra.mxu0 %v542
    %793 = vmatprep.subr.bf16.mxu0 %v535
    %794 = vmatpush1.bf16.msra.mxu0 %v534
    %795 = vmatprep.subr.bf16.mxu0 0
    %796 = vmatpush2.bf16.msra.mxu0 0
    %797 = vmatprep.subr.bf16.mxu0 0
    %798 = vmatpush2.bf16.msra.mxu0 0
    %799 = vmatprep.subr.bf16.mxu0 0
    %800 = vmatpush2.bf16.msra.mxu0 0
    %801 = vmatprep.subr.bf16.mxu0 0
    %802 = vmatpush2.bf16.msra.mxu0 0
    %803 = vmatprep.subr.bf16.mxu0 0
    %804 = vmatpush2.bf16.msra.mxu0 0
    %805 = vmatprep.subr.bf16.mxu0 0
    %806 = vmatpush2.bf16.msra.mxu0 0
    %807 = vmatprep.subr.bf16.mxu0 0
    %808 = vmatpush2.bf16.msra.mxu0 0
    %809 = vmatprep.subr.bf16.mxu0 0
    %810 = vmatpush2.bf16.msra.mxu0 0
    %811 = vmatprep.mubr.bf16.mxu0 0
    %812 = vmatmul.mubr.bf16.gmra.mxu0 %v229
    %v813 = vpop.f32.mrf.mxu0
    %v814 = vadd.f32 %v323, %v813
    %v815 = vpop.f32.mrf.mxu0
    %v816 = vadd.f32 %v327, %v815
    %v817 = vpop.f32.mrf.mxu0
    %v818 = vpop.f32.mrf.mxu0
    %819 = vdwg.mxu0
    %v820 = vmax.f32 %v691, 0.0
    %v821 = vmax.f32 %v693, 0.0
    %v822 = vmax.f32 %v732, 0.0
    %v823 = vmax.f32 %v734, 0.0
    %v824 = vmax.f32 %v773, 0.0
    %v825 = vmax.f32 %v775, 0.0
    %v826 = vmax.f32 %v814, 0.0
    %v827 = vmax.f32 %v816, 0.0
    %v828 = vpack.c.bf16 %v820, %v820
    %v829 = vpack.c.bf16 %v821, %v821
    %v830 = vpack.c.bf16 %v822, %v822
    %v831 = vpack.c.bf16 %v823, %v823
    %v832 = vpack.c.bf16 %v824, %v824
    %v833 = vpack.c.bf16 %v825, %v825
    %v834 = vpack.c.bf16 %v826, %v826
    %v835 = vpack.c.bf16 %v827, %v827
    %v836 = vld [vmem:[#allocation5] sm:$0xf]
    %v837 = vld [vmem:[#allocation5 + $0x4] sm:$0xf]
    %v838 = vld [vmem:[#allocation5 + $0x8] sm:$0xf]
    %v839 = vld [vmem:[#allocation5 + $0xc] sm:$0xf]
    %v840 = vld [vmem:[#allocation5 + $0x10] sm:$0xf]
    %v841 = vld [vmem:[#allocation5 + $0x14] sm:$0xf]
    %v842 = vld [vmem:[#allocation5 + $0x18] sm:$0xf]
    %v843 = vld [vmem:[#allocation5 + $0x1c] sm:$0xf]
    %v844 = vld [vmem:[#allocation5 + $0x20] sm:$0xf]
    %v845 = vld [vmem:[#allocation5 + $0x24] sm:$0xf]
    %v846 = vld [vmem:[#allocation5 + $0x28] sm:$0xf]
    %v847 = vld [vmem:[#allocation5 + $0x2c] sm:$0xf]
    %v848 = vld [vmem:[#allocation5 + $0x30] sm:$0xf]
    %v849 = vld [vmem:[#allocation5 + $0x34] sm:$0xf]
    %v850 = vld [vmem:[#allocation5 + $0x38] sm:$0xf]
    %v851 = vld [vmem:[#allocation5 + $0x3c] sm:$0xf]
    %v852 = vld [vmem:[#allocation5 + $0x40] sm:$0xf]
    %v853 = vld [vmem:[#allocation5 + $0x44] sm:$0xf]
    %v854 = vld [vmem:[#allocation5 + $0x48] sm:$0xf]
    %v855 = vld [vmem:[#allocation5 + $0x4c] sm:$0xf]
    %v856 = vld [vmem:[#allocation5 + $0x50] sm:$0xf]
    %v857 = vld [vmem:[#allocation5 + $0x54] sm:$0xf]
    %v858 = vld [vmem:[#allocation5 + $0x58] sm:$0xf]
    %v859 = vld [vmem:[#allocation5 + $0x5c] sm:$0xf]
    %v860 = vld [vmem:[#allocation5 + $0x60] sm:$0xf]
    %v861 = vld [vmem:[#allocation5 + $0x64] sm:$0xf]
    %v862 = vld [vmem:[#allocation5 + $0x68] sm:$0xf]
    %v863 = vld [vmem:[#allocation5 + $0x6c] sm:$0xf]
    %v864 = vld [vmem:[#allocation5 + $0x70] sm:$0xf]
    %v865 = vld [vmem:[#allocation5 + $0x74] sm:$0xf]
    %v866 = vld [vmem:[#allocation5 + $0x78] sm:$0xf]
    %v867 = vld [vmem:[#allocation5 + $0x7c] sm:$0xf]
    %v868 = vld [vmem:[#allocation5 + $0x80] sm:$0xf]
    %v869 = vld [vmem:[#allocation5 + $0x84] sm:$0xf]
    %v870 = vld [vmem:[#allocation5 + $0x88] sm:$0xf]
    %v871 = vld [vmem:[#allocation5 + $0x8c] sm:$0xf]
    %v872 = vld [vmem:[#allocation5 + $0x90] sm:$0xf]
    %v873 = vld [vmem:[#allocation5 + $0x94] sm:$0xf]
    %v874 = vld [vmem:[#allocation5 + $0x98] sm:$0xf]
    %v875 = vld [vmem:[#allocation5 + $0x9c] sm:$0xf]
    %v876 = vld [vmem:[#allocation5 + $0xa0] sm:$0xf]
    %v877 = vld [vmem:[#allocation5 + $0xa4] sm:$0xf]
    %v878 = vld [vmem:[#allocation5 + $0xa8] sm:$0xf]
    %v879 = vld [vmem:[#allocation5 + $0xac] sm:$0xf]
    %v880 = vld [vmem:[#allocation5 + $0xb0] sm:$0xf]
    %v881 = vld [vmem:[#allocation5 + $0xb4] sm:$0xf]
    %v882 = vld [vmem:[#allocation5 + $0xb8] sm:$0xf]
    %v883 = vld [vmem:[#allocation5 + $0xbc] sm:$0xf]
    %v884 = vld [vmem:[#allocation5 + $0xc0] sm:$0xf]
    %v885 = vld [vmem:[#allocation5 + $0xc4] sm:$0xf]
    %v886 = vld [vmem:[#allocation5 + $0xc8] sm:$0xf]
    %v887 = vld [vmem:[#allocation5 + $0xcc] sm:$0xf]
    %v888 = vld [vmem:[#allocation5 + $0xd0] sm:$0xf]
    %v889 = vld [vmem:[#allocation5 + $0xd4] sm:$0xf]
    %v890 = vld [vmem:[#allocation5 + $0xd8] sm:$0xf]
    %v891 = vld [vmem:[#allocation5 + $0xdc] sm:$0xf]
    %v892 = vld [vmem:[#allocation5 + $0xe0] sm:$0xf]
    %v893 = vld [vmem:[#allocation5 + $0xe4] sm:$0xf]
    %v894 = vld [vmem:[#allocation5 + $0xe8] sm:$0xf]
    %v895 = vld [vmem:[#allocation5 + $0xec] sm:$0xf]
    %v896 = vld [vmem:[#allocation5 + $0xf0] sm:$0xf]
    %v897 = vld [vmem:[#allocation5 + $0xf4] sm:$0xf]
    %v898 = vld [vmem:[#allocation5 + $0xf8] sm:$0xf]
    %v899 = vld [vmem:[#allocation5 + $0xfc] sm:$0xf]
    %v900 = vld [vmem:[#allocation5 + $0x100] sm:$0xf]
    %v901 = vld [vmem:[#allocation5 + $0x104] sm:$0xf]
    %v902 = vld [vmem:[#allocation5 + $0x108] sm:$0xf]
    %v903 = vld [vmem:[#allocation5 + $0x10c] sm:$0xf]
    %v904 = vld [vmem:[#allocation5 + $0x110] sm:$0xf]
    %v905 = vld [vmem:[#allocation5 + $0x114] sm:$0xf]
    %v906 = vld [vmem:[#allocation5 + $0x118] sm:$0xf]
    %v907 = vld [vmem:[#allocation5 + $0x11c] sm:$0xf]
    %v908 = vld [vmem:[#allocation5 + $0x120] sm:$0xf]
    %v909 = vld [vmem:[#allocation5 + $0x124] sm:$0xf]
    %v910 = vld [vmem:[#allocation5 + $0x128] sm:$0xf]
    %v911 = vld [vmem:[#allocation5 + $0x12c] sm:$0xf]
    %v912 = vld [vmem:[#allocation5 + $0x130] sm:$0xf]
    %v913 = vld [vmem:[#allocation5 + $0x134] sm:$0xf]
    %v914 = vld [vmem:[#allocation5 + $0x138] sm:$0xf]
    %v915 = vld [vmem:[#allocation5 + $0x13c] sm:$0xf]
    %v916 = vld [vmem:[#allocation5 + $0x140] sm:$0xf]
    %v917 = vld [vmem:[#allocation5 + $0x144] sm:$0xf]
    %v918 = vld [vmem:[#allocation5 + $0x148] sm:$0xf]
    %v919 = vld [vmem:[#allocation5 + $0x14c] sm:$0xf]
    %v920 = vld [vmem:[#allocation5 + $0x150] sm:$0xf]
    %v921 = vld [vmem:[#allocation5 + $0x154] sm:$0xf]
    %v922 = vld [vmem:[#allocation5 + $0x158] sm:$0xf]
    %v923 = vld [vmem:[#allocation5 + $0x15c] sm:$0xf]
    %v924 = vld [vmem:[#allocation5 + $0x160] sm:$0xf]
    %v925 = vld [vmem:[#allocation5 + $0x164] sm:$0xf]
    %v926 = vld [vmem:[#allocation5 + $0x168] sm:$0xf]
    %v927 = vld [vmem:[#allocation5 + $0x16c] sm:$0xf]
    %v928 = vld [vmem:[#allocation5 + $0x170] sm:$0xf]
    %v929 = vld [vmem:[#allocation5 + $0x174] sm:$0xf]
    %v930 = vld [vmem:[#allocation5 + $0x178] sm:$0xf]
    %v931 = vld [vmem:[#allocation5 + $0x17c] sm:$0xf]
    %v932 = vld [vmem:[#allocation5 + $0x180] sm:$0xf]
    %v933 = vld [vmem:[#allocation5 + $0x184] sm:$0xf]
    %v934 = vld [vmem:[#allocation5 + $0x188] sm:$0xf]
    %v935 = vld [vmem:[#allocation5 + $0x18c] sm:$0xf]
    %v936 = vld [vmem:[#allocation5 + $0x190] sm:$0xf]
    %v937 = vld [vmem:[#allocation5 + $0x194] sm:$0xf]
    %v938 = vld [vmem:[#allocation5 + $0x198] sm:$0xf]
    %v939 = vld [vmem:[#allocation5 + $0x19c] sm:$0xf]
    %v940 = vld [vmem:[#allocation5 + $0x1a0] sm:$0xf]
    %v941 = vld [vmem:[#allocation5 + $0x1a4] sm:$0xf]
    %v942 = vld [vmem:[#allocation5 + $0x1a8] sm:$0xf]
    %v943 = vld [vmem:[#allocation5 + $0x1ac] sm:$0xf]
    %v944 = vld [vmem:[#allocation5 + $0x1b0] sm:$0xf]
    %v945 = vld [vmem:[#allocation5 + $0x1b4] sm:$0xf]
    %v946 = vld [vmem:[#allocation5 + $0x1b8] sm:$0xf]
    %v947 = vld [vmem:[#allocation5 + $0x1bc] sm:$0xf]
    %v948 = vld [vmem:[#allocation5 + $0x1c0] sm:$0xf]
    %v949 = vld [vmem:[#allocation5 + $0x1c4] sm:$0xf]
    %v950 = vld [vmem:[#allocation5 + $0x1c8] sm:$0xf]
    %v951 = vld [vmem:[#allocation5 + $0x1cc] sm:$0xf]
    %v952 = vld [vmem:[#allocation5 + $0x1d0] sm:$0xf]
    %v953 = vld [vmem:[#allocation5 + $0x1d4] sm:$0xf]
    %v954 = vld [vmem:[#allocation5 + $0x1d8] sm:$0xf]
    %v955 = vld [vmem:[#allocation5 + $0x1dc] sm:$0xf]
    %v956 = vld [vmem:[#allocation5 + $0x1e0] sm:$0xf]
    %v957 = vld [vmem:[#allocation5 + $0x1e4] sm:$0xf]
    %v958 = vld [vmem:[#allocation5 + $0x1e8] sm:$0xf]
    %v959 = vld [vmem:[#allocation5 + $0x1ec] sm:$0xf]
    %v960 = vld [vmem:[#allocation5 + $0x1f0] sm:$0xf]
    %v961 = vld [vmem:[#allocation5 + $0x1f4] sm:$0xf]
    %v962 = vld [vmem:[#allocation5 + $0x1f8] sm:$0xf]
    %v963 = vld [vmem:[#allocation5 + $0x1fc] sm:$0xf]
    %v964 = vld [vmem:[#allocation3 + $0x20] sm:$0xff]
    %v965 = vld [vmem:[#allocation3 + $0x28] sm:$0xff]
    %v966 = vld [vmem:[#allocation3 + $0x30] sm:$0xff]
    %v967 = vld [vmem:[#allocation3 + $0x38] sm:$0xff]
    %v968 = vld [vmem:[#allocation3 + $0x60] sm:$0xff]
    %v969 = vld [vmem:[#allocation3 + $0x68] sm:$0xff]
    %v970 = vld [vmem:[#allocation3 + $0x70] sm:$0xff]
    %v971 = vld [vmem:[#allocation3 + $0x78] sm:$0xff]
    %v972 = vld [vmem:[#allocation3 + $0xa0] sm:$0xff]
    %v973 = vld [vmem:[#allocation3 + $0xa8] sm:$0xff]
    %v974 = vld [vmem:[#allocation3 + $0xb0] sm:$0xff]
    %v975 = vld [vmem:[#allocation3 + $0xb8] sm:$0xff]
    %v976 = vld [vmem:[#allocation3 + $0xe0] sm:$0xff]
    %v977 = vld [vmem:[#allocation3 + $0xe8] sm:$0xff]
    %v978 = vld [vmem:[#allocation3 + $0xf0] sm:$0xff]
    %v979 = vld [vmem:[#allocation3 + $0xf8] sm:$0xff]
    %v980 = vld [vmem:[#allocation3 + $0x120] sm:$0xff]
    %v981 = vld [vmem:[#allocation3 + $0x128] sm:$0xff]
    %v982 = vld [vmem:[#allocation3 + $0x130] sm:$0xff]
    %v983 = vld [vmem:[#allocation3 + $0x138] sm:$0xff]
    %v984 = vld [vmem:[#allocation3 + $0x160] sm:$0xff]
    %v985 = vld [vmem:[#allocation3 + $0x168] sm:$0xff]
    %v986 = vld [vmem:[#allocation3 + $0x170] sm:$0xff]
    %v987 = vld [vmem:[#allocation3 + $0x178] sm:$0xff]
    %v988 = vld [vmem:[#allocation3 + $0x1a0] sm:$0xff]
    %v989 = vld [vmem:[#allocation3 + $0x1a8] sm:$0xff]
    %v990 = vld [vmem:[#allocation3 + $0x1b0] sm:$0xff]
    %v991 = vld [vmem:[#allocation3 + $0x1b8] sm:$0xff]
    %v992 = vld [vmem:[#allocation3 + $0x1e0] sm:$0xff]
    %v993 = vld [vmem:[#allocation3 + $0x1e8] sm:$0xff]
    %v994 = vld [vmem:[#allocation3 + $0x1f0] sm:$0xff]
    %v995 = vld [vmem:[#allocation3 + $0x1f8] sm:$0xff]
    %v996 = vld [vmem:[#allocation3 + $0x220] sm:$0xff]
    %v997 = vld [vmem:[#allocation3 + $0x228] sm:$0xff]
    %v998 = vld [vmem:[#allocation3 + $0x230] sm:$0xff]
    %v999 = vld [vmem:[#allocation3 + $0x238] sm:$0xff]
    %v1000 = vld [vmem:[#allocation3 + $0x260] sm:$0xff]
    %v1001 = vld [vmem:[#allocation3 + $0x268] sm:$0xff]
    %v1002 = vld [vmem:[#allocation3 + $0x270] sm:$0xff]
    %v1003 = vld [vmem:[#allocation3 + $0x278] sm:$0xff]
    %v1004 = vld [vmem:[#allocation3 + $0x2a0] sm:$0xff]
    %v1005 = vld [vmem:[#allocation3 + $0x2a8] sm:$0xff]
    %v1006 = vld [vmem:[#allocation3 + $0x2b0] sm:$0xff]
    %v1007 = vld [vmem:[#allocation3 + $0x2b8] sm:$0xff]
    %v1008 = vld [vmem:[#allocation3 + $0x2e0] sm:$0xff]
    %v1009 = vld [vmem:[#allocation3 + $0x2e8] sm:$0xff]
    %v1010 = vld [vmem:[#allocation3 + $0x2f0] sm:$0xff]
    %v1011 = vld [vmem:[#allocation3 + $0x2f8] sm:$0xff]
    %v1012 = vld [vmem:[#allocation3 + $0x320] sm:$0xff]
    %v1013 = vld [vmem:[#allocation3 + $0x328] sm:$0xff]
    %v1014 = vld [vmem:[#allocation3 + $0x330] sm:$0xff]
    %v1015 = vld [vmem:[#allocation3 + $0x338] sm:$0xff]
    %v1016 = vld [vmem:[#allocation3 + $0x360] sm:$0xff]
    %v1017 = vld [vmem:[#allocation3 + $0x368] sm:$0xff]
    %v1018 = vld [vmem:[#allocation3 + $0x370] sm:$0xff]
    %v1019 = vld [vmem:[#allocation3 + $0x378] sm:$0xff]
    %v1020 = vld [vmem:[#allocation3 + $0x3a0] sm:$0xff]
    %v1021 = vld [vmem:[#allocation3 + $0x3a8] sm:$0xff]
    %v1022 = vld [vmem:[#allocation3 + $0x3b0] sm:$0xff]
    %v1023 = vld [vmem:[#allocation3 + $0x3b8] sm:$0xff]
    %v1024 = vld [vmem:[#allocation3 + $0x3e0] sm:$0xff]
    %v1025 = vld [vmem:[#allocation3 + $0x3e8] sm:$0xff]
    %v1026 = vld [vmem:[#allocation3 + $0x3f0] sm:$0xff]
    %v1027 = vld [vmem:[#allocation3 + $0x3f8] sm:$0xff]
    %v1028 = vld [vmem:[%s6 + $0x8] sm:$0xff]
    %v1030 = vlaneseq
    %v1031 = vshrl.u32 %v1030, 7
    %v1032 = vsub.s32 0, %v1031
    %v1033 = vrot.slane %v1028, %v1032
    %v1034 = vlaneseq
    %v1035 = vshrl.u32 %v1034, 7
    %v1036 = vsub.s32 1, %v1035
    %v1037 = vrot.slane %v1028, %v1036
    %v1038 = vlaneseq
    %v1039 = vshrl.u32 %v1038, 7
    %v1040 = vsub.s32 2, %v1039
    %v1041 = vrot.slane %v1028, %v1040
    %v1042 = vlaneseq
    %v1043 = vshrl.u32 %v1042, 7
    %v1044 = vsub.s32 3, %v1043
    %v1045 = vrot.slane %v1028, %v1044
    %v1046 = vlaneseq
    %v1047 = vshrl.u32 %v1046, 7
    %v1048 = vsub.s32 4, %v1047
    %v1049 = vrot.slane %v1028, %v1048
    %v1050 = vlaneseq
    %v1051 = vshrl.u32 %v1050, 7
    %v1052 = vsub.s32 5, %v1051
    %v1053 = vrot.slane %v1028, %v1052
    %v1054 = vlaneseq
    %v1055 = vshrl.u32 %v1054, 7
    %v1056 = vsub.s32 6, %v1055
    %v1057 = vrot.slane %v1028, %v1056
    %v1058 = vlaneseq
    %v1059 = vshrl.u32 %v1058, 7
    %v1060 = vsub.s32 7, %v1059
    %v1061 = vrot.slane %v1028, %v1060
    %v1134 = vunpack.c.l.b16 %v964
    %v1135 = vunpack.c.h.b16 %v964
    %v1136 = vunpack.c.l.b16 %v965
    %v1137 = vunpack.c.h.b16 %v965
    %v1138 = vunpack.c.l.b16 %v966
    %v1139 = vunpack.c.h.b16 %v966
    %v1140 = vunpack.c.l.b16 %v967
    %v1141 = vunpack.c.h.b16 %v967
    %v1142 = vunpack.c.l.b16 %v968
    %v1143 = vunpack.c.h.b16 %v968
    %v1144 = vunpack.c.l.b16 %v969
    %v1145 = vunpack.c.h.b16 %v969
    %v1146 = vunpack.c.l.b16 %v970
    %v1147 = vunpack.c.h.b16 %v970
    %v1148 = vunpack.c.l.b16 %v971
    %v1149 = vunpack.c.h.b16 %v971
    %v1150 = vunpack.c.l.b16 %v972
    %v1151 = vunpack.c.h.b16 %v972
    %v1152 = vunpack.c.l.b16 %v973
    %v1153 = vunpack.c.h.b16 %v973
    %v1154 = vunpack.c.l.b16 %v974
    %v1155 = vunpack.c.h.b16 %v974
    %v1156 = vunpack.c.l.b16 %v975
    %v1157 = vunpack.c.h.b16 %v975
    %v1158 = vunpack.c.l.b16 %v976
    %v1159 = vunpack.c.h.b16 %v976
    %v1160 = vunpack.c.l.b16 %v977
    %v1161 = vunpack.c.h.b16 %v977
    %v1162 = vunpack.c.l.b16 %v978
    %v1163 = vunpack.c.h.b16 %v978
    %v1164 = vunpack.c.l.b16 %v979
    %v1165 = vunpack.c.h.b16 %v979
    %v1166 = vunpack.c.l.b16 %v980
    %v1167 = vunpack.c.h.b16 %v980
    %v1168 = vunpack.c.l.b16 %v981
    %v1169 = vunpack.c.h.b16 %v981
    %v1170 = vunpack.c.l.b16 %v982
    %v1171 = vunpack.c.h.b16 %v982
    %v1172 = vunpack.c.l.b16 %v983
    %v1173 = vunpack.c.h.b16 %v983
    %v1174 = vunpack.c.l.b16 %v984
    %v1175 = vunpack.c.h.b16 %v984
    %v1176 = vunpack.c.l.b16 %v985
    %v1177 = vunpack.c.h.b16 %v985
    %v1178 = vunpack.c.l.b16 %v986
    %v1179 = vunpack.c.h.b16 %v986
    %v1180 = vunpack.c.l.b16 %v987
    %v1181 = vunpack.c.h.b16 %v987
    %v1182 = vunpack.c.l.b16 %v988
    %v1183 = vunpack.c.h.b16 %v988
    %v1184 = vunpack.c.l.b16 %v989
    %v1185 = vunpack.c.h.b16 %v989
    %v1186 = vunpack.c.l.b16 %v990
    %v1187 = vunpack.c.h.b16 %v990
    %v1188 = vunpack.c.l.b16 %v991
    %v1189 = vunpack.c.h.b16 %v991
    %v1190 = vunpack.c.l.b16 %v992
    %v1191 = vunpack.c.h.b16 %v992
    %v1192 = vunpack.c.l.b16 %v993
    %v1193 = vunpack.c.h.b16 %v993
    %v1194 = vunpack.c.l.b16 %v994
    %v1195 = vunpack.c.h.b16 %v994
    %v1196 = vunpack.c.l.b16 %v995
    %v1197 = vunpack.c.h.b16 %v995
    %v1198 = vunpack.c.l.b16 %v996
    %v1199 = vunpack.c.h.b16 %v996
    %v1200 = vunpack.c.l.b16 %v997
    %v1201 = vunpack.c.h.b16 %v997
    %v1202 = vunpack.c.l.b16 %v998
    %v1203 = vunpack.c.h.b16 %v998
    %v1204 = vunpack.c.l.b16 %v999
    %v1205 = vunpack.c.h.b16 %v999
    %v1206 = vunpack.c.l.b16 %v1000
    %v1207 = vunpack.c.h.b16 %v1000
    %v1208 = vunpack.c.l.b16 %v1001
    %v1209 = vunpack.c.h.b16 %v1001
    %v1210 = vunpack.c.l.b16 %v1002
    %v1211 = vunpack.c.h.b16 %v1002
    %v1212 = vunpack.c.l.b16 %v1003
    %v1213 = vunpack.c.h.b16 %v1003
    %v1214 = vunpack.c.l.b16 %v1004
    %v1215 = vunpack.c.h.b16 %v1004
    %v1216 = vunpack.c.l.b16 %v1005
    %v1217 = vunpack.c.h.b16 %v1005
    %v1218 = vunpack.c.l.b16 %v1006
    %v1219 = vunpack.c.h.b16 %v1006
    %v1220 = vunpack.c.l.b16 %v1007
    %v1221 = vunpack.c.h.b16 %v1007
    %v1222 = vunpack.c.l.b16 %v1008
    %v1223 = vunpack.c.h.b16 %v1008
    %v1224 = vunpack.c.l.b16 %v1009
    %v1225 = vunpack.c.h.b16 %v1009
    %v1226 = vunpack.c.l.b16 %v1010
    %v1227 = vunpack.c.h.b16 %v1010
    %v1228 = vunpack.c.l.b16 %v1011
    %v1229 = vunpack.c.h.b16 %v1011
    %v1230 = vunpack.c.l.b16 %v1012
    %v1231 = vunpack.c.h.b16 %v1012
    %v1232 = vunpack.c.l.b16 %v1013
    %v1233 = vunpack.c.h.b16 %v1013
    %v1234 = vunpack.c.l.b16 %v1014
    %v1235 = vunpack.c.h.b16 %v1014
    %v1236 = vunpack.c.l.b16 %v1015
    %v1237 = vunpack.c.h.b16 %v1015
    %v1238 = vunpack.c.l.b16 %v1016
    %v1239 = vunpack.c.h.b16 %v1016
    %v1240 = vunpack.c.l.b16 %v1017
    %v1241 = vunpack.c.h.b16 %v1017
    %v1242 = vunpack.c.l.b16 %v1018
    %v1243 = vunpack.c.h.b16 %v1018
    %v1244 = vunpack.c.l.b16 %v1019
    %v1245 = vunpack.c.h.b16 %v1019
    %v1246 = vunpack.c.l.b16 %v1020
    %v1247 = vunpack.c.h.b16 %v1020
    %v1248 = vunpack.c.l.b16 %v1021
    %v1249 = vunpack.c.h.b16 %v1021
    %v1250 = vunpack.c.l.b16 %v1022
    %v1251 = vunpack.c.h.b16 %v1022
    %v1252 = vunpack.c.l.b16 %v1023
    %v1253 = vunpack.c.h.b16 %v1023
    %v1254 = vunpack.c.l.b16 %v1024
    %v1255 = vunpack.c.h.b16 %v1024
    %v1256 = vunpack.c.l.b16 %v1025
    %v1257 = vunpack.c.h.b16 %v1025
    %v1258 = vunpack.c.l.b16 %v1026
    %v1259 = vunpack.c.h.b16 %v1026
    %v1260 = vunpack.c.l.b16 %v1027
    %v1261 = vunpack.c.h.b16 %v1027
    %v1262 = vpack.c.b16 %v1142, %v1134
    %v1263 = vpack.c.b16 %v1143, %v1135
    %v1264 = vpack.c.b16 %v1144, %v1136
    %v1265 = vpack.c.b16 %v1145, %v1137
    %v1266 = vpack.c.b16 %v1146, %v1138
    %v1267 = vpack.c.b16 %v1147, %v1139
    %v1268 = vpack.c.b16 %v1148, %v1140
    %v1269 = vpack.c.b16 %v1149, %v1141
    %v1270 = vpack.c.b16 %v1158, %v1150
    %v1271 = vpack.c.b16 %v1159, %v1151
    %v1272 = vpack.c.b16 %v1160, %v1152
    %v1273 = vpack.c.b16 %v1161, %v1153
    %v1274 = vpack.c.b16 %v1162, %v1154
    %v1275 = vpack.c.b16 %v1163, %v1155
    %v1276 = vpack.c.b16 %v1164, %v1156
    %v1277 = vpack.c.b16 %v1165, %v1157
    %v1278 = vpack.c.b16 %v1174, %v1166
    %v1279 = vpack.c.b16 %v1175, %v1167
    %v1280 = vpack.c.b16 %v1176, %v1168
    %v1281 = vpack.c.b16 %v1177, %v1169
    %v1282 = vpack.c.b16 %v1178, %v1170
    %v1283 = vpack.c.b16 %v1179, %v1171
    %v1284 = vpack.c.b16 %v1180, %v1172
    %v1285 = vpack.c.b16 %v1181, %v1173
    %v1286 = vpack.c.b16 %v1190, %v1182
    %v1287 = vpack.c.b16 %v1191, %v1183
    %v1288 = vpack.c.b16 %v1192, %v1184
    %v1289 = vpack.c.b16 %v1193, %v1185
    %v1290 = vpack.c.b16 %v1194, %v1186
    %v1291 = vpack.c.b16 %v1195, %v1187
    %v1292 = vpack.c.b16 %v1196, %v1188
    %v1293 = vpack.c.b16 %v1197, %v1189
    %v1294 = vpack.c.b16 %v1206, %v1198
    %v1295 = vpack.c.b16 %v1207, %v1199
    %v1296 = vpack.c.b16 %v1208, %v1200
    %v1297 = vpack.c.b16 %v1209, %v1201
    %v1298 = vpack.c.b16 %v1210, %v1202
    %v1299 = vpack.c.b16 %v1211, %v1203
    %v1300 = vpack.c.b16 %v1212, %v1204
    %v1301 = vpack.c.b16 %v1213, %v1205
    %v1302 = vpack.c.b16 %v1222, %v1214
    %v1303 = vpack.c.b16 %v1223, %v1215
    %v1304 = vpack.c.b16 %v1224, %v1216
    %v1305 = vpack.c.b16 %v1225, %v1217
    %v1306 = vpack.c.b16 %v1226, %v1218
    %v1307 = vpack.c.b16 %v1227, %v1219
    %v1308 = vpack.c.b16 %v1228, %v1220
    %v1309 = vpack.c.b16 %v1229, %v1221
    %v1310 = vpack.c.b16 %v1238, %v1230
    %v1311 = vpack.c.b16 %v1239, %v1231
    %v1312 = vpack.c.b16 %v1240, %v1232
    %v1313 = vpack.c.b16 %v1241, %v1233
    %v1314 = vpack.c.b16 %v1242, %v1234
    %v1315 = vpack.c.b16 %v1243, %v1235
    %v1316 = vpack.c.b16 %v1244, %v1236
    %v1317 = vpack.c.b16 %v1245, %v1237
    %v1318 = vpack.c.b16 %v1254, %v1246
    %v1319 = vpack.c.b16 %v1255, %v1247
    %v1320 = vpack.c.b16 %v1256, %v1248
    %v1321 = vpack.c.b16 %v1257, %v1249
    %v1322 = vpack.c.b16 %v1258, %v1250
    %v1323 = vpack.c.b16 %v1259, %v1251
    %v1324 = vpack.c.b16 %v1260, %v1252
    %v1325 = vpack.c.b16 %v1261, %v1253
    %1390 = vmatprep.subr.bf16.mxu0 %v1319
    %1391 = vmatpush1.bf16.msra.mxu0 %v1318
    %1392 = vmatprep.subr.bf16.mxu0 %v1311
    %1393 = vmatpush1.bf16.msra.mxu0 %v1310
    %1394 = vmatprep.subr.bf16.mxu0 %v1303
    %1395 = vmatpush1.bf16.msra.mxu0 %v1302
    %1396 = vmatprep.subr.bf16.mxu0 %v1295
    %1397 = vmatpush1.bf16.msra.mxu0 %v1294
    %1398 = vmatprep.subr.bf16.mxu0 %v1287
    %1399 = vmatpush1.bf16.msra.mxu0 %v1286
    %1400 = vmatprep.subr.bf16.mxu0 %v1279
    %1401 = vmatpush1.bf16.msra.mxu0 %v1278
    %1402 = vmatprep.subr.bf16.mxu0 %v1271
    %1403 = vmatpush1.bf16.msra.mxu0 %v1270
    %1404 = vmatprep.subr.bf16.mxu0 %v1263
    %1405 = vmatpush1.bf16.msra.mxu0 %v1262
    %1406 = vmatprep.subr.bf16.mxu0 0
    %1407 = vmatpush2.bf16.msra.mxu0 0
    %1408 = vmatprep.subr.bf16.mxu0 0
    %1409 = vmatpush2.bf16.msra.mxu0 0
    %1410 = vmatprep.subr.bf16.mxu0 0
    %1411 = vmatpush2.bf16.msra.mxu0 0
    %1412 = vmatprep.subr.bf16.mxu0 0
    %1413 = vmatpush2.bf16.msra.mxu0 0
    %1414 = vmatprep.subr.bf16.mxu0 0
    %1415 = vmatpush2.bf16.msra.mxu0 0
    %1416 = vmatprep.subr.bf16.mxu0 0
    %1417 = vmatpush2.bf16.msra.mxu0 0
    %1418 = vmatprep.subr.bf16.mxu0 0
    %1419 = vmatpush2.bf16.msra.mxu0 0
    %1420 = vmatprep.subr.bf16.mxu0 0
    %1421 = vmatpush2.bf16.msra.mxu0 0
    %1422 = vmatprep.mubr.bf16.mxu0 0
    %1423 = vmatmul.mubr.bf16.gmra.mxu0 %v229
    %v1424 = vpop.f32.mrf.mxu0
    %v1425 = vadd.f32 %v1033, %v1424
    %v1426 = vpop.f32.mrf.mxu0
    %v1427 = vadd.f32 %v1037, %v1426
    %v1428 = vpop.f32.mrf.mxu0
    %v1429 = vpop.f32.mrf.mxu0
    %1430 = vdwg.mxu0
    %1431 = vmatprep.subr.bf16.mxu0 %v1321
    %1432 = vmatpush1.bf16.msra.mxu0 %v1320
    %1433 = vmatprep.subr.bf16.mxu0 %v1313
    %1434 = vmatpush1.bf16.msra.mxu0 %v1312
    %1435 = vmatprep.subr.bf16.mxu0 %v1305
    %1436 = vmatpush1.bf16.msra.mxu0 %v1304
    %1437 = vmatprep.subr.bf16.mxu0 %v1297
    %1438 = vmatpush1.bf16.msra.mxu0 %v1296
    %1439 = vmatprep.subr.bf16.mxu0 %v1289
    %1440 = vmatpush1.bf16.msra.mxu0 %v1288
    %1441 = vmatprep.subr.bf16.mxu0 %v1281
    %1442 = vmatpush1.bf16.msra.mxu0 %v1280
    %1443 = vmatprep.subr.bf16.mxu0 %v1273
    %1444 = vmatpush1.bf16.msra.mxu0 %v1272
    %1445 = vmatprep.subr.bf16.mxu0 %v1265
    %1446 = vmatpush1.bf16.msra.mxu0 %v1264
    %1447 = vmatprep.subr.bf16.mxu0 0
    %1448 = vmatpush2.bf16.msra.mxu0 0
    %1449 = vmatprep.subr.bf16.mxu0 0
    %1450 = vmatpush2.bf16.msra.mxu0 0
    %1451 = vmatprep.subr.bf16.mxu0 0
    %1452 = vmatpush2.bf16.msra.mxu0 0
    %1453 = vmatprep.subr.bf16.mxu0 0
    %1454 = vmatpush2.bf16.msra.mxu0 0
    %1455 = vmatprep.subr.bf16.mxu0 0
    %1456 = vmatpush2.bf16.msra.mxu0 0
    %1457 = vmatprep.subr.bf16.mxu0 0
    %1458 = vmatpush2.bf16.msra.mxu0 0
    %1459 = vmatprep.subr.bf16.mxu0 0
    %1460 = vmatpush2.bf16.msra.mxu0 0
    %1461 = vmatprep.subr.bf16.mxu0 0
    %1462 = vmatpush2.bf16.msra.mxu0 0
    %1463 = vmatprep.mubr.bf16.mxu0 0
    %1464 = vmatmul.mubr.bf16.gmra.mxu0 %v229
    %v1465 = vpop.f32.mrf.mxu0
    %v1466 = vadd.f32 %v1041, %v1465
    %v1467 = vpop.f32.mrf.mxu0
    %v1468 = vadd.f32 %v1045, %v1467
    %v1469 = vpop.f32.mrf.mxu0
    %v1470 = vpop.f32.mrf.mxu0
    %1471 = vdwg.mxu0
    %1472 = vmatprep.subr.bf16.mxu0 %v1323
    %1473 = vmatpush1.bf16.msra.mxu0 %v1322
    %1474 = vmatprep.subr.bf16.mxu0 %v1315
    %1475 = vmatpush1.bf16.msra.mxu0 %v1314
    %1476 = vmatprep.subr.bf16.mxu0 %v1307
    %1477 = vmatpush1.bf16.msra.mxu0 %v1306
    %1478 = vmatprep.subr.bf16.mxu0 %v1299
    %1479 = vmatpush1.bf16.msra.mxu0 %v1298
    %1480 = vmatprep.subr.bf16.mxu0 %v1291
    %1481 = vmatpush1.bf16.msra.mxu0 %v1290
    %1482 = vmatprep.subr.bf16.mxu0 %v1283
    %1483 = vmatpush1.bf16.msra.mxu0 %v1282
    %1484 = vmatprep.subr.bf16.mxu0 %v1275
    %1485 = vmatpush1.bf16.msra.mxu0 %v1274
    %1486 = vmatprep.subr.bf16.mxu0 %v1267
    %1487 = vmatpush1.bf16.msra.mxu0 %v1266
    %1488 = vmatprep.subr.bf16.mxu0 0
    %1489 = vmatpush2.bf16.msra.mxu0 0
    %1490 = vmatprep.subr.bf16.mxu0 0
    %1491 = vmatpush2.bf16.msra.mxu0 0
    %1492 = vmatprep.subr.bf16.mxu0 0
    %1493 = vmatpush2.bf16.msra.mxu0 0
    %1494 = vmatprep.subr.bf16.mxu0 0
    %1495 = vmatpush2.bf16.msra.mxu0 0
    %1496 = vmatprep.subr.bf16.mxu0 0
    %1497 = vmatpush2.bf16.msra.mxu0 0
    %1498 = vmatprep.subr.bf16.mxu0 0
    %1499 = vmatpush2.bf16.msra.mxu0 0
    %1500 = vmatprep.subr.bf16.mxu0 0
    %1501 = vmatpush2.bf16.msra.mxu0 0
    %1502 = vmatprep.subr.bf16.mxu0 0
    %1503 = vmatpush2.bf16.msra.mxu0 0
    %1504 = vmatprep.mubr.bf16.mxu0 0
    %1505 = vmatmul.mubr.bf16.gmra.mxu0 %v229
    %v1506 = vpop.f32.mrf.mxu0
    %v1507 = vadd.f32 %v1049, %v1506
    %v1508 = vpop.f32.mrf.mxu0
    %v1509 = vadd.f32 %v1053, %v1508
    %v1510 = vpop.f32.mrf.mxu0
    %v1511 = vpop.f32.mrf.mxu0
    %1512 = vdwg.mxu0
    %1513 = vmatprep.subr.bf16.mxu0 %v1325
    %1514 = vmatpush1.bf16.msra.mxu0 %v1324
    %1515 = vmatprep.subr.bf16.mxu0 %v1317
    %1516 = vmatpush1.bf16.msra.mxu0 %v1316
    %1517 = vmatprep.subr.bf16.mxu0 %v1309
    %1518 = vmatpush1.bf16.msra.mxu0 %v1308
    %1519 = vmatprep.subr.bf16.mxu0 %v1301
    %1520 = vmatpush1.bf16.msra.mxu0 %v1300
    %1521 = vmatprep.subr.bf16.mxu0 %v1293
    %1522 = vmatpush1.bf16.msra.mxu0 %v1292
    %1523 = vmatprep.subr.bf16.mxu0 %v1285
    %1524 = vmatpush1.bf16.msra.mxu0 %v1284
    %1525 = vmatprep.subr.bf16.mxu0 %v1277
    %1526 = vmatpush1.bf16.msra.mxu0 %v1276
    %1527 = vmatprep.subr.bf16.mxu0 %v1269
    %1528 = vmatpush1.bf16.msra.mxu0 %v1268
    %1529 = vmatprep.subr.bf16.mxu0 0
    %1530 = vmatpush2.bf16.msra.mxu0 0
    %1531 = vmatprep.subr.bf16.mxu0 0
    %1532 = vmatpush2.bf16.msra.mxu0 0
    %1533 = vmatprep.subr.bf16.mxu0 0
    %1534 = vmatpush2.bf16.msra.mxu0 0
    %1535 = vmatprep.subr.bf16.mxu0 0
    %1536 = vmatpush2.bf16.msra.mxu0 0
    %1537 = vmatprep.subr.bf16.mxu0 0
    %1538 = vmatpush2.bf16.msra.mxu0 0
    %1539 = vmatprep.subr.bf16.mxu0 0
    %1540 = vmatpush2.bf16.msra.mxu0 0
    %1541 = vmatprep.subr.bf16.mxu0 0
    %1542 = vmatpush2.bf16.msra.mxu0 0
    %1543 = vmatprep.subr.bf16.mxu0 0
    %1544 = vmatpush2.bf16.msra.mxu0 0
    %1545 = vmatprep.mubr.bf16.mxu0 0
    %1546 = vmatmul.mubr.bf16.gmra.mxu0 %v229
    %v1547 = vpop.f32.mrf.mxu0
    %v1548 = vadd.f32 %v1057, %v1547
    %v1549 = vpop.f32.mrf.mxu0
    %v1550 = vadd.f32 %v1061, %v1549
    %v1551 = vpop.f32.mrf.mxu0
    %v1552 = vpop.f32.mrf.mxu0
    %1553 = vdwg.mxu0
    %v1554 = vmax.f32 %v1425, 0.0
    %v1555 = vmax.f32 %v1427, 0.0
    %v1556 = vmax.f32 %v1466, 0.0
    %v1557 = vmax.f32 %v1468, 0.0
    %v1558 = vmax.f32 %v1507, 0.0
    %v1559 = vmax.f32 %v1509, 0.0
    %v1560 = vmax.f32 %v1548, 0.0
    %v1561 = vmax.f32 %v1550, 0.0
    %v1562 = vpack.c.bf16 %v1554, %v1554
    %v1563 = vpack.c.bf16 %v1555, %v1555
    %v1564 = vpack.c.bf16 %v1556, %v1556
    %v1565 = vpack.c.bf16 %v1557, %v1557
    %v1566 = vpack.c.bf16 %v1558, %v1558
    %v1567 = vpack.c.bf16 %v1559, %v1559
    %v1568 = vpack.c.bf16 %v1560, %v1560
    %v1569 = vpack.c.bf16 %v1561, %v1561
    %v1570 = vld [vmem:[#allocation5 + $0x200] sm:$0xf]
    %v1571 = vld [vmem:[#allocation5 + $0x204] sm:$0xf]
    %v1572 = vld [vmem:[#allocation5 + $0x208] sm:$0xf]
    %v1573 = vld [vmem:[#allocation5 + $0x20c] sm:$0xf]
    %v1574 = vld [vmem:[#allocation5 + $0x210] sm:$0xf]
    %v1575 = vld [vmem:[#allocation5 + $0x214] sm:$0xf]
    %v1576 = vld [vmem:[#allocation5 + $0x218] sm:$0xf]
    %v1577 = vld [vmem:[#allocation5 + $0x21c] sm:$0xf]
    %v1578 = vld [vmem:[#allocation5 + $0x220] sm:$0xf]
    %v1579 = vld [vmem:[#allocation5 + $0x224] sm:$0xf]
    %v1580 = vld [vmem:[#allocation5 + $0x228] sm:$0xf]
    %v1581 = vld [vmem:[#allocation5 + $0x22c] sm:$0xf]
    %v1582 = vld [vmem:[#allocation5 + $0x230] sm:$0xf]
    %v1583 = vld [vmem:[#allocation5 + $0x234] sm:$0xf]
    %v1584 = vld [vmem:[#allocation5 + $0x238] sm:$0xf]
    %v1585 = vld [vmem:[#allocation5 + $0x23c] sm:$0xf]
    %v1586 = vld [vmem:[#allocation5 + $0x240] sm:$0xf]
    %v1587 = vld [vmem:[#allocation5 + $0x244] sm:$0xf]
    %v1588 = vld [vmem:[#allocation5 + $0x248] sm:$0xf]
    %v1589 = vld [vmem:[#allocation5 + $0x24c] sm:$0xf]
    %v1590 = vld [vmem:[#allocation5 + $0x250] sm:$0xf]
    %v1591 = vld [vmem:[#allocation5 + $0x254] sm:$0xf]
    %v1592 = vld [vmem:[#allocation5 + $0x258] sm:$0xf]
    %v1593 = vld [vmem:[#allocation5 + $0x25c] sm:$0xf]
    %v1594 = vld [vmem:[#allocation5 + $0x260] sm:$0xf]
    %v1595 = vld [vmem:[#allocation5 + $0x264] sm:$0xf]
    %v1596 = vld [vmem:[#allocation5 + $0x268] sm:$0xf]
    %v1597 = vld [vmem:[#allocation5 + $0x26c] sm:$0xf]
    %v1598 = vld [vmem:[#allocation5 + $0x270] sm:$0xf]
    %v1599 = vld [vmem:[#allocation5 + $0x274] sm:$0xf]
    %v1600 = vld [vmem:[#allocation5 + $0x278] sm:$0xf]
    %v1601 = vld [vmem:[#allocation5 + $0x27c] sm:$0xf]
    %v1602 = vld [vmem:[#allocation5 + $0x280] sm:$0xf]
    %v1603 = vld [vmem:[#allocation5 + $0x284] sm:$0xf]
    %v1604 = vld [vmem:[#allocation5 + $0x288] sm:$0xf]
    %v1605 = vld [vmem:[#allocation5 + $0x28c] sm:$0xf]
    %v1606 = vld [vmem:[#allocation5 + $0x290] sm:$0xf]
    %v1607 = vld [vmem:[#allocation5 + $0x294] sm:$0xf]
    %v1608 = vld [vmem:[#allocation5 + $0x298] sm:$0xf]
    %v1609 = vld [vmem:[#allocation5 + $0x29c] sm:$0xf]
    %v1610 = vld [vmem:[#allocation5 + $0x2a0] sm:$0xf]
    %v1611 = vld [vmem:[#allocation5 + $0x2a4] sm:$0xf]
    %v1612 = vld [vmem:[#allocation5 + $0x2a8] sm:$0xf]
    %v1613 = vld [vmem:[#allocation5 + $0x2ac] sm:$0xf]
    %v1614 = vld [vmem:[#allocation5 + $0x2b0] sm:$0xf]
    %v1615 = vld [vmem:[#allocation5 + $0x2b4] sm:$0xf]
    %v1616 = vld [vmem:[#allocation5 + $0x2b8] sm:$0xf]
    %v1617 = vld [vmem:[#allocation5 + $0x2bc] sm:$0xf]
    %v1618 = vld [vmem:[#allocation5 + $0x2c0] sm:$0xf]
    %v1619 = vld [vmem:[#allocation5 + $0x2c4] sm:$0xf]
    %v1620 = vld [vmem:[#allocation5 + $0x2c8] sm:$0xf]
    %v1621 = vld [vmem:[#allocation5 + $0x2cc] sm:$0xf]
    %v1622 = vld [vmem:[#allocation5 + $0x2d0] sm:$0xf]
    %v1623 = vld [vmem:[#allocation5 + $0x2d4] sm:$0xf]
    %v1624 = vld [vmem:[#allocation5 + $0x2d8] sm:$0xf]
    %v1625 = vld [vmem:[#allocation5 + $0x2dc] sm:$0xf]
    %v1626 = vld [vmem:[#allocation5 + $0x2e0] sm:$0xf]
    %v1627 = vld [vmem:[#allocation5 + $0x2e4] sm:$0xf]
    %v1628 = vld [vmem:[#allocation5 + $0x2e8] sm:$0xf]
    %v1629 = vld [vmem:[#allocation5 + $0x2ec] sm:$0xf]
    %v1630 = vld [vmem:[#allocation5 + $0x2f0] sm:$0xf]
    %v1631 = vld [vmem:[#allocation5 + $0x2f4] sm:$0xf]
    %v1632 = vld [vmem:[#allocation5 + $0x2f8] sm:$0xf]
    %v1633 = vld [vmem:[#allocation5 + $0x2fc] sm:$0xf]
    %v1634 = vld [vmem:[#allocation5 + $0x300] sm:$0xf]
    %v1635 = vld [vmem:[#allocation5 + $0x304] sm:$0xf]
    %v1636 = vld [vmem:[#allocation5 + $0x308] sm:$0xf]
    %v1637 = vld [vmem:[#allocation5 + $0x30c] sm:$0xf]
    %v1638 = vld [vmem:[#allocation5 + $0x310] sm:$0xf]
    %v1639 = vld [vmem:[#allocation5 + $0x314] sm:$0xf]
    %v1640 = vld [vmem:[#allocation5 + $0x318] sm:$0xf]
    %v1641 = vld [vmem:[#allocation5 + $0x31c] sm:$0xf]
    %v1642 = vld [vmem:[#allocation5 + $0x320] sm:$0xf]
    %v1643 = vld [vmem:[#allocation5 + $0x324] sm:$0xf]
    %v1644 = vld [vmem:[#allocation5 + $0x328] sm:$0xf]
    %v1645 = vld [vmem:[#allocation5 + $0x32c] sm:$0xf]
    %v1646 = vld [vmem:[#allocation5 + $0x330] sm:$0xf]
    %v1647 = vld [vmem:[#allocation5 + $0x334] sm:$0xf]
    %v1648 = vld [vmem:[#allocation5 + $0x338] sm:$0xf]
    %v1649 = vld [vmem:[#allocation5 + $0x33c] sm:$0xf]
    %v1650 = vld [vmem:[#allocation5 + $0x340] sm:$0xf]
    %v1651 = vld [vmem:[#allocation5 + $0x344] sm:$0xf]
    %v1652 = vld [vmem:[#allocation5 + $0x348] sm:$0xf]
    %v1653 = vld [vmem:[#allocation5 + $0x34c] sm:$0xf]
    %v1654 = vld [vmem:[#allocation5 + $0x350] sm:$0xf]
    %v1655 = vld [vmem:[#allocation5 + $0x354] sm:$0xf]
    %v1656 = vld [vmem:[#allocation5 + $0x358] sm:$0xf]
    %v1657 = vld [vmem:[#allocation5 + $0x35c] sm:$0xf]
    %v1658 = vld [vmem:[#allocation5 + $0x360] sm:$0xf]
    %v1659 = vld [vmem:[#allocation5 + $0x364] sm:$0xf]
    %v1660 = vld [vmem:[#allocation5 + $0x368] sm:$0xf]
    %v1661 = vld [vmem:[#allocation5 + $0x36c] sm:$0xf]
    %v1662 = vld [vmem:[#allocation5 + $0x370] sm:$0xf]
    %v1663 = vld [vmem:[#allocation5 + $0x374] sm:$0xf]
    %v1664 = vld [vmem:[#allocation5 + $0x378] sm:$0xf]
    %v1665 = vld [vmem:[#allocation5 + $0x37c] sm:$0xf]
    %v1666 = vld [vmem:[#allocation5 + $0x380] sm:$0xf]
    %v1667 = vld [vmem:[#allocation5 + $0x384] sm:$0xf]
    %v1668 = vld [vmem:[#allocation5 + $0x388] sm:$0xf]
    %v1669 = vld [vmem:[#allocation5 + $0x38c] sm:$0xf]
    %v1670 = vld [vmem:[#allocation5 + $0x390] sm:$0xf]
    %v1671 = vld [vmem:[#allocation5 + $0x394] sm:$0xf]
    %v1672 = vld [vmem:[#allocation5 + $0x398] sm:$0xf]
    %v1673 = vld [vmem:[#allocation5 + $0x39c] sm:$0xf]
    %v1674 = vld [vmem:[#allocation5 + $0x3a0] sm:$0xf]
    %v1675 = vld [vmem:[#allocation5 + $0x3a4] sm:$0xf]
    %v1676 = vld [vmem:[#allocation5 + $0x3a8] sm:$0xf]
    %v1677 = vld [vmem:[#allocation5 + $0x3ac] sm:$0xf]
    %v1678 = vld [vmem:[#allocation5 + $0x3b0] sm:$0xf]
    %v1679 = vld [vmem:[#allocation5 + $0x3b4] sm:$0xf]
    %v1680 = vld [vmem:[#allocation5 + $0x3b8] sm:$0xf]
    %v1681 = vld [vmem:[#allocation5 + $0x3bc] sm:$0xf]
    %v1682 = vld [vmem:[#allocation5 + $0x3c0] sm:$0xf]
    %v1683 = vld [vmem:[#allocation5 + $0x3c4] sm:$0xf]
    %v1684 = vld [vmem:[#allocation5 + $0x3c8] sm:$0xf]
    %v1685 = vld [vmem:[#allocation5 + $0x3cc] sm:$0xf]
    %v1686 = vld [vmem:[#allocation5 + $0x3d0] sm:$0xf]
    %v1687 = vld [vmem:[#allocation5 + $0x3d4] sm:$0xf]
    %v1688 = vld [vmem:[#allocation5 + $0x3d8] sm:$0xf]
    %v1689 = vld [vmem:[#allocation5 + $0x3dc] sm:$0xf]
    %v1690 = vld [vmem:[#allocation5 + $0x3e0] sm:$0xf]
    %v1691 = vld [vmem:[#allocation5 + $0x3e4] sm:$0xf]
    %v1692 = vld [vmem:[#allocation5 + $0x3e8] sm:$0xf]
    %v1693 = vld [vmem:[#allocation5 + $0x3ec] sm:$0xf]
    %v1694 = vld [vmem:[#allocation5 + $0x3f0] sm:$0xf]
    %v1695 = vld [vmem:[#allocation5 + $0x3f4] sm:$0xf]
    %v1696 = vld [vmem:[#allocation5 + $0x3f8] sm:$0xf]
    %v1697 = vld [vmem:[#allocation5 + $0x3fc] sm:$0xf]
    %v1826 = vunpack.c.l.b16 %v1570
    %v1827 = vunpack.c.l.b16 %v1571
    %v1828 = vunpack.c.l.b16 %v1572
    %v1829 = vunpack.c.l.b16 %v1573
    %v1830 = vunpack.c.l.b16 %v1574
    %v1831 = vunpack.c.l.b16 %v1575
    %v1832 = vunpack.c.l.b16 %v1576
    %v1833 = vunpack.c.l.b16 %v1577
    %v1834 = vunpack.c.l.b16 %v1578
    %v1835 = vunpack.c.l.b16 %v1579
    %v1836 = vunpack.c.l.b16 %v1580
    %v1837 = vunpack.c.l.b16 %v1581
    %v1838 = vunpack.c.l.b16 %v1582
    %v1839 = vunpack.c.l.b16 %v1583
    %v1840 = vunpack.c.l.b16 %v1584
    %v1841 = vunpack.c.l.b16 %v1585
    %v1842 = vunpack.c.l.b16 %v1586
    %v1843 = vunpack.c.l.b16 %v1587
    %v1844 = vunpack.c.l.b16 %v1588
    %v1845 = vunpack.c.l.b16 %v1589
    %v1846 = vunpack.c.l.b16 %v1590
    %v1847 = vunpack.c.l.b16 %v1591
    %v1848 = vunpack.c.l.b16 %v1592
    %v1849 = vunpack.c.l.b16 %v1593
    %v1850 = vunpack.c.l.b16 %v1594
    %v1851 = vunpack.c.l.b16 %v1595
    %v1852 = vunpack.c.l.b16 %v1596
    %v1853 = vunpack.c.l.b16 %v1597
    %v1854 = vunpack.c.l.b16 %v1598
    %v1855 = vunpack.c.l.b16 %v1599
    %v1856 = vunpack.c.l.b16 %v1600
    %v1857 = vunpack.c.l.b16 %v1601
    %v1858 = vunpack.c.l.b16 %v1602
    %v1859 = vunpack.c.l.b16 %v1603
    %v1860 = vunpack.c.l.b16 %v1604
    %v1861 = vunpack.c.l.b16 %v1605
    %v1862 = vunpack.c.l.b16 %v1606
    %v1863 = vunpack.c.l.b16 %v1607
    %v1864 = vunpack.c.l.b16 %v1608
    %v1865 = vunpack.c.l.b16 %v1609
    %v1866 = vunpack.c.l.b16 %v1610
    %v1867 = vunpack.c.l.b16 %v1611
    %v1868 = vunpack.c.l.b16 %v1612
    %v1869 = vunpack.c.l.b16 %v1613
    %v1870 = vunpack.c.l.b16 %v1614
    %v1871 = vunpack.c.l.b16 %v1615
    %v1872 = vunpack.c.l.b16 %v1616
    %v1873 = vunpack.c.l.b16 %v1617
    %v1874 = vunpack.c.l.b16 %v1618
    %v1875 = vunpack.c.l.b16 %v1619
    %v1876 = vunpack.c.l.b16 %v1620
    %v1877 = vunpack.c.l.b16 %v1621
    %v1878 = vunpack.c.l.b16 %v1622
    %v1879 = vunpack.c.l.b16 %v1623
    %v1880 = vunpack.c.l.b16 %v1624
    %v1881 = vunpack.c.l.b16 %v1625
    %v1882 = vunpack.c.l.b16 %v1626
    %v1883 = vunpack.c.l.b16 %v1627
    %v1884 = vunpack.c.l.b16 %v1628
    %v1885 = vunpack.c.l.b16 %v1629
    %v1886 = vunpack.c.l.b16 %v1630
    %v1887 = vunpack.c.l.b16 %v1631
    %v1888 = vunpack.c.l.b16 %v1632
    %v1889 = vunpack.c.l.b16 %v1633
    %v1890 = vunpack.c.l.b16 %v1634
    %v1891 = vunpack.c.l.b16 %v1635
    %v1892 = vunpack.c.l.b16 %v1636
    %v1893 = vunpack.c.l.b16 %v1637
    %v1894 = vunpack.c.l.b16 %v1638
    %v1895 = vunpack.c.l.b16 %v1639
    %v1896 = vunpack.c.l.b16 %v1640
    %v1897 = vunpack.c.l.b16 %v1641
    %v1898 = vunpack.c.l.b16 %v1642
    %v1899 = vunpack.c.l.b16 %v1643
    %v1900 = vunpack.c.l.b16 %v1644
    %v1901 = vunpack.c.l.b16 %v1645
    %v1902 = vunpack.c.l.b16 %v1646
    %v1903 = vunpack.c.l.b16 %v1647
    %v1904 = vunpack.c.l.b16 %v1648
    %v1905 = vunpack.c.l.b16 %v1649
    %v1906 = vunpack.c.l.b16 %v1650
    %v1907 = vunpack.c.l.b16 %v1651
    %v1908 = vunpack.c.l.b16 %v1652
    %v1909 = vunpack.c.l.b16 %v1653
    %v1910 = vunpack.c.l.b16 %v1654
    %v1911 = vunpack.c.l.b16 %v1655
    %v1912 = vunpack.c.l.b16 %v1656
    %v1913 = vunpack.c.l.b16 %v1657
    %v1914 = vunpack.c.l.b16 %v1658
    %v1915 = vunpack.c.l.b16 %v1659
    %v1916 = vunpack.c.l.b16 %v1660
    %v1917 = vunpack.c.l.b16 %v1661
    %v1918 = vunpack.c.l.b16 %v1662
    %v1919 = vunpack.c.l.b16 %v1663
    %v1920 = vunpack.c.l.b16 %v1664
    %v1921 = vunpack.c.l.b16 %v1665
    %v1922 = vunpack.c.l.b16 %v1666
    %v1923 = vunpack.c.l.b16 %v1667
    %v1924 = vunpack.c.l.b16 %v1668
    %v1925 = vunpack.c.l.b16 %v1669
    %v1926 = vunpack.c.l.b16 %v1670
    %v1927 = vunpack.c.l.b16 %v1671
    %v1928 = vunpack.c.l.b16 %v1672
    %v1929 = vunpack.c.l.b16 %v1673
    %v1930 = vunpack.c.l.b16 %v1674
    %v1931 = vunpack.c.l.b16 %v1675
    %v1932 = vunpack.c.l.b16 %v1676
    %v1933 = vunpack.c.l.b16 %v1677
    %v1934 = vunpack.c.l.b16 %v1678
    %v1935 = vunpack.c.l.b16 %v1679
    %v1936 = vunpack.c.l.b16 %v1680
    %v1937 = vunpack.c.l.b16 %v1681
    %v1938 = vunpack.c.l.b16 %v1682
    %v1939 = vunpack.c.l.b16 %v1683
    %v1940 = vunpack.c.l.b16 %v1684
    %v1941 = vunpack.c.l.b16 %v1685
    %v1942 = vunpack.c.l.b16 %v1686
    %v1943 = vunpack.c.l.b16 %v1687
    %v1944 = vunpack.c.l.b16 %v1688
    %v1945 = vunpack.c.l.b16 %v1689
    %v1946 = vunpack.c.l.b16 %v1690
    %v1947 = vunpack.c.l.b16 %v1691
    %v1948 = vunpack.c.l.b16 %v1692
    %v1949 = vunpack.c.l.b16 %v1693
    %v1950 = vunpack.c.l.b16 %v1694
    %v1951 = vunpack.c.l.b16 %v1695
    %v1952 = vunpack.c.l.b16 %v1696
    %v1953 = vunpack.c.l.b16 %v1697
    %v1954 = vpack.c.b16 %v1827, %v1826
    %v1955 = vpack.c.b16 %v1829, %v1828
    %v1956 = vpack.c.b16 %v1831, %v1830
    %v1957 = vpack.c.b16 %v1833, %v1832
    %v1958 = vpack.c.b16 %v1835, %v1834
    %v1959 = vpack.c.b16 %v1837, %v1836
    %v1960 = vpack.c.b16 %v1839, %v1838
    %v1961 = vpack.c.b16 %v1841, %v1840
    %v1962 = vpack.c.b16 %v1843, %v1842
    %v1963 = vpack.c.b16 %v1845, %v1844
    %v1964 = vpack.c.b16 %v1847, %v1846
    %v1965 = vpack.c.b16 %v1849, %v1848
    %v1966 = vpack.c.b16 %v1851, %v1850
    %v1967 = vpack.c.b16 %v1853, %v1852
    %v1968 = vpack.c.b16 %v1855, %v1854
    %v1969 = vpack.c.b16 %v1857, %v1856
    %v1970 = vpack.c.b16 %v1859, %v1858
    %v1971 = vpack.c.b16 %v1861, %v1860
    %v1972 = vpack.c.b16 %v1863, %v1862
    %v1973 = vpack.c.b16 %v1865, %v1864
    %v1974 = vpack.c.b16 %v1867, %v1866
    %v1975 = vpack.c.b16 %v1869, %v1868
    %v1976 = vpack.c.b16 %v1871, %v1870
    %v1977 = vpack.c.b16 %v1873, %v1872
    %v1978 = vpack.c.b16 %v1875, %v1874
    %v1979 = vpack.c.b16 %v1877, %v1876
    %v1980 = vpack.c.b16 %v1879, %v1878
    %v1981 = vpack.c.b16 %v1881, %v1880
    %v1982 = vpack.c.b16 %v1883, %v1882
    %v1983 = vpack.c.b16 %v1885, %v1884
    %v1984 = vpack.c.b16 %v1887, %v1886
    %v1985 = vpack.c.b16 %v1889, %v1888
    %v1986 = vpack.c.b16 %v1891, %v1890
    %v1987 = vpack.c.b16 %v1893, %v1892
    %v1988 = vpack.c.b16 %v1895, %v1894
    %v1989 = vpack.c.b16 %v1897, %v1896
    %v1990 = vpack.c.b16 %v1899, %v1898
    %v1991 = vpack.c.b16 %v1901, %v1900
    %v1992 = vpack.c.b16 %v1903, %v1902
    %v1993 = vpack.c.b16 %v1905, %v1904
    %v1994 = vpack.c.b16 %v1907, %v1906
    %v1995 = vpack.c.b16 %v1909, %v1908
    %v1996 = vpack.c.b16 %v1911, %v1910
    %v1997 = vpack.c.b16 %v1913, %v1912
    %v1998 = vpack.c.b16 %v1915, %v1914
    %v1999 = vpack.c.b16 %v1917, %v1916
    %v2000 = vpack.c.b16 %v1919, %v1918
    %v2001 = vpack.c.b16 %v1921, %v1920
    %v2002 = vpack.c.b16 %v1923, %v1922
    %v2003 = vpack.c.b16 %v1925, %v1924
    %v2004 = vpack.c.b16 %v1927, %v1926
    %v2005 = vpack.c.b16 %v1929, %v1928
    %v2006 = vpack.c.b16 %v1931, %v1930
    %v2007 = vpack.c.b16 %v1933, %v1932
    %v2008 = vpack.c.b16 %v1935, %v1934
    %v2009 = vpack.c.b16 %v1937, %v1936
    %v2010 = vpack.c.b16 %v1939, %v1938
    %v2011 = vpack.c.b16 %v1941, %v1940
    %v2012 = vpack.c.b16 %v1943, %v1942
    %v2013 = vpack.c.b16 %v1945, %v1944
    %v2014 = vpack.c.b16 %v1947, %v1946
    %v2015 = vpack.c.b16 %v1949, %v1948
    %v2016 = vpack.c.b16 %v1951, %v1950
    %v2017 = vpack.c.b16 %v1953, %v1952
    %2082 = vmatprep.subr.bf16.mxu0 0
    %2083 = vmatpush1.bf16.msra.mxu0 %v1961
    %2084 = vmatprep.subr.bf16.mxu0 0
    %2085 = vmatpush1.bf16.msra.mxu0 %v1960
    %2086 = vmatprep.subr.bf16.mxu0 0
    %2087 = vmatpush1.bf16.msra.mxu0 %v1959
    %2088 = vmatprep.subr.bf16.mxu0 0
    %2089 = vmatpush1.bf16.msra.mxu0 %v1958
    %2090 = vmatprep.subr.bf16.mxu0 0
    %2091 = vmatpush1.bf16.msra.mxu0 %v1957
    %2092 = vmatprep.subr.bf16.mxu0 0
    %2093 = vmatpush1.bf16.msra.mxu0 %v1956
    %2094 = vmatprep.subr.bf16.mxu0 0
    %2095 = vmatpush1.bf16.msra.mxu0 %v1955
    %2096 = vmatprep.subr.bf16.mxu0 0
    %2097 = vmatpush1.bf16.msra.mxu0 %v1954
    %2098 = vmatprep.subr.bf16.mxu0 0
    %2099 = vmatpush2.bf16.msra.mxu0 %v1969
    %2100 = vmatprep.subr.bf16.mxu0 0
    %2101 = vmatpush2.bf16.msra.mxu0 %v1968
    %2102 = vmatprep.subr.bf16.mxu0 0
    %2103 = vmatpush2.bf16.msra.mxu0 %v1967
    %2104 = vmatprep.subr.bf16.mxu0 0
    %2105 = vmatpush2.bf16.msra.mxu0 %v1966
    %2106 = vmatprep.subr.bf16.mxu0 0
    %2107 = vmatpush2.bf16.msra.mxu0 %v1965
    %2108 = vmatprep.subr.bf16.mxu0 0
    %2109 = vmatpush2.bf16.msra.mxu0 %v1964
    %2110 = vmatprep.subr.bf16.mxu0 0
    %2111 = vmatpush2.bf16.msra.mxu0 %v1963
    %2112 = vmatprep.subr.bf16.mxu0 0
    %2113 = vmatpush2.bf16.msra.mxu0 %v1962
    %2114 = vmatprep.mubr.bf16.mxu0 %v1563
    %2115 = vmatmul.mubr.bf16.gmra.mxu0 %v1562
    %v2116 = vpop.f32.mrf.mxu0
    %v2117 = vadd.f32 0.0, %v2116
    %v2118 = vpop.f32.mrf.mxu0
    %v2119 = vpop.f32.mrf.mxu0
    %v2120 = vpop.f32.mrf.mxu0
    %2121 = vdwg.mxu0
    %2122 = vmatprep.subr.bf16.mxu0 0
    %2123 = vmatpush1.bf16.msra.mxu0 %v1977
    %2124 = vmatprep.subr.bf16.mxu0 0
    %2125 = vmatpush1.bf16.msra.mxu0 %v1976
    %2126 = vmatprep.subr.bf16.mxu0 0
    %2127 = vmatpush1.bf16.msra.mxu0 %v1975
    %2128 = vmatprep.subr.bf16.mxu0 0
    %2129 = vmatpush1.bf16.msra.mxu0 %v1974
    %2130 = vmatprep.subr.bf16.mxu0 0
    %2131 = vmatpush1.bf16.msra.mxu0 %v1973
    %2132 = vmatprep.subr.bf16.mxu0 0
    %2133 = vmatpush1.bf16.msra.mxu0 %v1972
    %2134 = vmatprep.subr.bf16.mxu0 0
    %2135 = vmatpush1.bf16.msra.mxu0 %v1971
    %2136 = vmatprep.subr.bf16.mxu0 0
    %2137 = vmatpush1.bf16.msra.mxu0 %v1970
    %2138 = vmatprep.subr.bf16.mxu0 0
    %2139 = vmatpush2.bf16.msra.mxu0 %v1985
    %2140 = vmatprep.subr.bf16.mxu0 0
    %2141 = vmatpush2.bf16.msra.mxu0 %v1984
    %2142 = vmatprep.subr.bf16.mxu0 0
    %2143 = vmatpush2.bf16.msra.mxu0 %v1983
    %2144 = vmatprep.subr.bf16.mxu0 0
    %2145 = vmatpush2.bf16.msra.mxu0 %v1982
    %2146 = vmatprep.subr.bf16.mxu0 0
    %2147 = vmatpush2.bf16.msra.mxu0 %v1981
    %2148 = vmatprep.subr.bf16.mxu0 0
    %2149 = vmatpush2.bf16.msra.mxu0 %v1980
    %2150 = vmatprep.subr.bf16.mxu0 0
    %2151 = vmatpush2.bf16.msra.mxu0 %v1979
    %2152 = vmatprep.subr.bf16.mxu0 0
    %2153 = vmatpush2.bf16.msra.mxu0 %v1978
    %2154 = vmatprep.mubr.bf16.mxu0 %v1565
    %2155 = vmatmul.mubr.bf16.gmra.mxu0 %v1564
    %v2156 = vpop.f32.mrf.mxu0
    %v2157 = vadd.f32 %v2117, %v2156
    %v2158 = vpop.f32.mrf.mxu0
    %v2159 = vpop.f32.mrf.mxu0
    %v2160 = vpop.f32.mrf.mxu0
    %2161 = vdwg.mxu0
    %2162 = vmatprep.subr.bf16.mxu0 0
    %2163 = vmatpush1.bf16.msra.mxu0 %v1993
    %2164 = vmatprep.subr.bf16.mxu0 0
    %2165 = vmatpush1.bf16.msra.mxu0 %v1992
    %2166 = vmatprep.subr.bf16.mxu0 0
    %2167 = vmatpush1.bf16.msra.mxu0 %v1991
    %2168 = vmatprep.subr.bf16.mxu0 0
    %2169 = vmatpush1.bf16.msra.mxu0 %v1990
    %2170 = vmatprep.subr.bf16.mxu0 0
    %2171 = vmatpush1.bf16.msra.mxu0 %v1989
    %2172 = vmatprep.subr.bf16.mxu0 0
    %2173 = vmatpush1.bf16.msra.mxu0 %v1988
    %2174 = vmatprep.subr.bf16.mxu0 0
    %2175 = vmatpush1.bf16.msra.mxu0 %v1987
    %2176 = vmatprep.subr.bf16.mxu0 0
    %2177 = vmatpush1.bf16.msra.mxu0 %v1986
    %2178 = vmatprep.subr.bf16.mxu0 0
    %2179 = vmatpush2.bf16.msra.mxu0 %v2001
    %2180 = vmatprep.subr.bf16.mxu0 0
    %2181 = vmatpush2.bf16.msra.mxu0 %v2000
    %2182 = vmatprep.subr.bf16.mxu0 0
    %2183 = vmatpush2.bf16.msra.mxu0 %v1999
    %2184 = vmatprep.subr.bf16.mxu0 0
    %2185 = vmatpush2.bf16.msra.mxu0 %v1998
    %2186 = vmatprep.subr.bf16.mxu0 0
    %2187 = vmatpush2.bf16.msra.mxu0 %v1997
    %2188 = vmatprep.subr.bf16.mxu0 0
    %2189 = vmatpush2.bf16.msra.mxu0 %v1996
    %2190 = vmatprep.subr.bf16.mxu0 0
    %2191 = vmatpush2.bf16.msra.mxu0 %v1995
    %2192 = vmatprep.subr.bf16.mxu0 0
    %2193 = vmatpush2.bf16.msra.mxu0 %v1994
    %2194 = vmatprep.mubr.bf16.mxu0 %v1567
    %2195 = vmatmul.mubr.bf16.gmra.mxu0 %v1566
    %v2196 = vpop.f32.mrf.mxu0
    %v2197 = vadd.f32 %v2157, %v2196
    %v2198 = vpop.f32.mrf.mxu0
    %v2199 = vpop.f32.mrf.mxu0
    %v2200 = vpop.f32.mrf.mxu0
    %2201 = vdwg.mxu0
    %2202 = vmatprep.subr.bf16.mxu0 0
    %2203 = vmatpush1.bf16.msra.mxu0 %v2009
    %2204 = vmatprep.subr.bf16.mxu0 0
    %2205 = vmatpush1.bf16.msra.mxu0 %v2008
    %2206 = vmatprep.subr.bf16.mxu0 0
    %2207 = vmatpush1.bf16.msra.mxu0 %v2007
    %2208 = vmatprep.subr.bf16.mxu0 0
    %2209 = vmatpush1.bf16.msra.mxu0 %v2006
    %2210 = vmatprep.subr.bf16.mxu0 0
    %2211 = vmatpush1.bf16.msra.mxu0 %v2005
    %2212 = vmatprep.subr.bf16.mxu0 0
    %2213 = vmatpush1.bf16.msra.mxu0 %v2004
    %2214 = vmatprep.subr.bf16.mxu0 0
    %2215 = vmatpush1.bf16.msra.mxu0 %v2003
    %2216 = vmatprep.subr.bf16.mxu0 0
    %2217 = vmatpush1.bf16.msra.mxu0 %v2002
    %2218 = vmatprep.subr.bf16.mxu0 0
    %2219 = vmatpush2.bf16.msra.mxu0 %v2017
    %2220 = vmatprep.subr.bf16.mxu0 0
    %2221 = vmatpush2.bf16.msra.mxu0 %v2016
    %2222 = vmatprep.subr.bf16.mxu0 0
    %2223 = vmatpush2.bf16.msra.mxu0 %v2015
    %2224 = vmatprep.subr.bf16.mxu0 0
    %2225 = vmatpush2.bf16.msra.mxu0 %v2014
    %2226 = vmatprep.subr.bf16.mxu0 0
    %2227 = vmatpush2.bf16.msra.mxu0 %v2013
    %2228 = vmatprep.subr.bf16.mxu0 0
    %2229 = vmatpush2.bf16.msra.mxu0 %v2012
    %2230 = vmatprep.subr.bf16.mxu0 0
    %2231 = vmatpush2.bf16.msra.mxu0 %v2011
    %2232 = vmatprep.subr.bf16.mxu0 0
    %2233 = vmatpush2.bf16.msra.mxu0 %v2010
    %2234 = vmatprep.mubr.bf16.mxu0 %v1569
    %2235 = vmatmul.mubr.bf16.gmra.mxu0 %v1568
    %v2236 = vpop.f32.mrf.mxu0
    %v2237 = vadd.f32 %v2197, %v2236
    %v2238 = vpop.f32.mrf.mxu0
    %v2239 = vpop.f32.mrf.mxu0
    %v2240 = vpop.f32.mrf.mxu0
    %2241 = vdwg.mxu0
    %v2370 = vunpack.c.l.b16 %v836
    %v2371 = vunpack.c.l.b16 %v837
    %v2372 = vunpack.c.l.b16 %v838
    %v2373 = vunpack.c.l.b16 %v839
    %v2374 = vunpack.c.l.b16 %v840
    %v2375 = vunpack.c.l.b16 %v841
    %v2376 = vunpack.c.l.b16 %v842
    %v2377 = vunpack.c.l.b16 %v843
    %v2378 = vunpack.c.l.b16 %v844
    %v2379 = vunpack.c.l.b16 %v845
    %v2380 = vunpack.c.l.b16 %v846
    %v2381 = vunpack.c.l.b16 %v847
    %v2382 = vunpack.c.l.b16 %v848
    %v2383 = vunpack.c.l.b16 %v849
    %v2384 = vunpack.c.l.b16 %v850
    %v2385 = vunpack.c.l.b16 %v851
    %v2386 = vunpack.c.l.b16 %v852
    %v2387 = vunpack.c.l.b16 %v853
    %v2388 = vunpack.c.l.b16 %v854
    %v2389 = vunpack.c.l.b16 %v855
    %v2390 = vunpack.c.l.b16 %v856
    %v2391 = vunpack.c.l.b16 %v857
    %v2392 = vunpack.c.l.b16 %v858
    %v2393 = vunpack.c.l.b16 %v859
    %v2394 = vunpack.c.l.b16 %v860
    %v2395 = vunpack.c.l.b16 %v861
    %v2396 = vunpack.c.l.b16 %v862
    %v2397 = vunpack.c.l.b16 %v863
    %v2398 = vunpack.c.l.b16 %v864
    %v2399 = vunpack.c.l.b16 %v865
    %v2400 = vunpack.c.l.b16 %v866
    %v2401 = vunpack.c.l.b16 %v867
    %v2402 = vunpack.c.l.b16 %v868
    %v2403 = vunpack.c.l.b16 %v869
    %v2404 = vunpack.c.l.b16 %v870
    %v2405 = vunpack.c.l.b16 %v871
    %v2406 = vunpack.c.l.b16 %v872
    %v2407 = vunpack.c.l.b16 %v873
    %v2408 = vunpack.c.l.b16 %v874
    %v2409 = vunpack.c.l.b16 %v875
    %v2410 = vunpack.c.l.b16 %v876
    %v2411 = vunpack.c.l.b16 %v877
    %v2412 = vunpack.c.l.b16 %v878
    %v2413 = vunpack.c.l.b16 %v879
    %v2414 = vunpack.c.l.b16 %v880
    %v2415 = vunpack.c.l.b16 %v881
    %v2416 = vunpack.c.l.b16 %v882
    %v2417 = vunpack.c.l.b16 %v883
    %v2418 = vunpack.c.l.b16 %v884
    %v2419 = vunpack.c.l.b16 %v885
    %v2420 = vunpack.c.l.b16 %v886
    %v2421 = vunpack.c.l.b16 %v887
    %v2422 = vunpack.c.l.b16 %v888
    %v2423 = vunpack.c.l.b16 %v889
    %v2424 = vunpack.c.l.b16 %v890
    %v2425 = vunpack.c.l.b16 %v891
    %v2426 = vunpack.c.l.b16 %v892
    %v2427 = vunpack.c.l.b16 %v893
    %v2428 = vunpack.c.l.b16 %v894
    %v2429 = vunpack.c.l.b16 %v895
    %v2430 = vunpack.c.l.b16 %v896
    %v2431 = vunpack.c.l.b16 %v897
    %v2432 = vunpack.c.l.b16 %v898
    %v2433 = vunpack.c.l.b16 %v899
    %v2434 = vunpack.c.l.b16 %v900
    %v2435 = vunpack.c.l.b16 %v901
    %v2436 = vunpack.c.l.b16 %v902
    %v2437 = vunpack.c.l.b16 %v903
    %v2438 = vunpack.c.l.b16 %v904
    %v2439 = vunpack.c.l.b16 %v905
    %v2440 = vunpack.c.l.b16 %v906
    %v2441 = vunpack.c.l.b16 %v907
    %v2442 = vunpack.c.l.b16 %v908
    %v2443 = vunpack.c.l.b16 %v909
    %v2444 = vunpack.c.l.b16 %v910
    %v2445 = vunpack.c.l.b16 %v911
    %v2446 = vunpack.c.l.b16 %v912
    %v2447 = vunpack.c.l.b16 %v913
    %v2448 = vunpack.c.l.b16 %v914
    %v2449 = vunpack.c.l.b16 %v915
    %v2450 = vunpack.c.l.b16 %v916
    %v2451 = vunpack.c.l.b16 %v917
    %v2452 = vunpack.c.l.b16 %v918
    %v2453 = vunpack.c.l.b16 %v919
    %v2454 = vunpack.c.l.b16 %v920
    %v2455 = vunpack.c.l.b16 %v921
    %v2456 = vunpack.c.l.b16 %v922
    %v2457 = vunpack.c.l.b16 %v923
    %v2458 = vunpack.c.l.b16 %v924
    %v2459 = vunpack.c.l.b16 %v925
    %v2460 = vunpack.c.l.b16 %v926
    %v2461 = vunpack.c.l.b16 %v927
    %v2462 = vunpack.c.l.b16 %v928
    %v2463 = vunpack.c.l.b16 %v929
    %v2464 = vunpack.c.l.b16 %v930
    %v2465 = vunpack.c.l.b16 %v931
    %v2466 = vunpack.c.l.b16 %v932
    %v2467 = vunpack.c.l.b16 %v933
    %v2468 = vunpack.c.l.b16 %v934
    %v2469 = vunpack.c.l.b16 %v935
    %v2470 = vunpack.c.l.b16 %v936
    %v2471 = vunpack.c.l.b16 %v937
    %v2472 = vunpack.c.l.b16 %v938
    %v2473 = vunpack.c.l.b16 %v939
    %v2474 = vunpack.c.l.b16 %v940
    %v2475 = vunpack.c.l.b16 %v941
    %v2476 = vunpack.c.l.b16 %v942
    %v2477 = vunpack.c.l.b16 %v943
    %v2478 = vunpack.c.l.b16 %v944
    %v2479 = vunpack.c.l.b16 %v945
    %v2480 = vunpack.c.l.b16 %v946
    %v2481 = vunpack.c.l.b16 %v947
    %v2482 = vunpack.c.l.b16 %v948
    %v2483 = vunpack.c.l.b16 %v949
    %v2484 = vunpack.c.l.b16 %v950
    %v2485 = vunpack.c.l.b16 %v951
    %v2486 = vunpack.c.l.b16 %v952
    %v2487 = vunpack.c.l.b16 %v953
    %v2488 = vunpack.c.l.b16 %v954
    %v2489 = vunpack.c.l.b16 %v955
    %v2490 = vunpack.c.l.b16 %v956
    %v2491 = vunpack.c.l.b16 %v957
    %v2492 = vunpack.c.l.b16 %v958
    %v2493 = vunpack.c.l.b16 %v959
    %v2494 = vunpack.c.l.b16 %v960
    %v2495 = vunpack.c.l.b16 %v961
    %v2496 = vunpack.c.l.b16 %v962
    %v2497 = vunpack.c.l.b16 %v963
    %v2498 = vpack.c.b16 %v2371, %v2370
    %v2499 = vpack.c.b16 %v2373, %v2372
    %v2500 = vpack.c.b16 %v2375, %v2374
    %v2501 = vpack.c.b16 %v2377, %v2376
    %v2502 = vpack.c.b16 %v2379, %v2378
    %v2503 = vpack.c.b16 %v2381, %v2380
    %v2504 = vpack.c.b16 %v2383, %v2382
    %v2505 = vpack.c.b16 %v2385, %v2384
    %v2506 = vpack.c.b16 %v2387, %v2386
    %v2507 = vpack.c.b16 %v2389, %v2388
    %v2508 = vpack.c.b16 %v2391, %v2390
    %v2509 = vpack.c.b16 %v2393, %v2392
    %v2510 = vpack.c.b16 %v2395, %v2394
    %v2511 = vpack.c.b16 %v2397, %v2396
    %v2512 = vpack.c.b16 %v2399, %v2398
    %v2513 = vpack.c.b16 %v2401, %v2400
    %v2514 = vpack.c.b16 %v2403, %v2402
    %v2515 = vpack.c.b16 %v2405, %v2404
    %v2516 = vpack.c.b16 %v2407, %v2406
    %v2517 = vpack.c.b16 %v2409, %v2408
    %v2518 = vpack.c.b16 %v2411, %v2410
    %v2519 = vpack.c.b16 %v2413, %v2412
    %v2520 = vpack.c.b16 %v2415, %v2414
    %v2521 = vpack.c.b16 %v2417, %v2416
    %v2522 = vpack.c.b16 %v2419, %v2418
    %v2523 = vpack.c.b16 %v2421, %v2420
    %v2524 = vpack.c.b16 %v2423, %v2422
    %v2525 = vpack.c.b16 %v2425, %v2424
    %v2526 = vpack.c.b16 %v2427, %v2426
    %v2527 = vpack.c.b16 %v2429, %v2428
    %v2528 = vpack.c.b16 %v2431, %v2430
    %v2529 = vpack.c.b16 %v2433, %v2432
    %v2530 = vpack.c.b16 %v2435, %v2434
    %v2531 = vpack.c.b16 %v2437, %v2436
    %v2532 = vpack.c.b16 %v2439, %v2438
    %v2533 = vpack.c.b16 %v2441, %v2440
    %v2534 = vpack.c.b16 %v2443, %v2442
    %v2535 = vpack.c.b16 %v2445, %v2444
    %v2536 = vpack.c.b16 %v2447, %v2446
    %v2537 = vpack.c.b16 %v2449, %v2448
    %v2538 = vpack.c.b16 %v2451, %v2450
    %v2539 = vpack.c.b16 %v2453, %v2452
    %v2540 = vpack.c.b16 %v2455, %v2454
    %v2541 = vpack.c.b16 %v2457, %v2456
    %v2542 = vpack.c.b16 %v2459, %v2458
    %v2543 = vpack.c.b16 %v2461, %v2460
    %v2544 = vpack.c.b16 %v2463, %v2462
    %v2545 = vpack.c.b16 %v2465, %v2464
    %v2546 = vpack.c.b16 %v2467, %v2466
    %v2547 = vpack.c.b16 %v2469, %v2468
    %v2548 = vpack.c.b16 %v2471, %v2470
    %v2549 = vpack.c.b16 %v2473, %v2472
    %v2550 = vpack.c.b16 %v2475, %v2474
    %v2551 = vpack.c.b16 %v2477, %v2476
    %v2552 = vpack.c.b16 %v2479, %v2478
    %v2553 = vpack.c.b16 %v2481, %v2480
    %v2554 = vpack.c.b16 %v2483, %v2482
    %v2555 = vpack.c.b16 %v2485, %v2484
    %v2556 = vpack.c.b16 %v2487, %v2486
    %v2557 = vpack.c.b16 %v2489, %v2488
    %v2558 = vpack.c.b16 %v2491, %v2490
    %v2559 = vpack.c.b16 %v2493, %v2492
    %v2560 = vpack.c.b16 %v2495, %v2494
    %v2561 = vpack.c.b16 %v2497, %v2496
    %2626 = vmatprep.subr.bf16.mxu0 0
    %2627 = vmatpush1.bf16.msra.mxu0 %v2505
    %2628 = vmatprep.subr.bf16.mxu0 0
    %2629 = vmatpush1.bf16.msra.mxu0 %v2504
    %2630 = vmatprep.subr.bf16.mxu0 0
    %2631 = vmatpush1.bf16.msra.mxu0 %v2503
    %2632 = vmatprep.subr.bf16.mxu0 0
    %2633 = vmatpush1.bf16.msra.mxu0 %v2502
    %2634 = vmatprep.subr.bf16.mxu0 0
    %2635 = vmatpush1.bf16.msra.mxu0 %v2501
    %2636 = vmatprep.subr.bf16.mxu0 0
    %2637 = vmatpush1.bf16.msra.mxu0 %v2500
    %2638 = vmatprep.subr.bf16.mxu0 0
    %2639 = vmatpush1.bf16.msra.mxu0 %v2499
    %2640 = vmatprep.subr.bf16.mxu0 0
    %2641 = vmatpush1.bf16.msra.mxu0 %v2498
    %2642 = vmatprep.subr.bf16.mxu0 0
    %2643 = vmatpush2.bf16.msra.mxu0 %v2513
    %2644 = vmatprep.subr.bf16.mxu0 0
    %2645 = vmatpush2.bf16.msra.mxu0 %v2512
    %2646 = vmatprep.subr.bf16.mxu0 0
    %2647 = vmatpush2.bf16.msra.mxu0 %v2511
    %2648 = vmatprep.subr.bf16.mxu0 0
    %2649 = vmatpush2.bf16.msra.mxu0 %v2510
    %2650 = vmatprep.subr.bf16.mxu0 0
    %2651 = vmatpush2.bf16.msra.mxu0 %v2509
    %2652 = vmatprep.subr.bf16.mxu0 0
    %2653 = vmatpush2.bf16.msra.mxu0 %v2508
    %2654 = vmatprep.subr.bf16.mxu0 0
    %2655 = vmatpush2.bf16.msra.mxu0 %v2507
    %2656 = vmatprep.subr.bf16.mxu0 0
    %2657 = vmatpush2.bf16.msra.mxu0 %v2506
    %2658 = vmatprep.mubr.bf16.mxu0 %v829
    %2659 = vmatmul.mubr.bf16.gmra.mxu0 %v828
    %v2660 = vpop.f32.mrf.mxu0
    %v2661 = vadd.f32 %v2237, %v2660
    %v2662 = vpop.f32.mrf.mxu0
    %v2663 = vpop.f32.mrf.mxu0
    %v2664 = vpop.f32.mrf.mxu0
    %2665 = vdwg.mxu0
    %2666 = vmatprep.subr.bf16.mxu0 0
    %2667 = vmatpush1.bf16.msra.mxu0 %v2521
    %2668 = vmatprep.subr.bf16.mxu0 0
    %2669 = vmatpush1.bf16.msra.mxu0 %v2520
    %2670 = vmatprep.subr.bf16.mxu0 0
    %2671 = vmatpush1.bf16.msra.mxu0 %v2519
    %2672 = vmatprep.subr.bf16.mxu0 0
    %2673 = vmatpush1.bf16.msra.mxu0 %v2518
    %2674 = vmatprep.subr.bf16.mxu0 0
    %2675 = vmatpush1.bf16.msra.mxu0 %v2517
    %2676 = vmatprep.subr.bf16.mxu0 0
    %2677 = vmatpush1.bf16.msra.mxu0 %v2516
    %2678 = vmatprep.subr.bf16.mxu0 0
    %2679 = vmatpush1.bf16.msra.mxu0 %v2515
    %2680 = vmatprep.subr.bf16.mxu0 0
    %2681 = vmatpush1.bf16.msra.mxu0 %v2514
    %2682 = vmatprep.subr.bf16.mxu0 0
    %2683 = vmatpush2.bf16.msra.mxu0 %v2529
    %2684 = vmatprep.subr.bf16.mxu0 0
    %2685 = vmatpush2.bf16.msra.mxu0 %v2528
    %2686 = vmatprep.subr.bf16.mxu0 0
    %2687 = vmatpush2.bf16.msra.mxu0 %v2527
    %2688 = vmatprep.subr.bf16.mxu0 0
    %2689 = vmatpush2.bf16.msra.mxu0 %v2526
    %2690 = vmatprep.subr.bf16.mxu0 0
    %2691 = vmatpush2.bf16.msra.mxu0 %v2525
    %2692 = vmatprep.subr.bf16.mxu0 0
    %2693 = vmatpush2.bf16.msra.mxu0 %v2524
    %2694 = vmatprep.subr.bf16.mxu0 0
    %2695 = vmatpush2.bf16.msra.mxu0 %v2523
    %2696 = vmatprep.subr.bf16.mxu0 0
    %2697 = vmatpush2.bf16.msra.mxu0 %v2522
    %2698 = vmatprep.mubr.bf16.mxu0 %v831
    %2699 = vmatmul.mubr.bf16.gmra.mxu0 %v830
    %v2700 = vpop.f32.mrf.mxu0
    %v2701 = vadd.f32 %v2661, %v2700
    %v2702 = vpop.f32.mrf.mxu0
    %v2703 = vpop.f32.mrf.mxu0
    %v2704 = vpop.f32.mrf.mxu0
    %2705 = vdwg.mxu0
    %2706 = vmatprep.subr.bf16.mxu0 0
    %2707 = vmatpush1.bf16.msra.mxu0 %v2537
    %2708 = vmatprep.subr.bf16.mxu0 0
    %2709 = vmatpush1.bf16.msra.mxu0 %v2536
    %2710 = vmatprep.subr.bf16.mxu0 0
    %2711 = vmatpush1.bf16.msra.mxu0 %v2535
    %2712 = vmatprep.subr.bf16.mxu0 0
    %2713 = vmatpush1.bf16.msra.mxu0 %v2534
    %2714 = vmatprep.subr.bf16.mxu0 0
    %2715 = vmatpush1.bf16.msra.mxu0 %v2533
    %2716 = vmatprep.subr.bf16.mxu0 0
    %2717 = vmatpush1.bf16.msra.mxu0 %v2532
    %2718 = vmatprep.subr.bf16.mxu0 0
    %2719 = vmatpush1.bf16.msra.mxu0 %v2531
    %2720 = vmatprep.subr.bf16.mxu0 0
    %2721 = vmatpush1.bf16.msra.mxu0 %v2530
    %2722 = vmatprep.subr.bf16.mxu0 0
    %2723 = vmatpush2.bf16.msra.mxu0 %v2545
    %2724 = vmatprep.subr.bf16.mxu0 0
    %2725 = vmatpush2.bf16.msra.mxu0 %v2544
    %2726 = vmatprep.subr.bf16.mxu0 0
    %2727 = vmatpush2.bf16.msra.mxu0 %v2543
    %2728 = vmatprep.subr.bf16.mxu0 0
    %2729 = vmatpush2.bf16.msra.mxu0 %v2542
    %2730 = vmatprep.subr.bf16.mxu0 0
    %2731 = vmatpush2.bf16.msra.mxu0 %v2541
    %2732 = vmatprep.subr.bf16.mxu0 0
    %2733 = vmatpush2.bf16.msra.mxu0 %v2540
    %2734 = vmatprep.subr.bf16.mxu0 0
    %2735 = vmatpush2.bf16.msra.mxu0 %v2539
    %2736 = vmatprep.subr.bf16.mxu0 0
    %2737 = vmatpush2.bf16.msra.mxu0 %v2538
    %2738 = vmatprep.mubr.bf16.mxu0 %v833
    %2739 = vmatmul.mubr.bf16.gmra.mxu0 %v832
    %v2740 = vpop.f32.mrf.mxu0
    %v2741 = vadd.f32 %v2701, %v2740
    %v2742 = vpop.f32.mrf.mxu0
    %v2743 = vpop.f32.mrf.mxu0
    %v2744 = vpop.f32.mrf.mxu0
    %2745 = vdwg.mxu0
    %2746 = vmatprep.subr.bf16.mxu0 0
    %2747 = vmatpush1.bf16.msra.mxu0 %v2553
    %2748 = vmatprep.subr.bf16.mxu0 0
    %2749 = vmatpush1.bf16.msra.mxu0 %v2552
    %2750 = vmatprep.subr.bf16.mxu0 0
    %2751 = vmatpush1.bf16.msra.mxu0 %v2551
    %2752 = vmatprep.subr.bf16.mxu0 0
    %2753 = vmatpush1.bf16.msra.mxu0 %v2550
    %2754 = vmatprep.subr.bf16.mxu0 0
    %2755 = vmatpush1.bf16.msra.mxu0 %v2549
    %2756 = vmatprep.subr.bf16.mxu0 0
    %2757 = vmatpush1.bf16.msra.mxu0 %v2548
    %2758 = vmatprep.subr.bf16.mxu0 0
    %2759 = vmatpush1.bf16.msra.mxu0 %v2547
    %2760 = vmatprep.subr.bf16.mxu0 0
    %2761 = vmatpush1.bf16.msra.mxu0 %v2546
    %2762 = vmatprep.subr.bf16.mxu0 0
    %2763 = vmatpush2.bf16.msra.mxu0 %v2561
    %2764 = vmatprep.subr.bf16.mxu0 0
    %2765 = vmatpush2.bf16.msra.mxu0 %v2560
    %2766 = vmatprep.subr.bf16.mxu0 0
    %2767 = vmatpush2.bf16.msra.mxu0 %v2559
    %2768 = vmatprep.subr.bf16.mxu0 0
    %2769 = vmatpush2.bf16.msra.mxu0 %v2558
    %2770 = vmatprep.subr.bf16.mxu0 0
    %2771 = vmatpush2.bf16.msra.mxu0 %v2557
    %2772 = vmatprep.subr.bf16.mxu0 0
    %2773 = vmatpush2.bf16.msra.mxu0 %v2556
    %2774 = vmatprep.subr.bf16.mxu0 0
    %2775 = vmatpush2.bf16.msra.mxu0 %v2555
    %2776 = vmatprep.subr.bf16.mxu0 0
    %2777 = vmatpush2.bf16.msra.mxu0 %v2554
    %2778 = vmatprep.mubr.bf16.mxu0 %v835
    %2779 = vmatmul.mubr.bf16.gmra.mxu0 %v834
    %v2780 = vpop.f32.mrf.mxu0
    %v2781 = vadd.f32 %v2741, %v2780
    %v2782 = vpop.f32.mrf.mxu0
    %v2783 = vpop.f32.mrf.mxu0
    %v2784 = vpop.f32.mrf.mxu0
    %2785 = vdwg.mxu0
    %v2786 = vld [vmem:[%s8] sm:$0x1]
    %v2788 = vlaneseq
    %v2789 = vshrl.u32 %v2788, 7
    %v2790 = vsub.s32 0, %v2789
    %v2791 = vrot.slane %v2786, %v2790
    %v2793 = vadd.f32 %v2781, %v2791
    %v2794 = vadd.f32 %v228, %v2793
    %v2795 = vld [vmem:[%s9] sm:$0x1]
    %v2796 = vld [vmem:[%s10] sm:$0x1]
    %2797 = vadd.xlane.f32.xlu0 %v2794
    %v2798 = vpop.xlane.xlu0 %2797
    %v2799 = vmul.f32 %v2798, %v202
    %v2800 = vsub.f32 %v2794, %v2799
    %v2801 = vsel %vm206, %v2800, 0.0
    %v2802 = vmul.f32 %v2801, %v2801
    %2803 = vadd.xlane.f32.xlu0 %v2802
    %v2804 = vpop.xlane.xlu0 %2803
    %v2805 = vmul.f32 %v2804, %v202
    %v2806 = vadd.f32 %v2805, 1e-05
    %v2807 = vrsqrt.pop %v2806
    %v2808 = vmul.f32 %v2801, %v2807
    %v2810 = vlaneseq
    %v2811 = vshrl.u32 %v2810, 7
    %v2812 = vsub.s32 0, %v2811
    %v2813 = vrot.slane %v2795, %v2812
    %v2815 = vmul.f32 %v2808, %v2813
    %v2817 = vlaneseq
    %v2818 = vshrl.u32 %v2817, 7
    %v2819 = vsub.s32 0, %v2818
    %v2820 = vrot.slane %v2796, %v2819
    %v2822 = vadd.f32 %v2815, %v2820
    %v2823 = vpack.c.bf16 %v2822, %v2822
    %s2824 = scalar_lea.vmem %s1, 64
    %v2825 = vld [vmem:[%s2824] sm:$0xf]
    %v2826 = vld [vmem:[%s2824 + $0x4] sm:$0xf]
    %v2827 = vld [vmem:[%s2824 + $0x8] sm:$0xf]
    %v2828 = vld [vmem:[%s2824 + $0xc] sm:$0xf]
    %v2829 = vld [vmem:[%s2824 + $0x10] sm:$0xf]
    %v2830 = vld [vmem:[%s2824 + $0x14] sm:$0xf]
    %v2831 = vld [vmem:[%s2824 + $0x18] sm:$0xf]
    %v2832 = vld [vmem:[%s2824 + $0x1c] sm:$0xf]
    %v2833 = vld [vmem:[%s2824 + $0x20] sm:$0xf]
    %v2834 = vld [vmem:[%s2824 + $0x24] sm:$0xf]
    %v2835 = vld [vmem:[%s2824 + $0x28] sm:$0xf]
    %v2836 = vld [vmem:[%s2824 + $0x2c] sm:$0xf]
    %v2837 = vld [vmem:[%s2824 + $0x30] sm:$0xf]
    %v2838 = vld [vmem:[%s2824 + $0x34] sm:$0xf]
    %v2839 = vld [vmem:[%s2824 + $0x38] sm:$0xf]
    %v2840 = vld [vmem:[%s2824 + $0x3c] sm:$0xf]
    %s2841 = scalar_lea.vmem %s2, 1
    %v2842 = vld [vmem:[%s2841] sm:$0x1]
    %v2844 = vlaneseq
    %v2845 = vshrl.u32 %v2844, 7
    %v2846 = vsub.s32 0, %v2845
    %v2847 = vrot.slane %v2842, %v2846
    %v2865 = vunpack.c.l.b16 %v2825
    %v2866 = vunpack.c.l.b16 %v2826
    %v2867 = vunpack.c.l.b16 %v2827
    %v2868 = vunpack.c.l.b16 %v2828
    %v2869 = vunpack.c.l.b16 %v2829
    %v2870 = vunpack.c.l.b16 %v2830
    %v2871 = vunpack.c.l.b16 %v2831
    %v2872 = vunpack.c.l.b16 %v2832
    %v2873 = vunpack.c.l.b16 %v2833
    %v2874 = vunpack.c.l.b16 %v2834
    %v2875 = vunpack.c.l.b16 %v2835
    %v2876 = vunpack.c.l.b16 %v2836
    %v2877 = vunpack.c.l.b16 %v2837
    %v2878 = vunpack.c.l.b16 %v2838
    %v2879 = vunpack.c.l.b16 %v2839
    %v2880 = vunpack.c.l.b16 %v2840
    %v2881 = vpack.c.b16 %v2866, %v2865
    %v2882 = vpack.c.b16 %v2868, %v2867
    %v2883 = vpack.c.b16 %v2870, %v2869
    %v2884 = vpack.c.b16 %v2872, %v2871
    %v2885 = vpack.c.b16 %v2874, %v2873
    %v2886 = vpack.c.b16 %v2876, %v2875
    %v2887 = vpack.c.b16 %v2878, %v2877
    %v2888 = vpack.c.b16 %v2880, %v2879
    %2897 = vmatprep.subr.bf16.mxu0 0
    %2898 = vmatpush1.bf16.msra.mxu0 %v2888
    %2899 = vmatprep.subr.bf16.mxu0 0
    %2900 = vmatpush1.bf16.msra.mxu0 %v2887
    %2901 = vmatprep.subr.bf16.mxu0 0
    %2902 = vmatpush1.bf16.msra.mxu0 %v2886
    %2903 = vmatprep.subr.bf16.mxu0 0
    %2904 = vmatpush1.bf16.msra.mxu0 %v2885
    %2905 = vmatprep.subr.bf16.mxu0 0
    %2906 = vmatpush1.bf16.msra.mxu0 %v2884
    %2907 = vmatprep.subr.bf16.mxu0 0
    %2908 = vmatpush1.bf16.msra.mxu0 %v2883
    %2909 = vmatprep.subr.bf16.mxu0 0
    %2910 = vmatpush1.bf16.msra.mxu0 %v2882
    %2911 = vmatprep.subr.bf16.mxu0 0
    %2912 = vmatpush1.bf16.msra.mxu0 %v2881
    %2913 = vmatprep.subr.bf16.mxu0 0
    %2914 = vmatpush2.bf16.msra.mxu0 0
    %2915 = vmatprep.subr.bf16.mxu0 0
    %2916 = vmatpush2.bf16.msra.mxu0 0
    %2917 = vmatprep.subr.bf16.mxu0 0
    %2918 = vmatpush2.bf16.msra.mxu0 0
    %2919 = vmatprep.subr.bf16.mxu0 0
    %2920 = vmatpush2.bf16.msra.mxu0 0
    %2921 = vmatprep.subr.bf16.mxu0 0
    %2922 = vmatpush2.bf16.msra.mxu0 0
    %2923 = vmatprep.subr.bf16.mxu0 0
    %2924 = vmatpush2.bf16.msra.mxu0 0
    %2925 = vmatprep.subr.bf16.mxu0 0
    %2926 = vmatpush2.bf16.msra.mxu0 0
    %2927 = vmatprep.subr.bf16.mxu0 0
    %2928 = vmatpush2.bf16.msra.mxu0 0
    %2929 = vmatprep.mubr.bf16.mxu0 0
    %2930 = vmatmul.mubr.bf16.gmra.mxu0 %v2823
    %v2931 = vpop.f32.mrf.mxu0
    %v2932 = vadd.f32 %v2847, %v2931
    %v2933 = vpop.f32.mrf.mxu0
    %v2934 = vpop.f32.mrf.mxu0
    %v2935 = vpop.f32.mrf.mxu0
    %2936 = vdwg.mxu0
    %v2937 = vadd.f32 %v2822, %v2932
    %s2938 = scalar_lea.vmem %s3, 1
    %v2939 = vld [vmem:[%s2938] sm:$0x1]
    %s2940 = scalar_lea.vmem %s4, 1
    %v2941 = vld [vmem:[%s2940] sm:$0x1]
    %2942 = vadd.xlane.f32.xlu0 %v2937
    %v2943 = vpop.xlane.xlu0 %2942
    %v2944 = vmul.f32 %v2943, %v202
    %v2945 = vsub.f32 %v2937, %v2944
    %v2946 = vsel %vm206, %v2945, 0.0
    %v2947 = vmul.f32 %v2946, %v2946
    %2948 = vadd.xlane.f32.xlu0 %v2947
    %v2949 = vpop.xlane.xlu0 %2948
    %v2950 = vmul.f32 %v2949, %v202
    %v2951 = vadd.f32 %v2950, 1e-05
    %v2952 = vrsqrt.pop %v2951
    %v2953 = vmul.f32 %v2946, %v2952
    %v2955 = vlaneseq
    %v2956 = vshrl.u32 %v2955, 7
    %v2957 = vsub.s32 0, %v2956
    %v2958 = vrot.slane %v2939, %v2957
    %v2960 = vmul.f32 %v2953, %v2958
    %v2962 = vlaneseq
    %v2963 = vshrl.u32 %v2962, 7
    %v2964 = vsub.s32 0, %v2963
    %v2965 = vrot.slane %v2941, %v2964
    %v2967 = vadd.f32 %v2960, %v2965
    %v2968 = vpack.c.bf16 %v2967, %v2967
    %s2969 = scalar_lea.vmem [#allocation3], 1024
    %v2970 = vld [vmem:[%s2969] sm:$0xff]
    %v2971 = vld [vmem:[%s2969 + $0x8] sm:$0xff]
    %v2972 = vld [vmem:[%s2969 + $0x10] sm:$0xff]
    %v2973 = vld [vmem:[%s2969 + $0x18] sm:$0xff]
    %v2974 = vld [vmem:[%s2969 + $0x40] sm:$0xff]
    %v2975 = vld [vmem:[%s2969 + $0x48] sm:$0xff]
    %v2976 = vld [vmem:[%s2969 + $0x50] sm:$0xff]
    %v2977 = vld [vmem:[%s2969 + $0x58] sm:$0xff]
    %v2978 = vld [vmem:[%s2969 + $0x80] sm:$0xff]
    %v2979 = vld [vmem:[%s2969 + $0x88] sm:$0xff]
    %v2980 = vld [vmem:[%s2969 + $0x90] sm:$0xff]
    %v2981 = vld [vmem:[%s2969 + $0x98] sm:$0xff]
    %v2982 = vld [vmem:[%s2969 + $0xc0] sm:$0xff]
    %v2983 = vld [vmem:[%s2969 + $0xc8] sm:$0xff]
    %v2984 = vld [vmem:[%s2969 + $0xd0] sm:$0xff]
    %v2985 = vld [vmem:[%s2969 + $0xd8] sm:$0xff]
    %v2986 = vld [vmem:[%s2969 + $0x100] sm:$0xff]
    %v2987 = vld [vmem:[%s2969 + $0x108] sm:$0xff]
    %v2988 = vld [vmem:[%s2969 + $0x110] sm:$0xff]
    %v2989 = vld [vmem:[%s2969 + $0x118] sm:$0xff]
    %v2990 = vld [vmem:[%s2969 + $0x140] sm:$0xff]
    %v2991 = vld [vmem:[%s2969 + $0x148] sm:$0xff]
    %v2992 = vld [vmem:[%s2969 + $0x150] sm:$0xff]
    %v2993 = vld [vmem:[%s2969 + $0x158] sm:$0xff]
    %v2994 = vld [vmem:[%s2969 + $0x180] sm:$0xff]
    %v2995 = vld [vmem:[%s2969 + $0x188] sm:$0xff]
    %v2996 = vld [vmem:[%s2969 + $0x190] sm:$0xff]
    %v2997 = vld [vmem:[%s2969 + $0x198] sm:$0xff]
    %v2998 = vld [vmem:[%s2969 + $0x1c0] sm:$0xff]
    %v2999 = vld [vmem:[%s2969 + $0x1c8] sm:$0xff]
    %v3000 = vld [vmem:[%s2969 + $0x1d0] sm:$0xff]
    %v3001 = vld [vmem:[%s2969 + $0x1d8] sm:$0xff]
    %v3002 = vld [vmem:[%s2969 + $0x200] sm:$0xff]
    %v3003 = vld [vmem:[%s2969 + $0x208] sm:$0xff]
    %v3004 = vld [vmem:[%s2969 + $0x210] sm:$0xff]
    %v3005 = vld [vmem:[%s2969 + $0x218] sm:$0xff]
    %v3006 = vld [vmem:[%s2969 + $0x240] sm:$0xff]
    %v3007 = vld [vmem:[%s2969 + $0x248] sm:$0xff]
    %v3008 = vld [vmem:[%s2969 + $0x250] sm:$0xff]
    %v3009 = vld [vmem:[%s2969 + $0x258] sm:$0xff]
    %v3010 = vld [vmem:[%s2969 + $0x280] sm:$0xff]
    %v3011 = vld [vmem:[%s2969 + $0x288] sm:$0xff]
    %v3012 = vld [vmem:[%s2969 + $0x290] sm:$0xff]
    %v3013 = vld [vmem:[%s2969 + $0x298] sm:$0xff]
    %v3014 = vld [vmem:[%s2969 + $0x2c0] sm:$0xff]
    %v3015 = vld [vmem:[%s2969 + $0x2c8] sm:$0xff]
    %v3016 = vld [vmem:[%s2969 + $0x2d0] sm:$0xff]
    %v3017 = vld [vmem:[%s2969 + $0x2d8] sm:$0xff]
    %v3018 = vld [vmem:[%s2969 + $0x300] sm:$0xff]
    %v3019 = vld [vmem:[%s2969 + $0x308] sm:$0xff]
    %v3020 = vld [vmem:[%s2969 + $0x310] sm:$0xff]
    %v3021 = vld [vmem:[%s2969 + $0x318] sm:$0xff]
    %v3022 = vld [vmem:[%s2969 + $0x340] sm:$0xff]
    %v3023 = vld [vmem:[%s2969 + $0x348] sm:$0xff]
    %v3024 = vld [vmem:[%s2969 + $0x350] sm:$0xff]
    %v3025 = vld [vmem:[%s2969 + $0x358] sm:$0xff]
    %v3026 = vld [vmem:[%s2969 + $0x380] sm:$0xff]
    %v3027 = vld [vmem:[%s2969 + $0x388] sm:$0xff]
    %v3028 = vld [vmem:[%s2969 + $0x390] sm:$0xff]
    %v3029 = vld [vmem:[%s2969 + $0x398] sm:$0xff]
    %v3030 = vld [vmem:[%s2969 + $0x3c0] sm:$0xff]
    %v3031 = vld [vmem:[%s2969 + $0x3c8] sm:$0xff]
    %v3032 = vld [vmem:[%s2969 + $0x3d0] sm:$0xff]
    %v3033 = vld [vmem:[%s2969 + $0x3d8] sm:$0xff]
    %s3034 = scalar_lea.vmem %s6, 16
    %v3035 = vld [vmem:[%s3034] sm:$0xff]
    %v3037 = vlaneseq
    %v3038 = vshrl.u32 %v3037, 7
    %v3039 = vsub.s32 0, %v3038
    %v3040 = vrot.slane %v3035, %v3039
    %v3041 = vlaneseq
    %v3042 = vshrl.u32 %v3041, 7
    %v3043 = vsub.s32 1, %v3042
    %v3044 = vrot.slane %v3035, %v3043
    %v3045 = vlaneseq
    %v3046 = vshrl.u32 %v3045, 7
    %v3047 = vsub.s32 2, %v3046
    %v3048 = vrot.slane %v3035, %v3047
    %v3049 = vlaneseq
    %v3050 = vshrl.u32 %v3049, 7
    %v3051 = vsub.s32 3, %v3050
    %v3052 = vrot.slane %v3035, %v3051
    %v3053 = vlaneseq
    %v3054 = vshrl.u32 %v3053, 7
    %v3055 = vsub.s32 4, %v3054
    %v3056 = vrot.slane %v3035, %v3055
    %v3057 = vlaneseq
    %v3058 = vshrl.u32 %v3057, 7
    %v3059 = vsub.s32 5, %v3058
    %v3060 = vrot.slane %v3035, %v3059
    %v3061 = vlaneseq
    %v3062 = vshrl.u32 %v3061, 7
    %v3063 = vsub.s32 6, %v3062
    %v3064 = vrot.slane %v3035, %v3063
    %v3065 = vlaneseq
    %v3066 = vshrl.u32 %v3065, 7
    %v3067 = vsub.s32 7, %v3066
    %v3068 = vrot.slane %v3035, %v3067
    %v3141 = vunpack.c.l.b16 %v2970
    %v3142 = vunpack.c.h.b16 %v2970
    %v3143 = vunpack.c.l.b16 %v2971
    %v3144 = vunpack.c.h.b16 %v2971
    %v3145 = vunpack.c.l.b16 %v2972
    %v3146 = vunpack.c.h.b16 %v2972
    %v3147 = vunpack.c.l.b16 %v2973
    %v3148 = vunpack.c.h.b16 %v2973
    %v3149 = vunpack.c.l.b16 %v2974
    %v3150 = vunpack.c.h.b16 %v2974
    %v3151 = vunpack.c.l.b16 %v2975
    %v3152 = vunpack.c.h.b16 %v2975
    %v3153 = vunpack.c.l.b16 %v2976
    %v3154 = vunpack.c.h.b16 %v2976
    %v3155 = vunpack.c.l.b16 %v2977
    %v3156 = vunpack.c.h.b16 %v2977
    %v3157 = vunpack.c.l.b16 %v2978
    %v3158 = vunpack.c.h.b16 %v2978
    %v3159 = vunpack.c.l.b16 %v2979
    %v3160 = vunpack.c.h.b16 %v2979
    %v3161 = vunpack.c.l.b16 %v2980
    %v3162 = vunpack.c.h.b16 %v2980
    %v3163 = vunpack.c.l.b16 %v2981
    %v3164 = vunpack.c.h.b16 %v2981
    %v3165 = vunpack.c.l.b16 %v2982
    %v3166 = vunpack.c.h.b16 %v2982
    %v3167 = vunpack.c.l.b16 %v2983
    %v3168 = vunpack.c.h.b16 %v2983
    %v3169 = vunpack.c.l.b16 %v2984
    %v3170 = vunpack.c.h.b16 %v2984
    %v3171 = vunpack.c.l.b16 %v2985
    %v3172 = vunpack.c.h.b16 %v2985
    %v3173 = vunpack.c.l.b16 %v2986
    %v3174 = vunpack.c.h.b16 %v2986
    %v3175 = vunpack.c.l.b16 %v2987
    %v3176 = vunpack.c.h.b16 %v2987
    %v3177 = vunpack.c.l.b16 %v2988
    %v3178 = vunpack.c.h.b16 %v2988
    %v3179 = vunpack.c.l.b16 %v2989
    %v3180 = vunpack.c.h.b16 %v2989
    %v3181 = vunpack.c.l.b16 %v2990
    %v3182 = vunpack.c.h.b16 %v2990
    %v3183 = vunpack.c.l.b16 %v2991
    %v3184 = vunpack.c.h.b16 %v2991
    %v3185 = vunpack.c.l.b16 %v2992
    %v3186 = vunpack.c.h.b16 %v2992
    %v3187 = vunpack.c.l.b16 %v2993
    %v3188 = vunpack.c.h.b16 %v2993
    %v3189 = vunpack.c.l.b16 %v2994
    %v3190 = vunpack.c.h.b16 %v2994
    %v3191 = vunpack.c.l.b16 %v2995
    %v3192 = vunpack.c.h.b16 %v2995
    %v3193 = vunpack.c.l.b16 %v2996
    %v3194 = vunpack.c.h.b16 %v2996
    %v3195 = vunpack.c.l.b16 %v2997
    %v3196 = vunpack.c.h.b16 %v2997
    %v3197 = vunpack.c.l.b16 %v2998
    %v3198 = vunpack.c.h.b16 %v2998
    %v3199 = vunpack.c.l.b16 %v2999
    %v3200 = vunpack.c.h.b16 %v2999
    %v3201 = vunpack.c.l.b16 %v3000
    %v3202 = vunpack.c.h.b16 %v3000
    %v3203 = vunpack.c.l.b16 %v3001
    %v3204 = vunpack.c.h.b16 %v3001
    %v3205 = vunpack.c.l.b16 %v3002
    %v3206 = vunpack.c.h.b16 %v3002
    %v3207 = vunpack.c.l.b16 %v3003
    %v3208 = vunpack.c.h.b16 %v3003
    %v3209 = vunpack.c.l.b16 %v3004
    %v3210 = vunpack.c.h.b16 %v3004
    %v3211 = vunpack.c.l.b16 %v3005
    %v3212 = vunpack.c.h.b16 %v3005
    %v3213 = vunpack.c.l.b16 %v3006
    %v3214 = vunpack.c.h.b16 %v3006
    %v3215 = vunpack.c.l.b16 %v3007
    %v3216 = vunpack.c.h.b16 %v3007
    %v3217 = vunpack.c.l.b16 %v3008
    %v3218 = vunpack.c.h.b16 %v3008
    %v3219 = vunpack.c.l.b16 %v3009
    %v3220 = vunpack.c.h.b16 %v3009
    %v3221 = vunpack.c.l.b16 %v3010
    %v3222 = vunpack.c.h.b16 %v3010
    %v3223 = vunpack.c.l.b16 %v3011
    %v3224 = vunpack.c.h.b16 %v3011
    %v3225 = vunpack.c.l.b16 %v3012
    %v3226 = vunpack.c.h.b16 %v3012
    %v3227 = vunpack.c.l.b16 %v3013
    %v3228 = vunpack.c.h.b16 %v3013
    %v3229 = vunpack.c.l.b16 %v3014
    %v3230 = vunpack.c.h.b16 %v3014
    %v3231 = vunpack.c.l.b16 %v3015
    %v3232 = vunpack.c.h.b16 %v3015
    %v3233 = vunpack.c.l.b16 %v3016
    %v3234 = vunpack.c.h.b16 %v3016
    %v3235 = vunpack.c.l.b16 %v3017
    %v3236 = vunpack.c.h.b16 %v3017
    %v3237 = vunpack.c.l.b16 %v3018
    %v3238 = vunpack.c.h.b16 %v3018
    %v3239 = vunpack.c.l.b16 %v3019
    %v3240 = vunpack.c.h.b16 %v3019
    %v3241 = vunpack.c.l.b16 %v3020
    %v3242 = vunpack.c.h.b16 %v3020
    %v3243 = vunpack.c.l.b16 %v3021
    %v3244 = vunpack.c.h.b16 %v3021
    %v3245 = vunpack.c.l.b16 %v3022
    %v3246 = vunpack.c.h.b16 %v3022
    %v3247 = vunpack.c.l.b16 %v3023
    %v3248 = vunpack.c.h.b16 %v3023
    %v3249 = vunpack.c.l.b16 %v3024
    %v3250 = vunpack.c.h.b16 %v3024
    %v3251 = vunpack.c.l.b16 %v3025
    %v3252 = vunpack.c.h.b16 %v3025
    %v3253 = vunpack.c.l.b16 %v3026
    %v3254 = vunpack.c.h.b16 %v3026
    %v3255 = vunpack.c.l.b16 %v3027
    %v3256 = vunpack.c.h.b16 %v3027
    %v3257 = vunpack.c.l.b16 %v3028
    %v3258 = vunpack.c.h.b16 %v3028
    %v3259 = vunpack.c.l.b16 %v3029
    %v3260 = vunpack.c.h.b16 %v3029
    %v3261 = vunpack.c.l.b16 %v3030
    %v3262 = vunpack.c.h.b16 %v3030
    %v3263 = vunpack.c.l.b16 %v3031
    %v3264 = vunpack.c.h.b16 %v3031
    %v3265 = vunpack.c.l.b16 %v3032
    %v3266 = vunpack.c.h.b16 %v3032
    %v3267 = vunpack.c.l.b16 %v3033
    %v3268 = vunpack.c.h.b16 %v3033
    %v3269 = vpack.c.b16 %v3149, %v3141
    %v3270 = vpack.c.b16 %v3150, %v3142
    %v3271 = vpack.c.b16 %v3151, %v3143
    %v3272 = vpack.c.b16 %v3152, %v3144
    %v3273 = vpack.c.b16 %v3153, %v3145
    %v3274 = vpack.c.b16 %v3154, %v3146
    %v3275 = vpack.c.b16 %v3155, %v3147
    %v3276 = vpack.c.b16 %v3156, %v3148
    %v3277 = vpack.c.b16 %v3165, %v3157
    %v3278 = vpack.c.b16 %v3166, %v3158
    %v3279 = vpack.c.b16 %v3167, %v3159
    %v3280 = vpack.c.b16 %v3168, %v3160
    %v3281 = vpack.c.b16 %v3169, %v3161
    %v3282 = vpack.c.b16 %v3170, %v3162
    %v3283 = vpack.c.b16 %v3171, %v3163
    %v3284 = vpack.c.b16 %v3172, %v3164
    %v3285 = vpack.c.b16 %v3181, %v3173
    %v3286 = vpack.c.b16 %v3182, %v3174
    %v3287 = vpack.c.b16 %v3183, %v3175
    %v3288 = vpack.c.b16 %v3184, %v3176
    %v3289 = vpack.c.b16 %v3185, %v3177
    %v3290 = vpack.c.b16 %v3186, %v3178
    %v3291 = vpack.c.b16 %v3187, %v3179
    %v3292 = vpack.c.b16 %v3188, %v3180
    %v3293 = vpack.c.b16 %v3197, %v3189
    %v3294 = vpack.c.b16 %v3198, %v3190
    %v3295 = vpack.c.b16 %v3199, %v3191
    %v3296 = vpack.c.b16 %v3200, %v3192
    %v3297 = vpack.c.b16 %v3201, %v3193
    %v3298 = vpack.c.b16 %v3202, %v3194
    %v3299 = vpack.c.b16 %v3203, %v3195
    %v3300 = vpack.c.b16 %v3204, %v3196
    %v3301 = vpack.c.b16 %v3213, %v3205
    %v3302 = vpack.c.b16 %v3214, %v3206
    %v3303 = vpack.c.b16 %v3215, %v3207
    %v3304 = vpack.c.b16 %v3216, %v3208
    %v3305 = vpack.c.b16 %v3217, %v3209
    %v3306 = vpack.c.b16 %v3218, %v3210
    %v3307 = vpack.c.b16 %v3219, %v3211
    %v3308 = vpack.c.b16 %v3220, %v3212
    %v3309 = vpack.c.b16 %v3229, %v3221
    %v3310 = vpack.c.b16 %v3230, %v3222
    %v3311 = vpack.c.b16 %v3231, %v3223
    %v3312 = vpack.c.b16 %v3232, %v3224
    %v3313 = vpack.c.b16 %v3233, %v3225
    %v3314 = vpack.c.b16 %v3234, %v3226
    %v3315 = vpack.c.b16 %v3235, %v3227
    %v3316 = vpack.c.b16 %v3236, %v3228
    %v3317 = vpack.c.b16 %v3245, %v3237
    %v3318 = vpack.c.b16 %v3246, %v3238
    %v3319 = vpack.c.b16 %v3247, %v3239
    %v3320 = vpack.c.b16 %v3248, %v3240
    %v3321 = vpack.c.b16 %v3249, %v3241
    %v3322 = vpack.c.b16 %v3250, %v3242
    %v3323 = vpack.c.b16 %v3251, %v3243
    %v3324 = vpack.c.b16 %v3252, %v3244
    %v3325 = vpack.c.b16 %v3261, %v3253
    %v3326 = vpack.c.b16 %v3262, %v3254
    %v3327 = vpack.c.b16 %v3263, %v3255
    %v3328 = vpack.c.b16 %v3264, %v3256
    %v3329 = vpack.c.b16 %v3265, %v3257
    %v3330 = vpack.c.b16 %v3266, %v3258
    %v3331 = vpack.c.b16 %v3267, %v3259
    %v3332 = vpack.c.b16 %v3268, %v3260
    %3397 = vmatprep.subr.bf16.mxu0 %v3326
    %3398 = vmatpush1.bf16.msra.mxu0 %v3325
    %3399 = vmatprep.subr.bf16.mxu0 %v3318
    %3400 = vmatpush1.bf16.msra.mxu0 %v3317
    %3401 = vmatprep.subr.bf16.mxu0 %v3310
    %3402 = vmatpush1.bf16.msra.mxu0 %v3309
    %3403 = vmatprep.subr.bf16.mxu0 %v3302
    %3404 = vmatpush1.bf16.msra.mxu0 %v3301
    %3405 = vmatprep.subr.bf16.mxu0 %v3294
    %3406 = vmatpush1.bf16.msra.mxu0 %v3293
    %3407 = vmatprep.subr.bf16.mxu0 %v3286
    %3408 = vmatpush1.bf16.msra.mxu0 %v3285
    %3409 = vmatprep.subr.bf16.mxu0 %v3278
    %3410 = vmatpush1.bf16.msra.mxu0 %v3277
    %3411 = vmatprep.subr.bf16.mxu0 %v3270
    %3412 = vmatpush1.bf16.msra.mxu0 %v3269
    %3413 = vmatprep.subr.bf16.mxu0 0
    %3414 = vmatpush2.bf16.msra.mxu0 0
    %3415 = vmatprep.subr.bf16.mxu0 0
    %3416 = vmatpush2.bf16.msra.mxu0 0
    %3417 = vmatprep.subr.bf16.mxu0 0
    %3418 = vmatpush2.bf16.msra.mxu0 0
    %3419 = vmatprep.subr.bf16.mxu0 0
    %3420 = vmatpush2.bf16.msra.mxu0 0
    %3421 = vmatprep.subr.bf16.mxu0 0
    %3422 = vmatpush2.bf16.msra.mxu0 0
    %3423 = vmatprep.subr.bf16.mxu0 0
    %3424 = vmatpush2.bf16.msra.mxu0 0
    %3425 = vmatprep.subr.bf16.mxu0 0
    %3426 = vmatpush2.bf16.msra.mxu0 0
    %3427 = vmatprep.subr.bf16.mxu0 0
    %3428 = vmatpush2.bf16.msra.mxu0 0
    %3429 = vmatprep.mubr.bf16.mxu0 0
    %3430 = vmatmul.mubr.bf16.gmra.mxu0 %v2968
    %v3431 = vpop.f32.mrf.mxu0
    %v3432 = vadd.f32 %v3040, %v3431
    %v3433 = vpop.f32.mrf.mxu0
    %v3434 = vadd.f32 %v3044, %v3433
    %v3435 = vpop.f32.mrf.mxu0
    %v3436 = vpop.f32.mrf.mxu0
    %3437 = vdwg.mxu0
    %3438 = vmatprep.subr.bf16.mxu0 %v3328
    %3439 = vmatpush1.bf16.msra.mxu0 %v3327
    %3440 = vmatprep.subr.bf16.mxu0 %v3320
    %3441 = vmatpush1.bf16.msra.mxu0 %v3319
    %3442 = vmatprep.subr.bf16.mxu0 %v3312
    %3443 = vmatpush1.bf16.msra.mxu0 %v3311
    %3444 = vmatprep.subr.bf16.mxu0 %v3304
    %3445 = vmatpush1.bf16.msra.mxu0 %v3303
    %3446 = vmatprep.subr.bf16.mxu0 %v3296
    %3447 = vmatpush1.bf16.msra.mxu0 %v3295
    %3448 = vmatprep.subr.bf16.mxu0 %v3288
    %3449 = vmatpush1.bf16.msra.mxu0 %v3287
    %3450 = vmatprep.subr.bf16.mxu0 %v3280
    %3451 = vmatpush1.bf16.msra.mxu0 %v3279
    %3452 = vmatprep.subr.bf16.mxu0 %v3272
    %3453 = vmatpush1.bf16.msra.mxu0 %v3271
    %3454 = vmatprep.subr.bf16.mxu0 0
    %3455 = vmatpush2.bf16.msra.mxu0 0
    %3456 = vmatprep.subr.bf16.mxu0 0
    %3457 = vmatpush2.bf16.msra.mxu0 0
    %3458 = vmatprep.subr.bf16.mxu0 0
    %3459 = vmatpush2.bf16.msra.mxu0 0
    %3460 = vmatprep.subr.bf16.mxu0 0
    %3461 = vmatpush2.bf16.msra.mxu0 0
    %3462 = vmatprep.subr.bf16.mxu0 0
    %3463 = vmatpush2.bf16.msra.mxu0 0
    %3464 = vmatprep.subr.bf16.mxu0 0
    %3465 = vmatpush2.bf16.msra.mxu0 0
    %3466 = vmatprep.subr.bf16.mxu0 0
    %3467 = vmatpush2.bf16.msra.mxu0 0
    %3468 = vmatprep.subr.bf16.mxu0 0
    %3469 = vmatpush2.bf16.msra.mxu0 0
    %3470 = vmatprep.mubr.bf16.mxu0 0
    %3471 = vmatmul.mubr.bf16.gmra.mxu0 %v2968
    %v3472 = vpop.f32.mrf.mxu0
    %v3473 = vadd.f32 %v3048, %v3472
    %v3474 = vpop.f32.mrf.mxu0
    %v3475 = vadd.f32 %v3052, %v3474
    %v3476 = vpop.f32.mrf.mxu0
    %v3477 = vpop.f32.mrf.mxu0
    %3478 = vdwg.mxu0
    %3479 = vmatprep.subr.bf16.mxu0 %v3330
    %3480 = vmatpush1.bf16.msra.mxu0 %v3329
    %3481 = vmatprep.subr.bf16.mxu0 %v3322
    %3482 = vmatpush1.bf16.msra.mxu0 %v3321
    %3483 = vmatprep.subr.bf16.mxu0 %v3314
    %3484 = vmatpush1.bf16.msra.mxu0 %v3313
    %3485 = vmatprep.subr.bf16.mxu0 %v3306
    %3486 = vmatpush1.bf16.msra.mxu0 %v3305
    %3487 = vmatprep.subr.bf16.mxu0 %v3298
    %3488 = vmatpush1.bf16.msra.mxu0 %v3297
    %3489 = vmatprep.subr.bf16.mxu0 %v3290
    %3490 = vmatpush1.bf16.msra.mxu0 %v3289
    %3491 = vmatprep.subr.bf16.mxu0 %v3282
    %3492 = vmatpush1.bf16.msra.mxu0 %v3281
    %3493 = vmatprep.subr.bf16.mxu0 %v3274
    %3494 = vmatpush1.bf16.msra.mxu0 %v3273
    %3495 = vmatprep.subr.bf16.mxu0 0
    %3496 = vmatpush2.bf16.msra.mxu0 0
    %3497 = vmatprep.subr.bf16.mxu0 0
    %3498 = vmatpush2.bf16.msra.mxu0 0
    %3499 = vmatprep.subr.bf16.mxu0 0
    %3500 = vmatpush2.bf16.msra.mxu0 0
    %3501 = vmatprep.subr.bf16.mxu0 0
    %3502 = vmatpush2.bf16.msra.mxu0 0
    %3503 = vmatprep.subr.bf16.mxu0 0
    %3504 = vmatpush2.bf16.msra.mxu0 0
    %3505 = vmatprep.subr.bf16.mxu0 0
    %3506 = vmatpush2.bf16.msra.mxu0 0
    %3507 = vmatprep.subr.bf16.mxu0 0
    %3508 = vmatpush2.bf16.msra.mxu0 0
    %3509 = vmatprep.subr.bf16.mxu0 0
    %3510 = vmatpush2.bf16.msra.mxu0 0
    %3511 = vmatprep.mubr.bf16.mxu0 0
    %3512 = vmatmul.mubr.bf16.gmra.mxu0 %v2968
    %v3513 = vpop.f32.mrf.mxu0
    %v3514 = vadd.f32 %v3056, %v3513
    %v3515 = vpop.f32.mrf.mxu0
    %v3516 = vadd.f32 %v3060, %v3515
    %v3517 = vpop.f32.mrf.mxu0
    %v3518 = vpop.f32.mrf.mxu0
    %3519 = vdwg.mxu0
    %3520 = vmatprep.subr.bf16.mxu0 %v3332
    %3521 = vmatpush1.bf16.msra.mxu0 %v3331
    %3522 = vmatprep.subr.bf16.mxu0 %v3324
    %3523 = vmatpush1.bf16.msra.mxu0 %v3323
    %3524 = vmatprep.subr.bf16.mxu0 %v3316
    %3525 = vmatpush1.bf16.msra.mxu0 %v3315
    %3526 = vmatprep.subr.bf16.mxu0 %v3308
    %3527 = vmatpush1.bf16.msra.mxu0 %v3307
    %3528 = vmatprep.subr.bf16.mxu0 %v3300
    %3529 = vmatpush1.bf16.msra.mxu0 %v3299
    %3530 = vmatprep.subr.bf16.mxu0 %v3292
    %3531 = vmatpush1.bf16.msra.mxu0 %v3291
    %3532 = vmatprep.subr.bf16.mxu0 %v3284
    %3533 = vmatpush1.bf16.msra.mxu0 %v3283
    %3534 = vmatprep.subr.bf16.mxu0 %v3276
    %3535 = vmatpush1.bf16.msra.mxu0 %v3275
    %3536 = vmatprep.subr.bf16.mxu0 0
    %3537 = vmatpush2.bf16.msra.mxu0 0
    %3538 = vmatprep.subr.bf16.mxu0 0
    %3539 = vmatpush2.bf16.msra.mxu0 0
    %3540 = vmatprep.subr.bf16.mxu0 0
    %3541 = vmatpush2.bf16.msra.mxu0 0
    %3542 = vmatprep.subr.bf16.mxu0 0
    %3543 = vmatpush2.bf16.msra.mxu0 0
    %3544 = vmatprep.subr.bf16.mxu0 0
    %3545 = vmatpush2.bf16.msra.mxu0 0
    %3546 = vmatprep.subr.bf16.mxu0 0
    %3547 = vmatpush2.bf16.msra.mxu0 0
    %3548 = vmatprep.subr.bf16.mxu0 0
    %3549 = vmatpush2.bf16.msra.mxu0 0
    %3550 = vmatprep.subr.bf16.mxu0 0
    %3551 = vmatpush2.bf16.msra.mxu0 0
    %3552 = vmatprep.mubr.bf16.mxu0 0
    %3553 = vmatmul.mubr.bf16.gmra.mxu0 %v2968
    %v3554 = vpop.f32.mrf.mxu0
    %v3555 = vadd.f32 %v3064, %v3554
    %v3556 = vpop.f32.mrf.mxu0
    %v3557 = vadd.f32 %v3068, %v3556
    %v3558 = vpop.f32.mrf.mxu0
    %v3559 = vpop.f32.mrf.mxu0
    %3560 = vdwg.mxu0
    %v3561 = vmax.f32 %v3432, 0.0
    %v3562 = vmax.f32 %v3434, 0.0
    %v3563 = vmax.f32 %v3473, 0.0
    %v3564 = vmax.f32 %v3475, 0.0
    %v3565 = vmax.f32 %v3514, 0.0
    %v3566 = vmax.f32 %v3516, 0.0
    %v3567 = vmax.f32 %v3555, 0.0
    %v3568 = vmax.f32 %v3557, 0.0
    %v3569 = vpack.c.bf16 %v3561, %v3561
    %v3570 = vpack.c.bf16 %v3562, %v3562
    %v3571 = vpack.c.bf16 %v3563, %v3563
    %v3572 = vpack.c.bf16 %v3564, %v3564
    %v3573 = vpack.c.bf16 %v3565, %v3565
    %v3574 = vpack.c.bf16 %v3566, %v3566
    %v3575 = vpack.c.bf16 %v3567, %v3567
    %v3576 = vpack.c.bf16 %v3568, %v3568
    %s3577 = scalar_lea.vmem [#allocation5], 1024
    %v3578 = vld [vmem:[%s3577] sm:$0xf]
    %v3579 = vld [vmem:[%s3577 + $0x4] sm:$0xf]
    %v3580 = vld [vmem:[%s3577 + $0x8] sm:$0xf]
    %v3581 = vld [vmem:[%s3577 + $0xc] sm:$0xf]
    %v3582 = vld [vmem:[%s3577 + $0x10] sm:$0xf]
    %v3583 = vld [vmem:[%s3577 + $0x14] sm:$0xf]
    %v3584 = vld [vmem:[%s3577 + $0x18] sm:$0xf]
    %v3585 = vld [vmem:[%s3577 + $0x1c] sm:$0xf]
    %v3586 = vld [vmem:[%s3577 + $0x20] sm:$0xf]
    %v3587 = vld [vmem:[%s3577 + $0x24] sm:$0xf]
    %v3588 = vld [vmem:[%s3577 + $0x28] sm:$0xf]
    %v3589 = vld [vmem:[%s3577 + $0x2c] sm:$0xf]
    %v3590 = vld [vmem:[%s3577 + $0x30] sm:$0xf]
    %v3591 = vld [vmem:[%s3577 + $0x34] sm:$0xf]
    %v3592 = vld [vmem:[%s3577 + $0x38] sm:$0xf]
    %v3593 = vld [vmem:[%s3577 + $0x3c] sm:$0xf]
    %v3594 = vld [vmem:[%s3577 + $0x40] sm:$0xf]
    %v3595 = vld [vmem:[%s3577 + $0x44] sm:$0xf]
    %v3596 = vld [vmem:[%s3577 + $0x48] sm:$0xf]
    %v3597 = vld [vmem:[%s3577 + $0x4c] sm:$0xf]
    %v3598 = vld [vmem:[%s3577 + $0x50] sm:$0xf]
    %v3599 = vld [vmem:[%s3577 + $0x54] sm:$0xf]
    %v3600 = vld [vmem:[%s3577 + $0x58] sm:$0xf]
    %v3601 = vld [vmem:[%s3577 + $0x5c] sm:$0xf]
    %v3602 = vld [vmem:[%s3577 + $0x60] sm:$0xf]
    %v3603 = vld [vmem:[%s3577 + $0x64] sm:$0xf]
    %v3604 = vld [vmem:[%s3577 + $0x68] sm:$0xf]
    %v3605 = vld [vmem:[%s3577 + $0x6c] sm:$0xf]
    %v3606 = vld [vmem:[%s3577 + $0x70] sm:$0xf]
    %v3607 = vld [vmem:[%s3577 + $0x74] sm:$0xf]
    %v3608 = vld [vmem:[%s3577 + $0x78] sm:$0xf]
    %v3609 = vld [vmem:[%s3577 + $0x7c] sm:$0xf]
    %v3610 = vld [vmem:[%s3577 + $0x80] sm:$0xf]
    %v3611 = vld [vmem:[%s3577 + $0x84] sm:$0xf]
    %v3612 = vld [vmem:[%s3577 + $0x88] sm:$0xf]
    %v3613 = vld [vmem:[%s3577 + $0x8c] sm:$0xf]
    %v3614 = vld [vmem:[%s3577 + $0x90] sm:$0xf]
    %v3615 = vld [vmem:[%s3577 + $0x94] sm:$0xf]
    %v3616 = vld [vmem:[%s3577 + $0x98] sm:$0xf]
    %v3617 = vld [vmem:[%s3577 + $0x9c] sm:$0xf]
    %v3618 = vld [vmem:[%s3577 + $0xa0] sm:$0xf]
    %v3619 = vld [vmem:[%s3577 + $0xa4] sm:$0xf]
    %v3620 = vld [vmem:[%s3577 + $0xa8] sm:$0xf]
    %v3621 = vld [vmem:[%s3577 + $0xac] sm:$0xf]
    %v3622 = vld [vmem:[%s3577 + $0xb0] sm:$0xf]
    %v3623 = vld [vmem:[%s3577 + $0xb4] sm:$0xf]
    %v3624 = vld [vmem:[%s3577 + $0xb8] sm:$0xf]
    %v3625 = vld [vmem:[%s3577 + $0xbc] sm:$0xf]
    %v3626 = vld [vmem:[%s3577 + $0xc0] sm:$0xf]
    %v3627 = vld [vmem:[%s3577 + $0xc4] sm:$0xf]
    %v3628 = vld [vmem:[%s3577 + $0xc8] sm:$0xf]
    %v3629 = vld [vmem:[%s3577 + $0xcc] sm:$0xf]
    %v3630 = vld [vmem:[%s3577 + $0xd0] sm:$0xf]
    %v3631 = vld [vmem:[%s3577 + $0xd4] sm:$0xf]
    %v3632 = vld [vmem:[%s3577 + $0xd8] sm:$0xf]
    %v3633 = vld [vmem:[%s3577 + $0xdc] sm:$0xf]
    %v3634 = vld [vmem:[%s3577 + $0xe0] sm:$0xf]
    %v3635 = vld [vmem:[%s3577 + $0xe4] sm:$0xf]
    %v3636 = vld [vmem:[%s3577 + $0xe8] sm:$0xf]
    %v3637 = vld [vmem:[%s3577 + $0xec] sm:$0xf]
    %v3638 = vld [vmem:[%s3577 + $0xf0] sm:$0xf]
    %v3639 = vld [vmem:[%s3577 + $0xf4] sm:$0xf]
    %v3640 = vld [vmem:[%s3577 + $0xf8] sm:$0xf]
    %v3641 = vld [vmem:[%s3577 + $0xfc] sm:$0xf]
    %v3642 = vld [vmem:[%s3577 + $0x100] sm:$0xf]
    %v3643 = vld [vmem:[%s3577 + $0x104] sm:$0xf]
    %v3644 = vld [vmem:[%s3577 + $0x108] sm:$0xf]
    %v3645 = vld [vmem:[%s3577 + $0x10c] sm:$0xf]
    %v3646 = vld [vmem:[%s3577 + $0x110] sm:$0xf]
    %v3647 = vld [vmem:[%s3577 + $0x114] sm:$0xf]
    %v3648 = vld [vmem:[%s3577 + $0x118] sm:$0xf]
    %v3649 = vld [vmem:[%s3577 + $0x11c] sm:$0xf]
    %v3650 = vld [vmem:[%s3577 + $0x120] sm:$0xf]
    %v3651 = vld [vmem:[%s3577 + $0x124] sm:$0xf]
    %v3652 = vld [vmem:[%s3577 + $0x128] sm:$0xf]
    %v3653 = vld [vmem:[%s3577 + $0x12c] sm:$0xf]
    %v3654 = vld [vmem:[%s3577 + $0x130] sm:$0xf]
    %v3655 = vld [vmem:[%s3577 + $0x134] sm:$0xf]
    %v3656 = vld [vmem:[%s3577 + $0x138] sm:$0xf]
    %v3657 = vld [vmem:[%s3577 + $0x13c] sm:$0xf]
    %v3658 = vld [vmem:[%s3577 + $0x140] sm:$0xf]
    %v3659 = vld [vmem:[%s3577 + $0x144] sm:$0xf]
    %v3660 = vld [vmem:[%s3577 + $0x148] sm:$0xf]
    %v3661 = vld [vmem:[%s3577 + $0x14c] sm:$0xf]
    %v3662 = vld [vmem:[%s3577 + $0x150] sm:$0xf]
    %v3663 = vld [vmem:[%s3577 + $0x154] sm:$0xf]
    %v3664 = vld [vmem:[%s3577 + $0x158] sm:$0xf]
    %v3665 = vld [vmem:[%s3577 + $0x15c] sm:$0xf]
    %v3666 = vld [vmem:[%s3577 + $0x160] sm:$0xf]
    %v3667 = vld [vmem:[%s3577 + $0x164] sm:$0xf]
    %v3668 = vld [vmem:[%s3577 + $0x168] sm:$0xf]
    %v3669 = vld [vmem:[%s3577 + $0x16c] sm:$0xf]
    %v3670 = vld [vmem:[%s3577 + $0x170] sm:$0xf]
    %v3671 = vld [vmem:[%s3577 + $0x174] sm:$0xf]
    %v3672 = vld [vmem:[%s3577 + $0x178] sm:$0xf]
    %v3673 = vld [vmem:[%s3577 + $0x17c] sm:$0xf]
    %v3674 = vld [vmem:[%s3577 + $0x180] sm:$0xf]
    %v3675 = vld [vmem:[%s3577 + $0x184] sm:$0xf]
    %v3676 = vld [vmem:[%s3577 + $0x188] sm:$0xf]
    %v3677 = vld [vmem:[%s3577 + $0x18c] sm:$0xf]
    %v3678 = vld [vmem:[%s3577 + $0x190] sm:$0xf]
    %v3679 = vld [vmem:[%s3577 + $0x194] sm:$0xf]
    %v3680 = vld [vmem:[%s3577 + $0x198] sm:$0xf]
    %v3681 = vld [vmem:[%s3577 + $0x19c] sm:$0xf]
    %v3682 = vld [vmem:[%s3577 + $0x1a0] sm:$0xf]
    %v3683 = vld [vmem:[%s3577 + $0x1a4] sm:$0xf]
    %v3684 = vld [vmem:[%s3577 + $0x1a8] sm:$0xf]
    %v3685 = vld [vmem:[%s3577 + $0x1ac] sm:$0xf]
    %v3686 = vld [vmem:[%s3577 + $0x1b0] sm:$0xf]
    %v3687 = vld [vmem:[%s3577 + $0x1b4] sm:$0xf]
    %v3688 = vld [vmem:[%s3577 + $0x1b8] sm:$0xf]
    %v3689 = vld [vmem:[%s3577 + $0x1bc] sm:$0xf]
    %v3690 = vld [vmem:[%s3577 + $0x1c0] sm:$0xf]
    %v3691 = vld [vmem:[%s3577 + $0x1c4] sm:$0xf]
    %v3692 = vld [vmem:[%s3577 + $0x1c8] sm:$0xf]
    %v3693 = vld [vmem:[%s3577 + $0x1cc] sm:$0xf]
    %v3694 = vld [vmem:[%s3577 + $0x1d0] sm:$0xf]
    %v3695 = vld [vmem:[%s3577 + $0x1d4] sm:$0xf]
    %v3696 = vld [vmem:[%s3577 + $0x1d8] sm:$0xf]
    %v3697 = vld [vmem:[%s3577 + $0x1dc] sm:$0xf]
    %v3698 = vld [vmem:[%s3577 + $0x1e0] sm:$0xf]
    %v3699 = vld [vmem:[%s3577 + $0x1e4] sm:$0xf]
    %v3700 = vld [vmem:[%s3577 + $0x1e8] sm:$0xf]
    %v3701 = vld [vmem:[%s3577 + $0x1ec] sm:$0xf]
    %v3702 = vld [vmem:[%s3577 + $0x1f0] sm:$0xf]
    %v3703 = vld [vmem:[%s3577 + $0x1f4] sm:$0xf]
    %v3704 = vld [vmem:[%s3577 + $0x1f8] sm:$0xf]
    %v3705 = vld [vmem:[%s3577 + $0x1fc] sm:$0xf]
    %v3706 = vld [vmem:[%s2969 + $0x20] sm:$0xff]
    %v3707 = vld [vmem:[%s2969 + $0x28] sm:$0xff]
    %v3708 = vld [vmem:[%s2969 + $0x30] sm:$0xff]
    %v3709 = vld [vmem:[%s2969 + $0x38] sm:$0xff]
    %v3710 = vld [vmem:[%s2969 + $0x60] sm:$0xff]
    %v3711 = vld [vmem:[%s2969 + $0x68] sm:$0xff]
    %v3712 = vld [vmem:[%s2969 + $0x70] sm:$0xff]
    %v3713 = vld [vmem:[%s2969 + $0x78] sm:$0xff]
    %v3714 = vld [vmem:[%s2969 + $0xa0] sm:$0xff]
    %v3715 = vld [vmem:[%s2969 + $0xa8] sm:$0xff]
    %v3716 = vld [vmem:[%s2969 + $0xb0] sm:$0xff]
    %v3717 = vld [vmem:[%s2969 + $0xb8] sm:$0xff]
    %v3718 = vld [vmem:[%s2969 + $0xe0] sm:$0xff]
    %v3719 = vld [vmem:[%s2969 + $0xe8] sm:$0xff]
    %v3720 = vld [vmem:[%s2969 + $0xf0] sm:$0xff]
    %v3721 = vld [vmem:[%s2969 + $0xf8] sm:$0xff]
    %v3722 = vld [vmem:[%s2969 + $0x120] sm:$0xff]
    %v3723 = vld [vmem:[%s2969 + $0x128] sm:$0xff]
    %v3724 = vld [vmem:[%s2969 + $0x130] sm:$0xff]
    %v3725 = vld [vmem:[%s2969 + $0x138] sm:$0xff]
    %v3726 = vld [vmem:[%s2969 + $0x160] sm:$0xff]
    %v3727 = vld [vmem:[%s2969 + $0x168] sm:$0xff]
    %v3728 = vld [vmem:[%s2969 + $0x170] sm:$0xff]
    %v3729 = vld [vmem:[%s2969 + $0x178] sm:$0xff]
    %v3730 = vld [vmem:[%s2969 + $0x1a0] sm:$0xff]
    %v3731 = vld [vmem:[%s2969 + $0x1a8] sm:$0xff]
    %v3732 = vld [vmem:[%s2969 + $0x1b0] sm:$0xff]
    %v3733 = vld [vmem:[%s2969 + $0x1b8] sm:$0xff]
    %v3734 = vld [vmem:[%s2969 + $0x1e0] sm:$0xff]
    %v3735 = vld [vmem:[%s2969 + $0x1e8] sm:$0xff]
    %v3736 = vld [vmem:[%s2969 + $0x1f0] sm:$0xff]
    %v3737 = vld [vmem:[%s2969 + $0x1f8] sm:$0xff]
    %v3738 = vld [vmem:[%s2969 + $0x220] sm:$0xff]
    %v3739 = vld [vmem:[%s2969 + $0x228] sm:$0xff]
    %v3740 = vld [vmem:[%s2969 + $0x230] sm:$0xff]
    %v3741 = vld [vmem:[%s2969 + $0x238] sm:$0xff]
    %v3742 = vld [vmem:[%s2969 + $0x260] sm:$0xff]
    %v3743 = vld [vmem:[%s2969 + $0x268] sm:$0xff]
    %v3744 = vld [vmem:[%s2969 + $0x270] sm:$0xff]
    %v3745 = vld [vmem:[%s2969 + $0x278] sm:$0xff]
    %v3746 = vld [vmem:[%s2969 + $0x2a0] sm:$0xff]
    %v3747 = vld [vmem:[%s2969 + $0x2a8] sm:$0xff]
    %v3748 = vld [vmem:[%s2969 + $0x2b0] sm:$0xff]
    %v3749 = vld [vmem:[%s2969 + $0x2b8] sm:$0xff]
    %v3750 = vld [vmem:[%s2969 + $0x2e0] sm:$0xff]
    %v3751 = vld [vmem:[%s2969 + $0x2e8] sm:$0xff]
    %v3752 = vld [vmem:[%s2969 + $0x2f0] sm:$0xff]
    %v3753 = vld [vmem:[%s2969 + $0x2f8] sm:$0xff]
    %v3754 = vld [vmem:[%s2969 + $0x320] sm:$0xff]
    %v3755 = vld [vmem:[%s2969 + $0x328] sm:$0xff]
    %v3756 = vld [vmem:[%s2969 + $0x330] sm:$0xff]
    %v3757 = vld [vmem:[%s2969 + $0x338] sm:$0xff]
    %v3758 = vld [vmem:[%s2969 + $0x360] sm:$0xff]
    %v3759 = vld [vmem:[%s2969 + $0x368] sm:$0xff]
    %v3760 = vld [vmem:[%s2969 + $0x370] sm:$0xff]
    %v3761 = vld [vmem:[%s2969 + $0x378] sm:$0xff]
    %v3762 = vld [vmem:[%s2969 + $0x3a0] sm:$0xff]
    %v3763 = vld [vmem:[%s2969 + $0x3a8] sm:$0xff]
    %v3764 = vld [vmem:[%s2969 + $0x3b0] sm:$0xff]
    %v3765 = vld [vmem:[%s2969 + $0x3b8] sm:$0xff]
    %v3766 = vld [vmem:[%s2969 + $0x3e0] sm:$0xff]
    %v3767 = vld [vmem:[%s2969 + $0x3e8] sm:$0xff]
    %v3768 = vld [vmem:[%s2969 + $0x3f0] sm:$0xff]
    %v3769 = vld [vmem:[%s2969 + $0x3f8] sm:$0xff]
    %v3770 = vld [vmem:[%s3034 + $0x8] sm:$0xff]
    %v3772 = vlaneseq
    %v3773 = vshrl.u32 %v3772, 7
    %v3774 = vsub.s32 0, %v3773
    %v3775 = vrot.slane %v3770, %v3774
    %v3776 = vlaneseq
    %v3777 = vshrl.u32 %v3776, 7
    %v3778 = vsub.s32 1, %v3777
    %v3779 = vrot.slane %v3770, %v3778
    %v3780 = vlaneseq
    %v3781 = vshrl.u32 %v3780, 7
    %v3782 = vsub.s32 2, %v3781
    %v3783 = vrot.slane %v3770, %v3782
    %v3784 = vlaneseq
    %v3785 = vshrl.u32 %v3784, 7
    %v3786 = vsub.s32 3, %v3785
    %v3787 = vrot.slane %v3770, %v3786
    %v3788 = vlaneseq
    %v3789 = vshrl.u32 %v3788, 7
    %v3790 = vsub.s32 4, %v3789
    %v3791 = vrot.slane %v3770, %v3790
    %v3792 = vlaneseq
    %v3793 = vshrl.u32 %v3792, 7
    %v3794 = vsub.s32 5, %v3793
    %v3795 = vrot.slane %v3770, %v3794
    %v3796 = vlaneseq
    %v3797 = vshrl.u32 %v3796, 7
    %v3798 = vsub.s32 6, %v3797
    %v3799 = vrot.slane %v3770, %v3798
    %v3800 = vlaneseq
    %v3801 = vshrl.u32 %v3800, 7
    %v3802 = vsub.s32 7, %v3801
    %v3803 = vrot.slane %v3770, %v3802
    %v3876 = vunpack.c.l.b16 %v3706
    %v3877 = vunpack.c.h.b16 %v3706
    %v3878 = vunpack.c.l.b16 %v3707
    %v3879 = vunpack.c.h.b16 %v3707
    %v3880 = vunpack.c.l.b16 %v3708
    %v3881 = vunpack.c.h.b16 %v3708
    %v3882 = vunpack.c.l.b16 %v3709
    %v3883 = vunpack.c.h.b16 %v3709
    %v3884 = vunpack.c.l.b16 %v3710
    %v3885 = vunpack.c.h.b16 %v3710
    %v3886 = vunpack.c.l.b16 %v3711
    %v3887 = vunpack.c.h.b16 %v3711
    %v3888 = vunpack.c.l.b16 %v3712
    %v3889 = vunpack.c.h.b16 %v3712
    %v3890 = vunpack.c.l.b16 %v3713
    %v3891 = vunpack.c.h.b16 %v3713
    %v3892 = vunpack.c.l.b16 %v3714
    %v3893 = vunpack.c.h.b16 %v3714
    %v3894 = vunpack.c.l.b16 %v3715
    %v3895 = vunpack.c.h.b16 %v3715
    %v3896 = vunpack.c.l.b16 %v3716
    %v3897 = vunpack.c.h.b16 %v3716
    %v3898 = vunpack.c.l.b16 %v3717
    %v3899 = vunpack.c.h.b16 %v3717
    %v3900 = vunpack.c.l.b16 %v3718
    %v3901 = vunpack.c.h.b16 %v3718
    %v3902 = vunpack.c.l.b16 %v3719
    %v3903 = vunpack.c.h.b16 %v3719
    %v3904 = vunpack.c.l.b16 %v3720
    %v3905 = vunpack.c.h.b16 %v3720
    %v3906 = vunpack.c.l.b16 %v3721
    %v3907 = vunpack.c.h.b16 %v3721
    %v3908 = vunpack.c.l.b16 %v3722
    %v3909 = vunpack.c.h.b16 %v3722
    %v3910 = vunpack.c.l.b16 %v3723
    %v3911 = vunpack.c.h.b16 %v3723
    %v3912 = vunpack.c.l.b16 %v3724
    %v3913 = vunpack.c.h.b16 %v3724
    %v3914 = vunpack.c.l.b16 %v3725
    %v3915 = vunpack.c.h.b16 %v3725
    %v3916 = vunpack.c.l.b16 %v3726
    %v3917 = vunpack.c.h.b16 %v3726
    %v3918 = vunpack.c.l.b16 %v3727
    %v3919 = vunpack.c.h.b16 %v3727
    %v3920 = vunpack.c.l.b16 %v3728
    %v3921 = vunpack.c.h.b16 %v3728
    %v3922 = vunpack.c.l.b16 %v3729
    %v3923 = vunpack.c.h.b16 %v3729
    %v3924 = vunpack.c.l.b16 %v3730
    %v3925 = vunpack.c.h.b16 %v3730
    %v3926 = vunpack.c.l.b16 %v3731
    %v3927 = vunpack.c.h.b16 %v3731
    %v3928 = vunpack.c.l.b16 %v3732
    %v3929 = vunpack.c.h.b16 %v3732
    %v3930 = vunpack.c.l.b16 %v3733
    %v3931 = vunpack.c.h.b16 %v3733
    %v3932 = vunpack.c.l.b16 %v3734
    %v3933 = vunpack.c.h.b16 %v3734
    %v3934 = vunpack.c.l.b16 %v3735
    %v3935 = vunpack.c.h.b16 %v3735
    %v3936 = vunpack.c.l.b16 %v3736
    %v3937 = vunpack.c.h.b16 %v3736
    %v3938 = vunpack.c.l.b16 %v3737
    %v3939 = vunpack.c.h.b16 %v3737
    %v3940 = vunpack.c.l.b16 %v3738
    %v3941 = vunpack.c.h.b16 %v3738
    %v3942 = vunpack.c.l.b16 %v3739
    %v3943 = vunpack.c.h.b16 %v3739
    %v3944 = vunpack.c.l.b16 %v3740
    %v3945 = vunpack.c.h.b16 %v3740
    %v3946 = vunpack.c.l.b16 %v3741
    %v3947 = vunpack.c.h.b16 %v3741
    %v3948 = vunpack.c.l.b16 %v3742
    %v3949 = vunpack.c.h.b16 %v3742
    %v3950 = vunpack.c.l.b16 %v3743
    %v3951 = vunpack.c.h.b16 %v3743
    %v3952 = vunpack.c.l.b16 %v3744
    %v3953 = vunpack.c.h.b16 %v3744
    %v3954 = vunpack.c.l.b16 %v3745
    %v3955 = vunpack.c.h.b16 %v3745
    %v3956 = vunpack.c.l.b16 %v3746
    %v3957 = vunpack.c.h.b16 %v3746
    %v3958 = vunpack.c.l.b16 %v3747
    %v3959 = vunpack.c.h.b16 %v3747
    %v3960 = vunpack.c.l.b16 %v3748
    %v3961 = vunpack.c.h.b16 %v3748
    %v3962 = vunpack.c.l.b16 %v3749
    %v3963 = vunpack.c.h.b16 %v3749
    %v3964 = vunpack.c.l.b16 %v3750
    %v3965 = vunpack.c.h.b16 %v3750
    %v3966 = vunpack.c.l.b16 %v3751
    %v3967 = vunpack.c.h.b16 %v3751
    %v3968 = vunpack.c.l.b16 %v3752
    %v3969 = vunpack.c.h.b16 %v3752
    %v3970 = vunpack.c.l.b16 %v3753
    %v3971 = vunpack.c.h.b16 %v3753
    %v3972 = vunpack.c.l.b16 %v3754
    %v3973 = vunpack.c.h.b16 %v3754
    %v3974 = vunpack.c.l.b16 %v3755
    %v3975 = vunpack.c.h.b16 %v3755
    %v3976 = vunpack.c.l.b16 %v3756
    %v3977 = vunpack.c.h.b16 %v3756
    %v3978 = vunpack.c.l.b16 %v3757
    %v3979 = vunpack.c.h.b16 %v3757
    %v3980 = vunpack.c.l.b16 %v3758
    %v3981 = vunpack.c.h.b16 %v3758
    %v3982 = vunpack.c.l.b16 %v3759
    %v3983 = vunpack.c.h.b16 %v3759
    %v3984 = vunpack.c.l.b16 %v3760
    %v3985 = vunpack.c.h.b16 %v3760
    %v3986 = vunpack.c.l.b16 %v3761
    %v3987 = vunpack.c.h.b16 %v3761
    %v3988 = vunpack.c.l.b16 %v3762
    %v3989 = vunpack.c.h.b16 %v3762
    %v3990 = vunpack.c.l.b16 %v3763
    %v3991 = vunpack.c.h.b16 %v3763
    %v3992 = vunpack.c.l.b16 %v3764
    %v3993 = vunpack.c.h.b16 %v3764
    %v3994 = vunpack.c.l.b16 %v3765
    %v3995 = vunpack.c.h.b16 %v3765
    %v3996 = vunpack.c.l.b16 %v3766
    %v3997 = vunpack.c.h.b16 %v3766
    %v3998 = vunpack.c.l.b16 %v3767
    %v3999 = vunpack.c.h.b16 %v3767
    %v4000 = vunpack.c.l.b16 %v3768
    %v4001 = vunpack.c.h.b16 %v3768
    %v4002 = vunpack.c.l.b16 %v3769
    %v4003 = vunpack.c.h.b16 %v3769
    %v4004 = vpack.c.b16 %v3884, %v3876
    %v4005 = vpack.c.b16 %v3885, %v3877
    %v4006 = vpack.c.b16 %v3886, %v3878
    %v4007 = vpack.c.b16 %v3887, %v3879
    %v4008 = vpack.c.b16 %v3888, %v3880
    %v4009 = vpack.c.b16 %v3889, %v3881
    %v4010 = vpack.c.b16 %v3890, %v3882
    %v4011 = vpack.c.b16 %v3891, %v3883
    %v4012 = vpack.c.b16 %v3900, %v3892
    %v4013 = vpack.c.b16 %v3901, %v3893
    %v4014 = vpack.c.b16 %v3902, %v3894
    %v4015 = vpack.c.b16 %v3903, %v3895
    %v4016 = vpack.c.b16 %v3904, %v3896
    %v4017 = vpack.c.b16 %v3905, %v3897
    %v4018 = vpack.c.b16 %v3906, %v3898
    %v4019 = vpack.c.b16 %v3907, %v3899
    %v4020 = vpack.c.b16 %v3916, %v3908
    %v4021 = vpack.c.b16 %v3917, %v3909
    %v4022 = vpack.c.b16 %v3918, %v3910
    %v4023 = vpack.c.b16 %v3919, %v3911
    %v4024 = vpack.c.b16 %v3920, %v3912
    %v4025 = vpack.c.b16 %v3921, %v3913
    %v4026 = vpack.c.b16 %v3922, %v3914
    %v4027 = vpack.c.b16 %v3923, %v3915
    %v4028 = vpack.c.b16 %v3932, %v3924
    %v4029 = vpack.c.b16 %v3933, %v3925
    %v4030 = vpack.c.b16 %v3934, %v3926
    %v4031 = vpack.c.b16 %v3935, %v3927
    %v4032 = vpack.c.b16 %v3936, %v3928
    %v4033 = vpack.c.b16 %v3937, %v3929
    %v4034 = vpack.c.b16 %v3938, %v3930
    %v4035 = vpack.c.b16 %v3939, %v3931
    %v4036 = vpack.c.b16 %v3948, %v3940
    %v4037 = vpack.c.b16 %v3949, %v3941
    %v4038 = vpack.c.b16 %v3950, %v3942
    %v4039 = vpack.c.b16 %v3951, %v3943
    %v4040 = vpack.c.b16 %v3952, %v3944
    %v4041 = vpack.c.b16 %v3953, %v3945
    %v4042 = vpack.c.b16 %v3954, %v3946
    %v4043 = vpack.c.b16 %v3955, %v3947
    %v4044 = vpack.c.b16 %v3964, %v3956
    %v4045 = vpack.c.b16 %v3965, %v3957
    %v4046 = vpack.c.b16 %v3966, %v3958
    %v4047 = vpack.c.b16 %v3967, %v3959
    %v4048 = vpack.c.b16 %v3968, %v3960
    %v4049 = vpack.c.b16 %v3969, %v3961
    %v4050 = vpack.c.b16 %v3970, %v3962
    %v4051 = vpack.c.b16 %v3971, %v3963
    %v4052 = vpack.c.b16 %v3980, %v3972
    %v4053 = vpack.c.b16 %v3981, %v3973
    %v4054 = vpack.c.b16 %v3982, %v3974
    %v4055 = vpack.c.b16 %v3983, %v3975
    %v4056 = vpack.c.b16 %v3984, %v3976
    %v4057 = vpack.c.b16 %v3985, %v3977
    %v4058 = vpack.c.b16 %v3986, %v3978
    %v4059 = vpack.c.b16 %v3987, %v3979
    %v4060 = vpack.c.b16 %v3996, %v3988
    %v4061 = vpack.c.b16 %v3997, %v3989
    %v4062 = vpack.c.b16 %v3998, %v3990
    %v4063 = vpack.c.b16 %v3999, %v3991
    %v4064 = vpack.c.b16 %v4000, %v3992
    %v4065 = vpack.c.b16 %v4001, %v3993
    %v4066 = vpack.c.b16 %v4002, %v3994
    %v4067 = vpack.c.b16 %v4003, %v3995
    %4132 = vmatprep.subr.bf16.mxu0 %v4061
    %4133 = vmatpush1.bf16.msra.mxu0 %v4060
    %4134 = vmatprep.subr.bf16.mxu0 %v4053
    %4135 = vmatpush1.bf16.msra.mxu0 %v4052
    %4136 = vmatprep.subr.bf16.mxu0 %v4045
    %4137 = vmatpush1.bf16.msra.mxu0 %v4044
    %4138 = vmatprep.subr.bf16.mxu0 %v4037
    %4139 = vmatpush1.bf16.msra.mxu0 %v4036
    %4140 = vmatprep.subr.bf16.mxu0 %v4029
    %4141 = vmatpush1.bf16.msra.mxu0 %v4028
    %4142 = vmatprep.subr.bf16.mxu0 %v4021
    %4143 = vmatpush1.bf16.msra.mxu0 %v4020
    %4144 = vmatprep.subr.bf16.mxu0 %v4013
    %4145 = vmatpush1.bf16.msra.mxu0 %v4012
    %4146 = vmatprep.subr.bf16.mxu0 %v4005
    %4147 = vmatpush1.bf16.msra.mxu0 %v4004
    %4148 = vmatprep.subr.bf16.mxu0 0
    %4149 = vmatpush2.bf16.msra.mxu0 0
    %4150 = vmatprep.subr.bf16.mxu0 0
    %4151 = vmatpush2.bf16.msra.mxu0 0
    %4152 = vmatprep.subr.bf16.mxu0 0
    %4153 = vmatpush2.bf16.msra.mxu0 0
    %4154 = vmatprep.subr.bf16.mxu0 0
    %4155 = vmatpush2.bf16.msra.mxu0 0
    %4156 = vmatprep.subr.bf16.mxu0 0
    %4157 = vmatpush2.bf16.msra.mxu0 0
    %4158 = vmatprep.subr.bf16.mxu0 0
    %4159 = vmatpush2.bf16.msra.mxu0 0
    %4160 = vmatprep.subr.bf16.mxu0 0
    %4161 = vmatpush2.bf16.msra.mxu0 0
    %4162 = vmatprep.subr.bf16.mxu0 0
    %4163 = vmatpush2.bf16.msra.mxu0 0
    %4164 = vmatprep.mubr.bf16.mxu0 0
    %4165 = vmatmul.mubr.bf16.gmra.mxu0 %v2968
    %v4166 = vpop.f32.mrf.mxu0
    %v4167 = vadd.f32 %v3775, %v4166
    %v4168 = vpop.f32.mrf.mxu0
    %v4169 = vadd.f32 %v3779, %v4168
    %v4170 = vpop.f32.mrf.mxu0
    %v4171 = vpop.f32.mrf.mxu0
    %4172 = vdwg.mxu0
    %4173 = vmatprep.subr.bf16.mxu0 %v4063
    %4174 = vmatpush1.bf16.msra.mxu0 %v4062
    %4175 = vmatprep.subr.bf16.mxu0 %v4055
    %4176 = vmatpush1.bf16.msra.mxu0 %v4054
    %4177 = vmatprep.subr.bf16.mxu0 %v4047
    %4178 = vmatpush1.bf16.msra.mxu0 %v4046
    %4179 = vmatprep.subr.bf16.mxu0 %v4039
    %4180 = vmatpush1.bf16.msra.mxu0 %v4038
    %4181 = vmatprep.subr.bf16.mxu0 %v4031
    %4182 = vmatpush1.bf16.msra.mxu0 %v4030
    %4183 = vmatprep.subr.bf16.mxu0 %v4023
    %4184 = vmatpush1.bf16.msra.mxu0 %v4022
    %4185 = vmatprep.subr.bf16.mxu0 %v4015
    %4186 = vmatpush1.bf16.msra.mxu0 %v4014
    %4187 = vmatprep.subr.bf16.mxu0 %v4007
    %4188 = vmatpush1.bf16.msra.mxu0 %v4006
    %4189 = vmatprep.subr.bf16.mxu0 0
    %4190 = vmatpush2.bf16.msra.mxu0 0
    %4191 = vmatprep.subr.bf16.mxu0 0
    %4192 = vmatpush2.bf16.msra.mxu0 0
    %4193 = vmatprep.subr.bf16.mxu0 0
    %4194 = vmatpush2.bf16.msra.mxu0 0
    %4195 = vmatprep.subr.bf16.mxu0 0
    %4196 = vmatpush2.bf16.msra.mxu0 0
    %4197 = vmatprep.subr.bf16.mxu0 0
    %4198 = vmatpush2.bf16.msra.mxu0 0
    %4199 = vmatprep.subr.bf16.mxu0 0
    %4200 = vmatpush2.bf16.msra.mxu0 0
    %4201 = vmatprep.subr.bf16.mxu0 0
    %4202 = vmatpush2.bf16.msra.mxu0 0
    %4203 = vmatprep.subr.bf16.mxu0 0
    %4204 = vmatpush2.bf16.msra.mxu0 0
    %4205 = vmatprep.mubr.bf16.mxu0 0
    %4206 = vmatmul.mubr.bf16.gmra.mxu0 %v2968
    %v4207 = vpop.f32.mrf.mxu0
    %v4208 = vadd.f32 %v3783, %v4207
    %v4209 = vpop.f32.mrf.mxu0
    %v4210 = vadd.f32 %v3787, %v4209
    %v4211 = vpop.f32.mrf.mxu0
    %v4212 = vpop.f32.mrf.mxu0
    %4213 = vdwg.mxu0
    %4214 = vmatprep.subr.bf16.mxu0 %v4065
    %4215 = vmatpush1.bf16.msra.mxu0 %v4064
    %4216 = vmatprep.subr.bf16.mxu0 %v4057
    %4217 = vmatpush1.bf16.msra.mxu0 %v4056
    %4218 = vmatprep.subr.bf16.mxu0 %v4049
    %4219 = vmatpush1.bf16.msra.mxu0 %v4048
    %4220 = vmatprep.subr.bf16.mxu0 %v4041
    %4221 = vmatpush1.bf16.msra.mxu0 %v4040
    %4222 = vmatprep.subr.bf16.mxu0 %v4033
    %4223 = vmatpush1.bf16.msra.mxu0 %v4032
    %4224 = vmatprep.subr.bf16.mxu0 %v4025
    %4225 = vmatpush1.bf16.msra.mxu0 %v4024
    %4226 = vmatprep.subr.bf16.mxu0 %v4017
    %4227 = vmatpush1.bf16.msra.mxu0 %v4016
    %4228 = vmatprep.subr.bf16.mxu0 %v4009
    %4229 = vmatpush1.bf16.msra.mxu0 %v4008
    %4230 = vmatprep.subr.bf16.mxu0 0
    %4231 = vmatpush2.bf16.msra.mxu0 0
    %4232 = vmatprep.subr.bf16.mxu0 0
    %4233 = vmatpush2.bf16.msra.mxu0 0
    %4234 = vmatprep.subr.bf16.mxu0 0
    %4235 = vmatpush2.bf16.msra.mxu0 0
    %4236 = vmatprep.subr.bf16.mxu0 0
    %4237 = vmatpush2.bf16.msra.mxu0 0
    %4238 = vmatprep.subr.bf16.mxu0 0
    %4239 = vmatpush2.bf16.msra.mxu0 0
    %4240 = vmatprep.subr.bf16.mxu0 0
    %4241 = vmatpush2.bf16.msra.mxu0 0
    %4242 = vmatprep.subr.bf16.mxu0 0
    %4243 = vmatpush2.bf16.msra.mxu0 0
    %4244 = vmatprep.subr.bf16.mxu0 0
    %4245 = vmatpush2.bf16.msra.mxu0 0
    %4246 = vmatprep.mubr.bf16.mxu0 0
    %4247 = vmatmul.mubr.bf16.gmra.mxu0 %v2968
    %v4248 = vpop.f32.mrf.mxu0
    %v4249 = vadd.f32 %v3791, %v4248
    %v4250 = vpop.f32.mrf.mxu0
    %v4251 = vadd.f32 %v3795, %v4250
    %v4252 = vpop.f32.mrf.mxu0
    %v4253 = vpop.f32.mrf.mxu0
    %4254 = vdwg.mxu0
    %4255 = vmatprep.subr.bf16.mxu0 %v4067
    %4256 = vmatpush1.bf16.msra.mxu0 %v4066
    %4257 = vmatprep.subr.bf16.mxu0 %v4059
    %4258 = vmatpush1.bf16.msra.mxu0 %v4058
    %4259 = vmatprep.subr.bf16.mxu0 %v4051
    %4260 = vmatpush1.bf16.msra.mxu0 %v4050
    %4261 = vmatprep.subr.bf16.mxu0 %v4043
    %4262 = vmatpush1.bf16.msra.mxu0 %v4042
    %4263 = vmatprep.subr.bf16.mxu0 %v4035
    %4264 = vmatpush1.bf16.msra.mxu0 %v4034
    %4265 = vmatprep.subr.bf16.mxu0 %v4027
    %4266 = vmatpush1.bf16.msra.mxu0 %v4026
    %4267 = vmatprep.subr.bf16.mxu0 %v4019
    %4268 = vmatpush1.bf16.msra.mxu0 %v4018
    %4269 = vmatprep.subr.bf16.mxu0 %v4011
    %4270 = vmatpush1.bf16.msra.mxu0 %v4010
    %4271 = vmatprep.subr.bf16.mxu0 0
    %4272 = vmatpush2.bf16.msra.mxu0 0
    %4273 = vmatprep.subr.bf16.mxu0 0
    %4274 = vmatpush2.bf16.msra.mxu0 0
    %4275 = vmatprep.subr.bf16.mxu0 0
    %4276 = vmatpush2.bf16.msra.mxu0 0
    %4277 = vmatprep.subr.bf16.mxu0 0
    %4278 = vmatpush2.bf16.msra.mxu0 0
    %4279 = vmatprep.subr.bf16.mxu0 0
    %4280 = vmatpush2.bf16.msra.mxu0 0
    %4281 = vmatprep.subr.bf16.mxu0 0
    %4282 = vmatpush2.bf16.msra.mxu0 0
    %4283 = vmatprep.subr.bf16.mxu0 0
    %4284 = vmatpush2.bf16.msra.mxu0 0
    %4285 = vmatprep.subr.bf16.mxu0 0
    %4286 = vmatpush2.bf16.msra.mxu0 0
    %4287 = vmatprep.mubr.bf16.mxu0 0
    %4288 = vmatmul.mubr.bf16.gmra.mxu0 %v2968
    %v4289 = vpop.f32.mrf.mxu0
    %v4290 = vadd.f32 %v3799, %v4289
    %v4291 = vpop.f32.mrf.mxu0
    %v4292 = vadd.f32 %v3803, %v4291
    %v4293 = vpop.f32.mrf.mxu0
    %v4294 = vpop.f32.mrf.mxu0
    %4295 = vdwg.mxu0
    %v4296 = vmax.f32 %v4167, 0.0
    %v4297 = vmax.f32 %v4169, 0.0
    %v4298 = vmax.f32 %v4208, 0.0
    %v4299 = vmax.f32 %v4210, 0.0
    %v4300 = vmax.f32 %v4249, 0.0
    %v4301 = vmax.f32 %v4251, 0.0
    %v4302 = vmax.f32 %v4290, 0.0
    %v4303 = vmax.f32 %v4292, 0.0
    %v4304 = vpack.c.bf16 %v4296, %v4296
    %v4305 = vpack.c.bf16 %v4297, %v4297
    %v4306 = vpack.c.bf16 %v4298, %v4298
    %v4307 = vpack.c.bf16 %v4299, %v4299
    %v4308 = vpack.c.bf16 %v4300, %v4300
    %v4309 = vpack.c.bf16 %v4301, %v4301
    %v4310 = vpack.c.bf16 %v4302, %v4302
    %v4311 = vpack.c.bf16 %v4303, %v4303
    %v4312 = vld [vmem:[%s3577 + $0x200] sm:$0xf]
    %v4313 = vld [vmem:[%s3577 + $0x204] sm:$0xf]
    %v4314 = vld [vmem:[%s3577 + $0x208] sm:$0xf]
    %v4315 = vld [vmem:[%s3577 + $0x20c] sm:$0xf]
    %v4316 = vld [vmem:[%s3577 + $0x210] sm:$0xf]
    %v4317 = vld [vmem:[%s3577 + $0x214] sm:$0xf]
    %v4318 = vld [vmem:[%s3577 + $0x218] sm:$0xf]
    %v4319 = vld [vmem:[%s3577 + $0x21c] sm:$0xf]
    %v4320 = vld [vmem:[%s3577 + $0x220] sm:$0xf]
    %v4321 = vld [vmem:[%s3577 + $0x224] sm:$0xf]
    %v4322 = vld [vmem:[%s3577 + $0x228] sm:$0xf]
    %v4323 = vld [vmem:[%s3577 + $0x22c] sm:$0xf]
    %v4324 = vld [vmem:[%s3577 + $0x230] sm:$0xf]
    %v4325 = vld [vmem:[%s3577 + $0x234] sm:$0xf]
    %v4326 = vld [vmem:[%s3577 + $0x238] sm:$0xf]
    %v4327 = vld [vmem:[%s3577 + $0x23c] sm:$0xf]
    %v4328 = vld [vmem:[%s3577 + $0x240] sm:$0xf]
    %v4329 = vld [vmem:[%s3577 + $0x244] sm:$0xf]
    %v4330 = vld [vmem:[%s3577 + $0x248] sm:$0xf]
    %v4331 = vld [vmem:[%s3577 + $0x24c] sm:$0xf]
    %v4332 = vld [vmem:[%s3577 + $0x250] sm:$0xf]
    %v4333 = vld [vmem:[%s3577 + $0x254] sm:$0xf]
    %v4334 = vld [vmem:[%s3577 + $0x258] sm:$0xf]
    %v4335 = vld [vmem:[%s3577 + $0x25c] sm:$0xf]
    %v4336 = vld [vmem:[%s3577 + $0x260] sm:$0xf]
    %v4337 = vld [vmem:[%s3577 + $0x264] sm:$0xf]
    %v4338 = vld [vmem:[%s3577 + $0x268] sm:$0xf]
    %v4339 = vld [vmem:[%s3577 + $0x26c] sm:$0xf]
    %v4340 = vld [vmem:[%s3577 + $0x270] sm:$0xf]
    %v4341 = vld [vmem:[%s3577 + $0x274] sm:$0xf]
    %v4342 = vld [vmem:[%s3577 + $0x278] sm:$0xf]
    %v4343 = vld [vmem:[%s3577 + $0x27c] sm:$0xf]
    %v4344 = vld [vmem:[%s3577 + $0x280] sm:$0xf]
    %v4345 = vld [vmem:[%s3577 + $0x284] sm:$0xf]
    %v4346 = vld [vmem:[%s3577 + $0x288] sm:$0xf]
    %v4347 = vld [vmem:[%s3577 + $0x28c] sm:$0xf]
    %v4348 = vld [vmem:[%s3577 + $0x290] sm:$0xf]
    %v4349 = vld [vmem:[%s3577 + $0x294] sm:$0xf]
    %v4350 = vld [vmem:[%s3577 + $0x298] sm:$0xf]
    %v4351 = vld [vmem:[%s3577 + $0x29c] sm:$0xf]
    %v4352 = vld [vmem:[%s3577 + $0x2a0] sm:$0xf]
    %v4353 = vld [vmem:[%s3577 + $0x2a4] sm:$0xf]
    %v4354 = vld [vmem:[%s3577 + $0x2a8] sm:$0xf]
    %v4355 = vld [vmem:[%s3577 + $0x2ac] sm:$0xf]
    %v4356 = vld [vmem:[%s3577 + $0x2b0] sm:$0xf]
    %v4357 = vld [vmem:[%s3577 + $0x2b4] sm:$0xf]
    %v4358 = vld [vmem:[%s3577 + $0x2b8] sm:$0xf]
    %v4359 = vld [vmem:[%s3577 + $0x2bc] sm:$0xf]
    %v4360 = vld [vmem:[%s3577 + $0x2c0] sm:$0xf]
    %v4361 = vld [vmem:[%s3577 + $0x2c4] sm:$0xf]
    %v4362 = vld [vmem:[%s3577 + $0x2c8] sm:$0xf]
    %v4363 = vld [vmem:[%s3577 + $0x2cc] sm:$0xf]
    %v4364 = vld [vmem:[%s3577 + $0x2d0] sm:$0xf]
    %v4365 = vld [vmem:[%s3577 + $0x2d4] sm:$0xf]
    %v4366 = vld [vmem:[%s3577 + $0x2d8] sm:$0xf]
    %v4367 = vld [vmem:[%s3577 + $0x2dc] sm:$0xf]
    %v4368 = vld [vmem:[%s3577 + $0x2e0] sm:$0xf]
    %v4369 = vld [vmem:[%s3577 + $0x2e4] sm:$0xf]
    %v4370 = vld [vmem:[%s3577 + $0x2e8] sm:$0xf]
    %v4371 = vld [vmem:[%s3577 + $0x2ec] sm:$0xf]
    %v4372 = vld [vmem:[%s3577 + $0x2f0] sm:$0xf]
    %v4373 = vld [vmem:[%s3577 + $0x2f4] sm:$0xf]
    %v4374 = vld [vmem:[%s3577 + $0x2f8] sm:$0xf]
    %v4375 = vld [vmem:[%s3577 + $0x2fc] sm:$0xf]
    %v4376 = vld [vmem:[%s3577 + $0x300] sm:$0xf]
    %v4377 = vld [vmem:[%s3577 + $0x304] sm:$0xf]
    %v4378 = vld [vmem:[%s3577 + $0x308] sm:$0xf]
    %v4379 = vld [vmem:[%s3577 + $0x30c] sm:$0xf]
    %v4380 = vld [vmem:[%s3577 + $0x310] sm:$0xf]
    %v4381 = vld [vmem:[%s3577 + $0x314] sm:$0xf]
    %v4382 = vld [vmem:[%s3577 + $0x318] sm:$0xf]
    %v4383 = vld [vmem:[%s3577 + $0x31c] sm:$0xf]
    %v4384 = vld [vmem:[%s3577 + $0x320] sm:$0xf]
    %v4385 = vld [vmem:[%s3577 + $0x324] sm:$0xf]
    %v4386 = vld [vmem:[%s3577 + $0x328] sm:$0xf]
    %v4387 = vld [vmem:[%s3577 + $0x32c] sm:$0xf]
    %v4388 = vld [vmem:[%s3577 + $0x330] sm:$0xf]
    %v4389 = vld [vmem:[%s3577 + $0x334] sm:$0xf]
    %v4390 = vld [vmem:[%s3577 + $0x338] sm:$0xf]
    %v4391 = vld [vmem:[%s3577 + $0x33c] sm:$0xf]
    %v4392 = vld [vmem:[%s3577 + $0x340] sm:$0xf]
    %v4393 = vld [vmem:[%s3577 + $0x344] sm:$0xf]
    %v4394 = vld [vmem:[%s3577 + $0x348] sm:$0xf]
    %v4395 = vld [vmem:[%s3577 + $0x34c] sm:$0xf]
    %v4396 = vld [vmem:[%s3577 + $0x350] sm:$0xf]
    %v4397 = vld [vmem:[%s3577 + $0x354] sm:$0xf]
    %v4398 = vld [vmem:[%s3577 + $0x358] sm:$0xf]
    %v4399 = vld [vmem:[%s3577 + $0x35c] sm:$0xf]
    %v4400 = vld [vmem:[%s3577 + $0x360] sm:$0xf]
    %v4401 = vld [vmem:[%s3577 + $0x364] sm:$0xf]
    %v4402 = vld [vmem:[%s3577 + $0x368] sm:$0xf]
    %v4403 = vld [vmem:[%s3577 + $0x36c] sm:$0xf]
    %v4404 = vld [vmem:[%s3577 + $0x370] sm:$0xf]
    %v4405 = vld [vmem:[%s3577 + $0x374] sm:$0xf]
    %v4406 = vld [vmem:[%s3577 + $0x378] sm:$0xf]
    %v4407 = vld [vmem:[%s3577 + $0x37c] sm:$0xf]
    %v4408 = vld [vmem:[%s3577 + $0x380] sm:$0xf]
    %v4409 = vld [vmem:[%s3577 + $0x384] sm:$0xf]
    %v4410 = vld [vmem:[%s3577 + $0x388] sm:$0xf]
    %v4411 = vld [vmem:[%s3577 + $0x38c] sm:$0xf]
    %v4412 = vld [vmem:[%s3577 + $0x390] sm:$0xf]
    %v4413 = vld [vmem:[%s3577 + $0x394] sm:$0xf]
    %v4414 = vld [vmem:[%s3577 + $0x398] sm:$0xf]
    %v4415 = vld [vmem:[%s3577 + $0x39c] sm:$0xf]
    %v4416 = vld [vmem:[%s3577 + $0x3a0] sm:$0xf]
    %v4417 = vld [vmem:[%s3577 + $0x3a4] sm:$0xf]
    %v4418 = vld [vmem:[%s3577 + $0x3a8] sm:$0xf]
    %v4419 = vld [vmem:[%s3577 + $0x3ac] sm:$0xf]
    %v4420 = vld [vmem:[%s3577 + $0x3b0] sm:$0xf]
    %v4421 = vld [vmem:[%s3577 + $0x3b4] sm:$0xf]
    %v4422 = vld [vmem:[%s3577 + $0x3b8] sm:$0xf]
    %v4423 = vld [vmem:[%s3577 + $0x3bc] sm:$0xf]
    %v4424 = vld [vmem:[%s3577 + $0x3c0] sm:$0xf]
    %v4425 = vld [vmem:[%s3577 + $0x3c4] sm:$0xf]
    %v4426 = vld [vmem:[%s3577 + $0x3c8] sm:$0xf]
    %v4427 = vld [vmem:[%s3577 + $0x3cc] sm:$0xf]
    %v4428 = vld [vmem:[%s3577 + $0x3d0] sm:$0xf]
    %v4429 = vld [vmem:[%s3577 + $0x3d4] sm:$0xf]
    %v4430 = vld [vmem:[%s3577 + $0x3d8] sm:$0xf]
    %v4431 = vld [vmem:[%s3577 + $0x3dc] sm:$0xf]
    %v4432 = vld [vmem:[%s3577 + $0x3e0] sm:$0xf]
    %v4433 = vld [vmem:[%s3577 + $0x3e4] sm:$0xf]
    %v4434 = vld [vmem:[%s3577 + $0x3e8] sm:$0xf]
    %v4435 = vld [vmem:[%s3577 + $0x3ec] sm:$0xf]
    %v4436 = vld [vmem:[%s3577 + $0x3f0] sm:$0xf]
    %v4437 = vld [vmem:[%s3577 + $0x3f4] sm:$0xf]
    %v4438 = vld [vmem:[%s3577 + $0x3f8] sm:$0xf]
    %v4439 = vld [vmem:[%s3577 + $0x3fc] sm:$0xf]
    %v4568 = vunpack.c.l.b16 %v4312
    %v4569 = vunpack.c.l.b16 %v4313
    %v4570 = vunpack.c.l.b16 %v4314
    %v4571 = vunpack.c.l.b16 %v4315
    %v4572 = vunpack.c.l.b16 %v4316
    %v4573 = vunpack.c.l.b16 %v4317
    %v4574 = vunpack.c.l.b16 %v4318
    %v4575 = vunpack.c.l.b16 %v4319
    %v4576 = vunpack.c.l.b16 %v4320
    %v4577 = vunpack.c.l.b16 %v4321
    %v4578 = vunpack.c.l.b16 %v4322
    %v4579 = vunpack.c.l.b16 %v4323
    %v4580 = vunpack.c.l.b16 %v4324
    %v4581 = vunpack.c.l.b16 %v4325
    %v4582 = vunpack.c.l.b16 %v4326
    %v4583 = vunpack.c.l.b16 %v4327
    %v4584 = vunpack.c.l.b16 %v4328
    %v4585 = vunpack.c.l.b16 %v4329
    %v4586 = vunpack.c.l.b16 %v4330
    %v4587 = vunpack.c.l.b16 %v4331
    %v4588 = vunpack.c.l.b16 %v4332
    %v4589 = vunpack.c.l.b16 %v4333
    %v4590 = vunpack.c.l.b16 %v4334
    %v4591 = vunpack.c.l.b16 %v4335
    %v4592 = vunpack.c.l.b16 %v4336
    %v4593 = vunpack.c.l.b16 %v4337
    %v4594 = vunpack.c.l.b16 %v4338
    %v4595 = vunpack.c.l.b16 %v4339
    %v4596 = vunpack.c.l.b16 %v4340
    %v4597 = vunpack.c.l.b16 %v4341
    %v4598 = vunpack.c.l.b16 %v4342
    %v4599 = vunpack.c.l.b16 %v4343
    %v4600 = vunpack.c.l.b16 %v4344
    %v4601 = vunpack.c.l.b16 %v4345
    %v4602 = vunpack.c.l.b16 %v4346
    %v4603 = vunpack.c.l.b16 %v4347
    %v4604 = vunpack.c.l.b16 %v4348
    %v4605 = vunpack.c.l.b16 %v4349
    %v4606 = vunpack.c.l.b16 %v4350
    %v4607 = vunpack.c.l.b16 %v4351
    %v4608 = vunpack.c.l.b16 %v4352
    %v4609 = vunpack.c.l.b16 %v4353
    %v4610 = vunpack.c.l.b16 %v4354
    %v4611 = vunpack.c.l.b16 %v4355
    %v4612 = vunpack.c.l.b16 %v4356
    %v4613 = vunpack.c.l.b16 %v4357
    %v4614 = vunpack.c.l.b16 %v4358
    %v4615 = vunpack.c.l.b16 %v4359
    %v4616 = vunpack.c.l.b16 %v4360
    %v4617 = vunpack.c.l.b16 %v4361
    %v4618 = vunpack.c.l.b16 %v4362
    %v4619 = vunpack.c.l.b16 %v4363
    %v4620 = vunpack.c.l.b16 %v4364
    %v4621 = vunpack.c.l.b16 %v4365
    %v4622 = vunpack.c.l.b16 %v4366
    %v4623 = vunpack.c.l.b16 %v4367
    %v4624 = vunpack.c.l.b16 %v4368
    %v4625 = vunpack.c.l.b16 %v4369
    %v4626 = vunpack.c.l.b16 %v4370
    %v4627 = vunpack.c.l.b16 %v4371
    %v4628 = vunpack.c.l.b16 %v4372
    %v4629 = vunpack.c.l.b16 %v4373
    %v4630 = vunpack.c.l.b16 %v4374
    %v4631 = vunpack.c.l.b16 %v4375
    %v4632 = vunpack.c.l.b16 %v4376
    %v4633 = vunpack.c.l.b16 %v4377
    %v4634 = vunpack.c.l.b16 %v4378
    %v4635 = vunpack.c.l.b16 %v4379
    %v4636 = vunpack.c.l.b16 %v4380
    %v4637 = vunpack.c.l.b16 %v4381
    %v4638 = vunpack.c.l.b16 %v4382
    %v4639 = vunpack.c.l.b16 %v4383
    %v4640 = vunpack.c.l.b16 %v4384
    %v4641 = vunpack.c.l.b16 %v4385
    %v4642 = vunpack.c.l.b16 %v4386
    %v4643 = vunpack.c.l.b16 %v4387
    %v4644 = vunpack.c.l.b16 %v4388
    %v4645 = vunpack.c.l.b16 %v4389
    %v4646 = vunpack.c.l.b16 %v4390
    %v4647 = vunpack.c.l.b16 %v4391
    %v4648 = vunpack.c.l.b16 %v4392
    %v4649 = vunpack.c.l.b16 %v4393
    %v4650 = vunpack.c.l.b16 %v4394
    %v4651 = vunpack.c.l.b16 %v4395
    %v4652 = vunpack.c.l.b16 %v4396
    %v4653 = vunpack.c.l.b16 %v4397
    %v4654 = vunpack.c.l.b16 %v4398
    %v4655 = vunpack.c.l.b16 %v4399
    %v4656 = vunpack.c.l.b16 %v4400
    %v4657 = vunpack.c.l.b16 %v4401
    %v4658 = vunpack.c.l.b16 %v4402
    %v4659 = vunpack.c.l.b16 %v4403
    %v4660 = vunpack.c.l.b16 %v4404
    %v4661 = vunpack.c.l.b16 %v4405
    %v4662 = vunpack.c.l.b16 %v4406
    %v4663 = vunpack.c.l.b16 %v4407
    %v4664 = vunpack.c.l.b16 %v4408
    %v4665 = vunpack.c.l.b16 %v4409
    %v4666 = vunpack.c.l.b16 %v4410
    %v4667 = vunpack.c.l.b16 %v4411
    %v4668 = vunpack.c.l.b16 %v4412
    %v4669 = vunpack.c.l.b16 %v4413
    %v4670 = vunpack.c.l.b16 %v4414
    %v4671 = vunpack.c.l.b16 %v4415
    %v4672 = vunpack.c.l.b16 %v4416
    %v4673 = vunpack.c.l.b16 %v4417
    %v4674 = vunpack.c.l.b16 %v4418
    %v4675 = vunpack.c.l.b16 %v4419
    %v4676 = vunpack.c.l.b16 %v4420
    %v4677 = vunpack.c.l.b16 %v4421
    %v4678 = vunpack.c.l.b16 %v4422
    %v4679 = vunpack.c.l.b16 %v4423
    %v4680 = vunpack.c.l.b16 %v4424
    %v4681 = vunpack.c.l.b16 %v4425
    %v4682 = vunpack.c.l.b16 %v4426
    %v4683 = vunpack.c.l.b16 %v4427
    %v4684 = vunpack.c.l.b16 %v4428
    %v4685 = vunpack.c.l.b16 %v4429
    %v4686 = vunpack.c.l.b16 %v4430
    %v4687 = vunpack.c.l.b16 %v4431
    %v4688 = vunpack.c.l.b16 %v4432
    %v4689 = vunpack.c.l.b16 %v4433
    %v4690 = vunpack.c.l.b16 %v4434
    %v4691 = vunpack.c.l.b16 %v4435
    %v4692 = vunpack.c.l.b16 %v4436
    %v4693 = vunpack.c.l.b16 %v4437
    %v4694 = vunpack.c.l.b16 %v4438
    %v4695 = vunpack.c.l.b16 %v4439
    %v4696 = vpack.c.b16 %v4569, %v4568
    %v4697 = vpack.c.b16 %v4571, %v4570
    %v4698 = vpack.c.b16 %v4573, %v4572
    %v4699 = vpack.c.b16 %v4575, %v4574
    %v4700 = vpack.c.b16 %v4577, %v4576
    %v4701 = vpack.c.b16 %v4579, %v4578
    %v4702 = vpack.c.b16 %v4581, %v4580
    %v4703 = vpack.c.b16 %v4583, %v4582
    %v4704 = vpack.c.b16 %v4585, %v4584
    %v4705 = vpack.c.b16 %v4587, %v4586
    %v4706 = vpack.c.b16 %v4589, %v4588
    %v4707 = vpack.c.b16 %v4591, %v4590
    %v4708 = vpack.c.b16 %v4593, %v4592
    %v4709 = vpack.c.b16 %v4595, %v4594
    %v4710 = vpack.c.b16 %v4597, %v4596
    %v4711 = vpack.c.b16 %v4599, %v4598
    %v4712 = vpack.c.b16 %v4601, %v4600
    %v4713 = vpack.c.b16 %v4603, %v4602
    %v4714 = vpack.c.b16 %v4605, %v4604
    %v4715 = vpack.c.b16 %v4607, %v4606
    %v4716 = vpack.c.b16 %v4609, %v4608
    %v4717 = vpack.c.b16 %v4611, %v4610
    %v4718 = vpack.c.b16 %v4613, %v4612
    %v4719 = vpack.c.b16 %v4615, %v4614
    %v4720 = vpack.c.b16 %v4617, %v4616
    %v4721 = vpack.c.b16 %v4619, %v4618
    %v4722 = vpack.c.b16 %v4621, %v4620
    %v4723 = vpack.c.b16 %v4623, %v4622
    %v4724 = vpack.c.b16 %v4625, %v4624
    %v4725 = vpack.c.b16 %v4627, %v4626
    %v4726 = vpack.c.b16 %v4629, %v4628
    %v4727 = vpack.c.b16 %v4631, %v4630
    %v4728 = vpack.c.b16 %v4633, %v4632
    %v4729 = vpack.c.b16 %v4635, %v4634
    %v4730 = vpack.c.b16 %v4637, %v4636
    %v4731 = vpack.c.b16 %v4639, %v4638
    %v4732 = vpack.c.b16 %v4641, %v4640
    %v4733 = vpack.c.b16 %v4643, %v4642
    %v4734 = vpack.c.b16 %v4645, %v4644
    %v4735 = vpack.c.b16 %v4647, %v4646
    %v4736 = vpack.c.b16 %v4649, %v4648
    %v4737 = vpack.c.b16 %v4651, %v4650
    %v4738 = vpack.c.b16 %v4653, %v4652
    %v4739 = vpack.c.b16 %v4655, %v4654
    %v4740 = vpack.c.b16 %v4657, %v4656
    %v4741 = vpack.c.b16 %v4659, %v4658
    %v4742 = vpack.c.b16 %v4661, %v4660
    %v4743 = vpack.c.b16 %v4663, %v4662
    %v4744 = vpack.c.b16 %v4665, %v4664
    %v4745 = vpack.c.b16 %v4667, %v4666
    %v4746 = vpack.c.b16 %v4669, %v4668
    %v4747 = vpack.c.b16 %v4671, %v4670
    %v4748 = vpack.c.b16 %v4673, %v4672
    %v4749 = vpack.c.b16 %v4675, %v4674
    %v4750 = vpack.c.b16 %v4677, %v4676
    %v4751 = vpack.c.b16 %v4679, %v4678
    %v4752 = vpack.c.b16 %v4681, %v4680
    %v4753 = vpack.c.b16 %v4683, %v4682
    %v4754 = vpack.c.b16 %v4685, %v4684
    %v4755 = vpack.c.b16 %v4687, %v4686
    %v4756 = vpack.c.b16 %v4689, %v4688
    %v4757 = vpack.c.b16 %v4691, %v4690
    %v4758 = vpack.c.b16 %v4693, %v4692
    %v4759 = vpack.c.b16 %v4695, %v4694
    %4824 = vmatprep.subr.bf16.mxu0 0
    %4825 = vmatpush1.bf16.msra.mxu0 %v4703
    %4826 = vmatprep.subr.bf16.mxu0 0
    %4827 = vmatpush1.bf16.msra.mxu0 %v4702
    %4828 = vmatprep.subr.bf16.mxu0 0
    %4829 = vmatpush1.bf16.msra.mxu0 %v4701
    %4830 = vmatprep.subr.bf16.mxu0 0
    %4831 = vmatpush1.bf16.msra.mxu0 %v4700
    %4832 = vmatprep.subr.bf16.mxu0 0
    %4833 = vmatpush1.bf16.msra.mxu0 %v4699
    %4834 = vmatprep.subr.bf16.mxu0 0
    %4835 = vmatpush1.bf16.msra.mxu0 %v4698
    %4836 = vmatprep.subr.bf16.mxu0 0
    %4837 = vmatpush1.bf16.msra.mxu0 %v4697
    %4838 = vmatprep.subr.bf16.mxu0 0
    %4839 = vmatpush1.bf16.msra.mxu0 %v4696
    %4840 = vmatprep.subr.bf16.mxu0 0
    %4841 = vmatpush2.bf16.msra.mxu0 %v4711
    %4842 = vmatprep.subr.bf16.mxu0 0
    %4843 = vmatpush2.bf16.msra.mxu0 %v4710
    %4844 = vmatprep.subr.bf16.mxu0 0
    %4845 = vmatpush2.bf16.msra.mxu0 %v4709
    %4846 = vmatprep.subr.bf16.mxu0 0
    %4847 = vmatpush2.bf16.msra.mxu0 %v4708
    %4848 = vmatprep.subr.bf16.mxu0 0
    %4849 = vmatpush2.bf16.msra.mxu0 %v4707
    %4850 = vmatprep.subr.bf16.mxu0 0
    %4851 = vmatpush2.bf16.msra.mxu0 %v4706
    %4852 = vmatprep.subr.bf16.mxu0 0
    %4853 = vmatpush2.bf16.msra.mxu0 %v4705
    %4854 = vmatprep.subr.bf16.mxu0 0
    %4855 = vmatpush2.bf16.msra.mxu0 %v4704
    %4856 = vmatprep.mubr.bf16.mxu0 %v4305
    %4857 = vmatmul.mubr.bf16.gmra.mxu0 %v4304
    %v4858 = vpop.f32.mrf.mxu0
    %v4859 = vadd.f32 0.0, %v4858
    %v4860 = vpop.f32.mrf.mxu0
    %v4861 = vpop.f32.mrf.mxu0
    %v4862 = vpop.f32.mrf.mxu0
    %4863 = vdwg.mxu0
    %4864 = vmatprep.subr.bf16.mxu0 0
    %4865 = vmatpush1.bf16.msra.mxu0 %v4719
    %4866 = vmatprep.subr.bf16.mxu0 0
    %4867 = vmatpush1.bf16.msra.mxu0 %v4718
    %4868 = vmatprep.subr.bf16.mxu0 0
    %4869 = vmatpush1.bf16.msra.mxu0 %v4717
    %4870 = vmatprep.subr.bf16.mxu0 0
    %4871 = vmatpush1.bf16.msra.mxu0 %v4716
    %4872 = vmatprep.subr.bf16.mxu0 0
    %4873 = vmatpush1.bf16.msra.mxu0 %v4715
    %4874 = vmatprep.subr.bf16.mxu0 0
    %4875 = vmatpush1.bf16.msra.mxu0 %v4714
    %4876 = vmatprep.subr.bf16.mxu0 0
    %4877 = vmatpush1.bf16.msra.mxu0 %v4713
    %4878 = vmatprep.subr.bf16.mxu0 0
    %4879 = vmatpush1.bf16.msra.mxu0 %v4712
    %4880 = vmatprep.subr.bf16.mxu0 0
    %4881 = vmatpush2.bf16.msra.mxu0 %v4727
    %4882 = vmatprep.subr.bf16.mxu0 0
    %4883 = vmatpush2.bf16.msra.mxu0 %v4726
    %4884 = vmatprep.subr.bf16.mxu0 0
    %4885 = vmatpush2.bf16.msra.mxu0 %v4725
    %4886 = vmatprep.subr.bf16.mxu0 0
    %4887 = vmatpush2.bf16.msra.mxu0 %v4724
    %4888 = vmatprep.subr.bf16.mxu0 0
    %4889 = vmatpush2.bf16.msra.mxu0 %v4723
    %4890 = vmatprep.subr.bf16.mxu0 0
    %4891 = vmatpush2.bf16.msra.mxu0 %v4722
    %4892 = vmatprep.subr.bf16.mxu0 0
    %4893 = vmatpush2.bf16.msra.mxu0 %v4721
    %4894 = vmatprep.subr.bf16.mxu0 0
    %4895 = vmatpush2.bf16.msra.mxu0 %v4720
    %4896 = vmatprep.mubr.bf16.mxu0 %v4307
    %4897 = vmatmul.mubr.bf16.gmra.mxu0 %v4306
    %v4898 = vpop.f32.mrf.mxu0
    %v4899 = vadd.f32 %v4859, %v4898
    %v4900 = vpop.f32.mrf.mxu0
    %v4901 = vpop.f32.mrf.mxu0
    %v4902 = vpop.f32.mrf.mxu0
    %4903 = vdwg.mxu0
    %4904 = vmatprep.subr.bf16.mxu0 0
    %4905 = vmatpush1.bf16.msra.mxu0 %v4735
    %4906 = vmatprep.subr.bf16.mxu0 0
    %4907 = vmatpush1.bf16.msra.mxu0 %v4734
    %4908 = vmatprep.subr.bf16.mxu0 0
    %4909 = vmatpush1.bf16.msra.mxu0 %v4733
    %4910 = vmatprep.subr.bf16.mxu0 0
    %4911 = vmatpush1.bf16.msra.mxu0 %v4732
    %4912 = vmatprep.subr.bf16.mxu0 0
    %4913 = vmatpush1.bf16.msra.mxu0 %v4731
    %4914 = vmatprep.subr.bf16.mxu0 0
    %4915 = vmatpush1.bf16.msra.mxu0 %v4730
    %4916 = vmatprep.subr.bf16.mxu0 0
    %4917 = vmatpush1.bf16.msra.mxu0 %v4729
    %4918 = vmatprep.subr.bf16.mxu0 0
    %4919 = vmatpush1.bf16.msra.mxu0 %v4728
    %4920 = vmatprep.subr.bf16.mxu0 0
    %4921 = vmatpush2.bf16.msra.mxu0 %v4743
    %4922 = vmatprep.subr.bf16.mxu0 0
    %4923 = vmatpush2.bf16.msra.mxu0 %v4742
    %4924 = vmatprep.subr.bf16.mxu0 0
    %4925 = vmatpush2.bf16.msra.mxu0 %v4741
    %4926 = vmatprep.subr.bf16.mxu0 0
    %4927 = vmatpush2.bf16.msra.mxu0 %v4740
    %4928 = vmatprep.subr.bf16.mxu0 0
    %4929 = vmatpush2.bf16.msra.mxu0 %v4739
    %4930 = vmatprep.subr.bf16.mxu0 0
    %4931 = vmatpush2.bf16.msra.mxu0 %v4738
    %4932 = vmatprep.subr.bf16.mxu0 0
    %4933 = vmatpush2.bf16.msra.mxu0 %v4737
    %4934 = vmatprep.subr.bf16.mxu0 0
    %4935 = vmatpush2.bf16.msra.mxu0 %v4736
    %4936 = vmatprep.mubr.bf16.mxu0 %v4309
    %4937 = vmatmul.mubr.bf16.gmra.mxu0 %v4308
    %v4938 = vpop.f32.mrf.mxu0
    %v4939 = vadd.f32 %v4899, %v4938
    %v4940 = vpop.f32.mrf.mxu0
    %v4941 = vpop.f32.mrf.mxu0
    %v4942 = vpop.f32.mrf.mxu0
    %4943 = vdwg.mxu0
    %4944 = vmatprep.subr.bf16.mxu0 0
    %4945 = vmatpush1.bf16.msra.mxu0 %v4751
    %4946 = vmatprep.subr.bf16.mxu0 0
    %4947 = vmatpush1.bf16.msra.mxu0 %v4750
    %4948 = vmatprep.subr.bf16.mxu0 0
    %4949 = vmatpush1.bf16.msra.mxu0 %v4749
    %4950 = vmatprep.subr.bf16.mxu0 0
    %4951 = vmatpush1.bf16.msra.mxu0 %v4748
    %4952 = vmatprep.subr.bf16.mxu0 0
    %4953 = vmatpush1.bf16.msra.mxu0 %v4747
    %4954 = vmatprep.subr.bf16.mxu0 0
    %4955 = vmatpush1.bf16.msra.mxu0 %v4746
    %4956 = vmatprep.subr.bf16.mxu0 0
    %4957 = vmatpush1.bf16.msra.mxu0 %v4745
    %4958 = vmatprep.subr.bf16.mxu0 0
    %4959 = vmatpush1.bf16.msra.mxu0 %v4744
    %4960 = vmatprep.subr.bf16.mxu0 0
    %4961 = vmatpush2.bf16.msra.mxu0 %v4759
    %4962 = vmatprep.subr.bf16.mxu0 0
    %4963 = vmatpush2.bf16.msra.mxu0 %v4758
    %4964 = vmatprep.subr.bf16.mxu0 0
    %4965 = vmatpush2.bf16.msra.mxu0 %v4757
    %4966 = vmatprep.subr.bf16.mxu0 0
    %4967 = vmatpush2.bf16.msra.mxu0 %v4756
    %4968 = vmatprep.subr.bf16.mxu0 0
    %4969 = vmatpush2.bf16.msra.mxu0 %v4755
    %4970 = vmatprep.subr.bf16.mxu0 0
    %4971 = vmatpush2.bf16.msra.mxu0 %v4754
    %4972 = vmatprep.subr.bf16.mxu0 0
    %4973 = vmatpush2.bf16.msra.mxu0 %v4753
    %4974 = vmatprep.subr.bf16.mxu0 0
    %4975 = vmatpush2.bf16.msra.mxu0 %v4752
    %4976 = vmatprep.mubr.bf16.mxu0 %v4311
    %4977 = vmatmul.mubr.bf16.gmra.mxu0 %v4310
    %v4978 = vpop.f32.mrf.mxu0
    %v4979 = vadd.f32 %v4939, %v4978
    %v4980 = vpop.f32.mrf.mxu0
    %v4981 = vpop.f32.mrf.mxu0
    %v4982 = vpop.f32.mrf.mxu0
    %4983 = vdwg.mxu0
    %v5112 = vunpack.c.l.b16 %v3578
    %v5113 = vunpack.c.l.b16 %v3579
    %v5114 = vunpack.c.l.b16 %v3580
    %v5115 = vunpack.c.l.b16 %v3581
    %v5116 = vunpack.c.l.b16 %v3582
    %v5117 = vunpack.c.l.b16 %v3583
    %v5118 = vunpack.c.l.b16 %v3584
    %v5119 = vunpack.c.l.b16 %v3585
    %v5120 = vunpack.c.l.b16 %v3586
    %v5121 = vunpack.c.l.b16 %v3587
    %v5122 = vunpack.c.l.b16 %v3588
    %v5123 = vunpack.c.l.b16 %v3589
    %v5124 = vunpack.c.l.b16 %v3590
    %v5125 = vunpack.c.l.b16 %v3591
    %v5126 = vunpack.c.l.b16 %v3592
    %v5127 = vunpack.c.l.b16 %v3593
    %v5128 = vunpack.c.l.b16 %v3594
    %v5129 = vunpack.c.l.b16 %v3595
    %v5130 = vunpack.c.l.b16 %v3596
    %v5131 = vunpack.c.l.b16 %v3597
    %v5132 = vunpack.c.l.b16 %v3598
    %v5133 = vunpack.c.l.b16 %v3599
    %v5134 = vunpack.c.l.b16 %v3600
    %v5135 = vunpack.c.l.b16 %v3601
    %v5136 = vunpack.c.l.b16 %v3602
    %v5137 = vunpack.c.l.b16 %v3603
    %v5138 = vunpack.c.l.b16 %v3604
    %v5139 = vunpack.c.l.b16 %v3605
    %v5140 = vunpack.c.l.b16 %v3606
    %v5141 = vunpack.c.l.b16 %v3607
    %v5142 = vunpack.c.l.b16 %v3608
    %v5143 = vunpack.c.l.b16 %v3609
    %v5144 = vunpack.c.l.b16 %v3610
    %v5145 = vunpack.c.l.b16 %v3611
    %v5146 = vunpack.c.l.b16 %v3612
    %v5147 = vunpack.c.l.b16 %v3613
    %v5148 = vunpack.c.l.b16 %v3614
    %v5149 = vunpack.c.l.b16 %v3615
    %v5150 = vunpack.c.l.b16 %v3616
    %v5151 = vunpack.c.l.b16 %v3617
    %v5152 = vunpack.c.l.b16 %v3618
    %v5153 = vunpack.c.l.b16 %v3619
    %v5154 = vunpack.c.l.b16 %v3620
    %v5155 = vunpack.c.l.b16 %v3621
    %v5156 = vunpack.c.l.b16 %v3622
    %v5157 = vunpack.c.l.b16 %v3623
    %v5158 = vunpack.c.l.b16 %v3624
    %v5159 = vunpack.c.l.b16 %v3625
    %v5160 = vunpack.c.l.b16 %v3626
    %v5161 = vunpack.c.l.b16 %v3627
    %v5162 = vunpack.c.l.b16 %v3628
    %v5163 = vunpack.c.l.b16 %v3629
    %v5164 = vunpack.c.l.b16 %v3630
    %v5165 = vunpack.c.l.b16 %v3631
    %v5166 = vunpack.c.l.b16 %v3632
    %v5167 = vunpack.c.l.b16 %v3633
    %v5168 = vunpack.c.l.b16 %v3634
    %v5169 = vunpack.c.l.b16 %v3635
    %v5170 = vunpack.c.l.b16 %v3636
    %v5171 = vunpack.c.l.b16 %v3637
    %v5172 = vunpack.c.l.b16 %v3638
    %v5173 = vunpack.c.l.b16 %v3639
    %v5174 = vunpack.c.l.b16 %v3640
    %v5175 = vunpack.c.l.b16 %v3641
    %v5176 = vunpack.c.l.b16 %v3642
    %v5177 = vunpack.c.l.b16 %v3643
    %v5178 = vunpack.c.l.b16 %v3644
    %v5179 = vunpack.c.l.b16 %v3645
    %v5180 = vunpack.c.l.b16 %v3646
    %v5181 = vunpack.c.l.b16 %v3647
    %v5182 = vunpack.c.l.b16 %v3648
    %v5183 = vunpack.c.l.b16 %v3649
    %v5184 = vunpack.c.l.b16 %v3650
    %v5185 = vunpack.c.l.b16 %v3651
    %v5186 = vunpack.c.l.b16 %v3652
    %v5187 = vunpack.c.l.b16 %v3653
    %v5188 = vunpack.c.l.b16 %v3654
    %v5189 = vunpack.c.l.b16 %v3655
    %v5190 = vunpack.c.l.b16 %v3656
    %v5191 = vunpack.c.l.b16 %v3657
    %v5192 = vunpack.c.l.b16 %v3658
    %v5193 = vunpack.c.l.b16 %v3659
    %v5194 = vunpack.c.l.b16 %v3660
    %v5195 = vunpack.c.l.b16 %v3661
    %v5196 = vunpack.c.l.b16 %v3662
    %v5197 = vunpack.c.l.b16 %v3663
    %v5198 = vunpack.c.l.b16 %v3664
    %v5199 = vunpack.c.l.b16 %v3665
    %v5200 = vunpack.c.l.b16 %v3666
    %v5201 = vunpack.c.l.b16 %v3667
    %v5202 = vunpack.c.l.b16 %v3668
    %v5203 = vunpack.c.l.b16 %v3669
    %v5204 = vunpack.c.l.b16 %v3670
    %v5205 = vunpack.c.l.b16 %v3671
    %v5206 = vunpack.c.l.b16 %v3672
    %v5207 = vunpack.c.l.b16 %v3673
    %v5208 = vunpack.c.l.b16 %v3674
    %v5209 = vunpack.c.l.b16 %v3675
    %v5210 = vunpack.c.l.b16 %v3676
    %v5211 = vunpack.c.l.b16 %v3677
    %v5212 = vunpack.c.l.b16 %v3678
    %v5213 = vunpack.c.l.b16 %v3679
    %v5214 = vunpack.c.l.b16 %v3680
    %v5215 = vunpack.c.l.b16 %v3681
    %v5216 = vunpack.c.l.b16 %v3682
    %v5217 = vunpack.c.l.b16 %v3683
    %v5218 = vunpack.c.l.b16 %v3684
    %v5219 = vunpack.c.l.b16 %v3685
    %v5220 = vunpack.c.l.b16 %v3686
    %v5221 = vunpack.c.l.b16 %v3687
    %v5222 = vunpack.c.l.b16 %v3688
    %v5223 = vunpack.c.l.b16 %v3689
    %v5224 = vunpack.c.l.b16 %v3690
    %v5225 = vunpack.c.l.b16 %v3691
    %v5226 = vunpack.c.l.b16 %v3692
    %v5227 = vunpack.c.l.b16 %v3693
    %v5228 = vunpack.c.l.b16 %v3694
    %v5229 = vunpack.c.l.b16 %v3695
    %v5230 = vunpack.c.l.b16 %v3696
    %v5231 = vunpack.c.l.b16 %v3697
    %v5232 = vunpack.c.l.b16 %v3698
    %v5233 = vunpack.c.l.b16 %v3699
    %v5234 = vunpack.c.l.b16 %v3700
    %v5235 = vunpack.c.l.b16 %v3701
    %v5236 = vunpack.c.l.b16 %v3702
    %v5237 = vunpack.c.l.b16 %v3703
    %v5238 = vunpack.c.l.b16 %v3704
    %v5239 = vunpack.c.l.b16 %v3705
    %v5240 = vpack.c.b16 %v5113, %v5112
    %v5241 = vpack.c.b16 %v5115, %v5114
    %v5242 = vpack.c.b16 %v5117, %v5116
    %v5243 = vpack.c.b16 %v5119, %v5118
    %v5244 = vpack.c.b16 %v5121, %v5120
    %v5245 = vpack.c.b16 %v5123, %v5122
    %v5246 = vpack.c.b16 %v5125, %v5124
    %v5247 = vpack.c.b16 %v5127, %v5126
    %v5248 = vpack.c.b16 %v5129, %v5128
    %v5249 = vpack.c.b16 %v5131, %v5130
    %v5250 = vpack.c.b16 %v5133, %v5132
    %v5251 = vpack.c.b16 %v5135, %v5134
    %v5252 = vpack.c.b16 %v5137, %v5136
    %v5253 = vpack.c.b16 %v5139, %v5138
    %v5254 = vpack.c.b16 %v5141, %v5140
    %v5255 = vpack.c.b16 %v5143, %v5142
    %v5256 = vpack.c.b16 %v5145, %v5144
    %v5257 = vpack.c.b16 %v5147, %v5146
    %v5258 = vpack.c.b16 %v5149, %v5148
    %v5259 = vpack.c.b16 %v5151, %v5150
    %v5260 = vpack.c.b16 %v5153, %v5152
    %v5261 = vpack.c.b16 %v5155, %v5154
    %v5262 = vpack.c.b16 %v5157, %v5156
    %v5263 = vpack.c.b16 %v5159, %v5158
    %v5264 = vpack.c.b16 %v5161, %v5160
    %v5265 = vpack.c.b16 %v5163, %v5162
    %v5266 = vpack.c.b16 %v5165, %v5164
    %v5267 = vpack.c.b16 %v5167, %v5166
    %v5268 = vpack.c.b16 %v5169, %v5168
    %v5269 = vpack.c.b16 %v5171, %v5170
    %v5270 = vpack.c.b16 %v5173, %v5172
    %v5271 = vpack.c.b16 %v5175, %v5174
    %v5272 = vpack.c.b16 %v5177, %v5176
    %v5273 = vpack.c.b16 %v5179, %v5178
    %v5274 = vpack.c.b16 %v5181, %v5180
    %v5275 = vpack.c.b16 %v5183, %v5182
    %v5276 = vpack.c.b16 %v5185, %v5184
    %v5277 = vpack.c.b16 %v5187, %v5186
    %v5278 = vpack.c.b16 %v5189, %v5188
    %v5279 = vpack.c.b16 %v5191, %v5190
    %v5280 = vpack.c.b16 %v5193, %v5192
    %v5281 = vpack.c.b16 %v5195, %v5194
    %v5282 = vpack.c.b16 %v5197, %v5196
    %v5283 = vpack.c.b16 %v5199, %v5198
    %v5284 = vpack.c.b16 %v5201, %v5200
    %v5285 = vpack.c.b16 %v5203, %v5202
    %v5286 = vpack.c.b16 %v5205, %v5204
    %v5287 = vpack.c.b16 %v5207, %v5206
    %v5288 = vpack.c.b16 %v5209, %v5208
    %v5289 = vpack.c.b16 %v5211, %v5210
    %v5290 = vpack.c.b16 %v5213, %v5212
    %v5291 = vpack.c.b16 %v5215, %v5214
    %v5292 = vpack.c.b16 %v5217, %v5216
    %v5293 = vpack.c.b16 %v5219, %v5218
    %v5294 = vpack.c.b16 %v5221, %v5220
    %v5295 = vpack.c.b16 %v5223, %v5222
    %v5296 = vpack.c.b16 %v5225, %v5224
    %v5297 = vpack.c.b16 %v5227, %v5226
    %v5298 = vpack.c.b16 %v5229, %v5228
    %v5299 = vpack.c.b16 %v5231, %v5230
    %v5300 = vpack.c.b16 %v5233, %v5232
    %v5301 = vpack.c.b16 %v5235, %v5234
    %v5302 = vpack.c.b16 %v5237, %v5236
    %v5303 = vpack.c.b16 %v5239, %v5238
    %5368 = vmatprep.subr.bf16.mxu0 0
    %5369 = vmatpush1.bf16.msra.mxu0 %v5247
    %5370 = vmatprep.subr.bf16.mxu0 0
    %5371 = vmatpush1.bf16.msra.mxu0 %v5246
    %5372 = vmatprep.subr.bf16.mxu0 0
    %5373 = vmatpush1.bf16.msra.mxu0 %v5245
    %5374 = vmatprep.subr.bf16.mxu0 0
    %5375 = vmatpush1.bf16.msra.mxu0 %v5244
    %5376 = vmatprep.subr.bf16.mxu0 0
    %5377 = vmatpush1.bf16.msra.mxu0 %v5243
    %5378 = vmatprep.subr.bf16.mxu0 0
    %5379 = vmatpush1.bf16.msra.mxu0 %v5242
    %5380 = vmatprep.subr.bf16.mxu0 0
    %5381 = vmatpush1.bf16.msra.mxu0 %v5241
    %5382 = vmatprep.subr.bf16.mxu0 0
    %5383 = vmatpush1.bf16.msra.mxu0 %v5240
    %5384 = vmatprep.subr.bf16.mxu0 0
    %5385 = vmatpush2.bf16.msra.mxu0 %v5255
    %5386 = vmatprep.subr.bf16.mxu0 0
    %5387 = vmatpush2.bf16.msra.mxu0 %v5254
    %5388 = vmatprep.subr.bf16.mxu0 0
    %5389 = vmatpush2.bf16.msra.mxu0 %v5253
    %5390 = vmatprep.subr.bf16.mxu0 0
    %5391 = vmatpush2.bf16.msra.mxu0 %v5252
    %5392 = vmatprep.subr.bf16.mxu0 0
    %5393 = vmatpush2.bf16.msra.mxu0 %v5251
    %5394 = vmatprep.subr.bf16.mxu0 0
    %5395 = vmatpush2.bf16.msra.mxu0 %v5250
    %5396 = vmatprep.subr.bf16.mxu0 0
    %5397 = vmatpush2.bf16.msra.mxu0 %v5249
    %5398 = vmatprep.subr.bf16.mxu0 0
    %5399 = vmatpush2.bf16.msra.mxu0 %v5248
    %5400 = vmatprep.mubr.bf16.mxu0 %v3570
    %5401 = vmatmul.mubr.bf16.gmra.mxu0 %v3569
    %v5402 = vpop.f32.mrf.mxu0
    %v5403 = vadd.f32 %v4979, %v5402
    %v5404 = vpop.f32.mrf.mxu0
    %v5405 = vpop.f32.mrf.mxu0
    %v5406 = vpop.f32.mrf.mxu0
    %5407 = vdwg.mxu0
    %5408 = vmatprep.subr.bf16.mxu0 0
    %5409 = vmatpush1.bf16.msra.mxu0 %v5263
    %5410 = vmatprep.subr.bf16.mxu0 0
    %5411 = vmatpush1.bf16.msra.mxu0 %v5262
    %5412 = vmatprep.subr.bf16.mxu0 0
    %5413 = vmatpush1.bf16.msra.mxu0 %v5261
    %5414 = vmatprep.subr.bf16.mxu0 0
    %5415 = vmatpush1.bf16.msra.mxu0 %v5260
    %5416 = vmatprep.subr.bf16.mxu0 0
    %5417 = vmatpush1.bf16.msra.mxu0 %v5259
    %5418 = vmatprep.subr.bf16.mxu0 0
    %5419 = vmatpush1.bf16.msra.mxu0 %v5258
    %5420 = vmatprep.subr.bf16.mxu0 0
    %5421 = vmatpush1.bf16.msra.mxu0 %v5257
    %5422 = vmatprep.subr.bf16.mxu0 0
    %5423 = vmatpush1.bf16.msra.mxu0 %v5256
    %5424 = vmatprep.subr.bf16.mxu0 0
    %5425 = vmatpush2.bf16.msra.mxu0 %v5271
    %5426 = vmatprep.subr.bf16.mxu0 0
    %5427 = vmatpush2.bf16.msra.mxu0 %v5270
    %5428 = vmatprep.subr.bf16.mxu0 0
    %5429 = vmatpush2.bf16.msra.mxu0 %v5269
    %5430 = vmatprep.subr.bf16.mxu0 0
    %5431 = vmatpush2.bf16.msra.mxu0 %v5268
    %5432 = vmatprep.subr.bf16.mxu0 0
    %5433 = vmatpush2.bf16.msra.mxu0 %v5267
    %5434 = vmatprep.subr.bf16.mxu0 0
    %5435 = vmatpush2.bf16.msra.mxu0 %v5266
    %5436 = vmatprep.subr.bf16.mxu0 0
    %5437 = vmatpush2.bf16.msra.mxu0 %v5265
    %5438 = vmatprep.subr.bf16.mxu0 0
    %5439 = vmatpush2.bf16.msra.mxu0 %v5264
    %5440 = vmatprep.mubr.bf16.mxu0 %v3572
    %5441 = vmatmul.mubr.bf16.gmra.mxu0 %v3571
    %v5442 = vpop.f32.mrf.mxu0
    %v5443 = vadd.f32 %v5403, %v5442
    %v5444 = vpop.f32.mrf.mxu0
    %v5445 = vpop.f32.mrf.mxu0
    %v5446 = vpop.f32.mrf.mxu0
    %5447 = vdwg.mxu0
    %5448 = vmatprep.subr.bf16.mxu0 0
    %5449 = vmatpush1.bf16.msra.mxu0 %v5279
    %5450 = vmatprep.subr.bf16.mxu0 0
    %5451 = vmatpush1.bf16.msra.mxu0 %v5278
    %5452 = vmatprep.subr.bf16.mxu0 0
    %5453 = vmatpush1.bf16.msra.mxu0 %v5277
    %5454 = vmatprep.subr.bf16.mxu0 0
    %5455 = vmatpush1.bf16.msra.mxu0 %v5276
    %5456 = vmatprep.subr.bf16.mxu0 0
    %5457 = vmatpush1.bf16.msra.mxu0 %v5275
    %5458 = vmatprep.subr.bf16.mxu0 0
    %5459 = vmatpush1.bf16.msra.mxu0 %v5274
    %5460 = vmatprep.subr.bf16.mxu0 0
    %5461 = vmatpush1.bf16.msra.mxu0 %v5273
    %5462 = vmatprep.subr.bf16.mxu0 0
    %5463 = vmatpush1.bf16.msra.mxu0 %v5272
    %5464 = vmatprep.subr.bf16.mxu0 0
    %5465 = vmatpush2.bf16.msra.mxu0 %v5287
    %5466 = vmatprep.subr.bf16.mxu0 0
    %5467 = vmatpush2.bf16.msra.mxu0 %v5286
    %5468 = vmatprep.subr.bf16.mxu0 0
    %5469 = vmatpush2.bf16.msra.mxu0 %v5285
    %5470 = vmatprep.subr.bf16.mxu0 0
    %5471 = vmatpush2.bf16.msra.mxu0 %v5284
    %5472 = vmatprep.subr.bf16.mxu0 0
    %5473 = vmatpush2.bf16.msra.mxu0 %v5283
    %5474 = vmatprep.subr.bf16.mxu0 0
    %5475 = vmatpush2.bf16.msra.mxu0 %v5282
    %5476 = vmatprep.subr.bf16.mxu0 0
    %5477 = vmatpush2.bf16.msra.mxu0 %v5281
    %5478 = vmatprep.subr.bf16.mxu0 0
    %5479 = vmatpush2.bf16.msra.mxu0 %v5280
    %5480 = vmatprep.mubr.bf16.mxu0 %v3574
    %5481 = vmatmul.mubr.bf16.gmra.mxu0 %v3573
    %v5482 = vpop.f32.mrf.mxu0
    %v5483 = vadd.f32 %v5443, %v5482
    %v5484 = vpop.f32.mrf.mxu0
    %v5485 = vpop.f32.mrf.mxu0
    %v5486 = vpop.f32.mrf.mxu0
    %5487 = vdwg.mxu0
    %5488 = vmatprep.subr.bf16.mxu0 0
    %5489 = vmatpush1.bf16.msra.mxu0 %v5295
    %5490 = vmatprep.subr.bf16.mxu0 0
    %5491 = vmatpush1.bf16.msra.mxu0 %v5294
    %5492 = vmatprep.subr.bf16.mxu0 0
    %5493 = vmatpush1.bf16.msra.mxu0 %v5293
    %5494 = vmatprep.subr.bf16.mxu0 0
    %5495 = vmatpush1.bf16.msra.mxu0 %v5292
    %5496 = vmatprep.subr.bf16.mxu0 0
    %5497 = vmatpush1.bf16.msra.mxu0 %v5291
    %5498 = vmatprep.subr.bf16.mxu0 0
    %5499 = vmatpush1.bf16.msra.mxu0 %v5290
    %5500 = vmatprep.subr.bf16.mxu0 0
    %5501 = vmatpush1.bf16.msra.mxu0 %v5289
    %5502 = vmatprep.subr.bf16.mxu0 0
    %5503 = vmatpush1.bf16.msra.mxu0 %v5288
    %5504 = vmatprep.subr.bf16.mxu0 0
    %5505 = vmatpush2.bf16.msra.mxu0 %v5303
    %5506 = vmatprep.subr.bf16.mxu0 0
    %5507 = vmatpush2.bf16.msra.mxu0 %v5302
    %5508 = vmatprep.subr.bf16.mxu0 0
    %5509 = vmatpush2.bf16.msra.mxu0 %v5301
    %5510 = vmatprep.subr.bf16.mxu0 0
    %5511 = vmatpush2.bf16.msra.mxu0 %v5300
    %5512 = vmatprep.subr.bf16.mxu0 0
    %5513 = vmatpush2.bf16.msra.mxu0 %v5299
    %5514 = vmatprep.subr.bf16.mxu0 0
    %5515 = vmatpush2.bf16.msra.mxu0 %v5298
    %5516 = vmatprep.subr.bf16.mxu0 0
    %5517 = vmatpush2.bf16.msra.mxu0 %v5297
    %5518 = vmatprep.subr.bf16.mxu0 0
    %5519 = vmatpush2.bf16.msra.mxu0 %v5296
    %5520 = vmatprep.mubr.bf16.mxu0 %v3576
    %5521 = vmatmul.mubr.bf16.gmra.mxu0 %v3575
    %v5522 = vpop.f32.mrf.mxu0
    %v5523 = vadd.f32 %v5483, %v5522
    %v5524 = vpop.f32.mrf.mxu0
    %v5525 = vpop.f32.mrf.mxu0
    %v5526 = vpop.f32.mrf.mxu0
    %5527 = vdwg.mxu0
    %s5528 = scalar_lea.vmem %s8, 1
    %v5529 = vld [vmem:[%s5528] sm:$0x1]
    %v5531 = vlaneseq
    %v5532 = vshrl.u32 %v5531, 7
    %v5533 = vsub.s32 0, %v5532
    %v5534 = vrot.slane %v5529, %v5533
    %v5536 = vadd.f32 %v5523, %v5534
    %v5537 = vadd.f32 %v2967, %v5536
    %s5538 = scalar_lea.vmem %s9, 1
    %v5539 = vld [vmem:[%s5538] sm:$0x1]
    %s5540 = scalar_lea.vmem %s10, 1
    %v5541 = vld [vmem:[%s5540] sm:$0x1]
    %5542 = vadd.xlane.f32.xlu0 %v5537
    %v5543 = vpop.xlane.xlu0 %5542
    %v5544 = vmul.f32 %v5543, %v202
    %v5545 = vsub.f32 %v5537, %v5544
    %v5546 = vsel %vm206, %v5545, 0.0
    %v5547 = vmul.f32 %v5546, %v5546
    %5548 = vadd.xlane.f32.xlu0 %v5547
    %v5549 = vpop.xlane.xlu0 %5548
    %v5550 = vmul.f32 %v5549, %v202
    %v5551 = vadd.f32 %v5550, 1e-05
    %v5552 = vrsqrt.pop %v5551
    %v5553 = vmul.f32 %v5546, %v5552
    %v5555 = vlaneseq
    %v5556 = vshrl.u32 %v5555, 7
    %v5557 = vsub.s32 0, %v5556
    %v5558 = vrot.slane %v5539, %v5557
    %v5560 = vmul.f32 %v5553, %v5558
    %v5562 = vlaneseq
    %v5563 = vshrl.u32 %v5562, 7
    %v5564 = vsub.s32 0, %v5563
    %v5565 = vrot.slane %v5541, %v5564
    %v5567 = vadd.f32 %v5560, %v5565
    %v5568 = vpack.c.bf16 %v5567, %v5567
    %v5569 = vld [vmem:[%s11] sm:$0xf]
    %v5570 = vld [vmem:[%s11 + $0x4] sm:$0xf]
    %v5571 = vld [vmem:[%s11 + $0x8] sm:$0xf]
    %v5572 = vld [vmem:[%s11 + $0xc] sm:$0xf]
    %v5573 = vld [vmem:[%s11 + $0x10] sm:$0xf]
    %v5574 = vld [vmem:[%s11 + $0x14] sm:$0xf]
    %v5575 = vld [vmem:[%s11 + $0x18] sm:$0xf]
    %v5576 = vld [vmem:[%s11 + $0x1c] sm:$0xf]
    %v5577 = vld [vmem:[%s11 + $0x20] sm:$0xf]
    %v5578 = vld [vmem:[%s11 + $0x24] sm:$0xf]
    %v5579 = vld [vmem:[%s11 + $0x28] sm:$0xf]
    %v5580 = vld [vmem:[%s11 + $0x2c] sm:$0xf]
    %v5581 = vld [vmem:[%s11 + $0x30] sm:$0xf]
    %v5582 = vld [vmem:[%s11 + $0x34] sm:$0xf]
    %v5583 = vld [vmem:[%s11 + $0x38] sm:$0xf]
    %v5584 = vld [vmem:[%s11 + $0x3c] sm:$0xf]
    %v5585 = vld [vmem:[%s12] sm:$0x1]
    %v5587 = vlaneseq
    %v5588 = vshrl.u32 %v5587, 7
    %v5589 = vsub.s32 0, %v5588
    %v5590 = vrot.slane %v5585, %v5589
    %v5608 = vunpack.c.l.b16 %v5569
    %v5609 = vunpack.c.l.b16 %v5570
    %v5610 = vunpack.c.l.b16 %v5571
    %v5611 = vunpack.c.l.b16 %v5572
    %v5612 = vunpack.c.l.b16 %v5573
    %v5613 = vunpack.c.l.b16 %v5574
    %v5614 = vunpack.c.l.b16 %v5575
    %v5615 = vunpack.c.l.b16 %v5576
    %v5616 = vunpack.c.l.b16 %v5577
    %v5617 = vunpack.c.l.b16 %v5578
    %v5618 = vunpack.c.l.b16 %v5579
    %v5619 = vunpack.c.l.b16 %v5580
    %v5620 = vunpack.c.l.b16 %v5581
    %v5621 = vunpack.c.l.b16 %v5582
    %v5622 = vunpack.c.l.b16 %v5583
    %v5623 = vunpack.c.l.b16 %v5584
    %v5624 = vpack.c.b16 %v5609, %v5608
    %v5625 = vpack.c.b16 %v5611, %v5610
    %v5626 = vpack.c.b16 %v5613, %v5612
    %v5627 = vpack.c.b16 %v5615, %v5614
    %v5628 = vpack.c.b16 %v5617, %v5616
    %v5629 = vpack.c.b16 %v5619, %v5618
    %v5630 = vpack.c.b16 %v5621, %v5620
    %v5631 = vpack.c.b16 %v5623, %v5622
    %5640 = vmatprep.subr.bf16.mxu0 0
    %5641 = vmatpush1.bf16.msra.mxu0 %v5631
    %5642 = vmatprep.subr.bf16.mxu0 0
    %5643 = vmatpush1.bf16.msra.mxu0 %v5630
    %5644 = vmatprep.subr.bf16.mxu0 0
    %5645 = vmatpush1.bf16.msra.mxu0 %v5629
    %5646 = vmatprep.subr.bf16.mxu0 0
    %5647 = vmatpush1.bf16.msra.mxu0 %v5628
    %5648 = vmatprep.subr.bf16.mxu0 0
    %5649 = vmatpush1.bf16.msra.mxu0 %v5627
    %5650 = vmatprep.subr.bf16.mxu0 0
    %5651 = vmatpush1.bf16.msra.mxu0 %v5626
    %5652 = vmatprep.subr.bf16.mxu0 0
    %5653 = vmatpush1.bf16.msra.mxu0 %v5625
    %5654 = vmatprep.subr.bf16.mxu0 0
    %5655 = vmatpush1.bf16.msra.mxu0 %v5624
    %5656 = vmatprep.subr.bf16.mxu0 0
    %5657 = vmatpush2.bf16.msra.mxu0 0
    %5658 = vmatprep.subr.bf16.mxu0 0
    %5659 = vmatpush2.bf16.msra.mxu0 0
    %5660 = vmatprep.subr.bf16.mxu0 0
    %5661 = vmatpush2.bf16.msra.mxu0 0
    %5662 = vmatprep.subr.bf16.mxu0 0
    %5663 = vmatpush2.bf16.msra.mxu0 0
    %5664 = vmatprep.subr.bf16.mxu0 0
    %5665 = vmatpush2.bf16.msra.mxu0 0
    %5666 = vmatprep.subr.bf16.mxu0 0
    %5667 = vmatpush2.bf16.msra.mxu0 0
    %5668 = vmatprep.subr.bf16.mxu0 0
    %5669 = vmatpush2.bf16.msra.mxu0 0
    %5670 = vmatprep.subr.bf16.mxu0 0
    %5671 = vmatpush2.bf16.msra.mxu0 0
    %5672 = vmatprep.mubr.bf16.mxu0 0
    %5673 = vmatmul.mubr.bf16.gmra.mxu0 %v5568
    %v5674 = vpop.f32.mrf.mxu0
    %v5675 = vadd.f32 %v5590, %v5674
    %v5676 = vpop.f32.mrf.mxu0
    %v5677 = vpop.f32.mrf.mxu0
    %v5678 = vpop.f32.mrf.mxu0
    %5679 = vdwg.mxu0
    %v5680 = vmax.f32 %v5675, 0.0
    %v5681 = vld [vmem:[%s13] sm:$0x1]
    %v5683 = vlaneseq
    %v5684 = vshrl.u32 %v5683, 7
    %v5685 = vsub.s32 0, %v5684
    %v5686 = vrot.slane %v5681, %v5685
    %v5688 = vmul.f32 %v5680, %v5686
    %vm5689 = vcmask 523264
    %v5690 = vsel %vm5689, %v5688, 0.0
    %5691 = vadd.xlane.f32.xlu0 %v5690
    %v5692 = vpop.xlane.xlu0 %5691
    %v5693 = vld [vmem:[#allocation2] sm:$0x1]
    %v5695 = vlaneseq
    %v5696 = vshrl.u32 %v5695, 7
    %v5697 = vsub.s32 0, %v5696
    %v5698 = vrot.slane %v5693, %v5697
    %v5700 = vadd.f32 %v5692, %v5698
    %v5701 = vsub.f32 0.0, %v5700
    %v5702 = vmul.f32 %v5701, 1.442695
    %v5703 = vpow.pop %v5702
    %v5704 = vadd.f32 %v5703, 1.0
    %v5705 = vrcp.pop %v5704
    %v5706 = vmul.f32 1.0, %v5705
    %vm5707 = vcmask 7168
    %5708 = vst.msk [vmem:[%s15] sm:$0xff] %vm5707, %v5706
    // Predicated region
    $region70: #{transformer_classifier_forward.1} parent=1 // pred_check
      _
    $region71: #{transformer_classifier_forward.1} parent=1 // pred_check_branch
      %5710 = sbr.rel (0) target = $region73
    $region72: #{transformer_classifier_forward.1} parent=1 // pred_region
      _
    $region73: #{transformer_classifier_forward.1} parent=1 // pred_fallthru
      _
    // Predicated region
    $region74: #{transformer_classifier_forward.1} parent=1 // pred_check
      _
    $region75: #{transformer_classifier_forward.1} parent=1 // pred_check_branch
      %5712 = sbr.rel (0) target = $region77
    $region76: #{transformer_classifier_forward.1} parent=1 // pred_region
      _
    $region77: #{transformer_classifier_forward.1} parent=1 // pred_fallthru
      _
    %5713 = vsyncpa [#allocation4], 1
    %5714 = vsyncpa [#allocation6], 1

</llo_original>
